<compile_context>
chip_gen: v6e
topology: v6e:2x2x1
jax: 0.10.0
libtpu: 0.0.40
codegen_flags: <defaults>
</compile_context>

<pallas_src>
import functools

import jax
import jax.numpy as jnp
from jax import lax
from jax.experimental import pallas as pl
from jax.experimental.pallas import tpu as pltpu


def _round_up(v, m):
    return (v + m - 1) // m * m


def _cnn_kernel(xe_ref, xo_ref, a_ref, b_ref, wfc_ref, bfc_ref, out_ref):
    # xe_ref/xo_ref: (hp2, Bt, K1)   even / odd padded input rows, lane-packed (w*cin)
    # a_ref : (3, K1, 2*W2C)         conv1 banded weights (cols: [even-w half | odd-w half])
    # b_ref : (3, W2C, W2C)          conv2 banded weights (horizontal zero-pad folded in)
    # wfc_ref: (H2, W2C, NCLS_PAD)   FC weights in the kernel's (h, w*c) layout
    # bfc_ref: (1, NCLS_PAD)
    # out_ref: (Bt, NCLS_PAD)
    hp2, bt, k1 = xe_ref.shape
    h2 = hp2 - 1                    # pooled height (= H/2)
    w2c = b_ref.shape[1]            # padded pooled lane width (W/2 * Cmid -> 256)

    dot = functools.partial(jnp.dot, preferred_element_type=jnp.float32)

    xe = xe_ref[...]                # bf16
    xo = xo_ref[...]

    # (h, b, k) -> (h*b, k); Bt is a multiple of 16 so these reshapes are tile-aligned.
    def rows(v, start):
        return v[start:start + h2].reshape(h2 * bt, k1)

    xe0, xe1 = rows(xe, 0), rows(xe, 1)
    xo0, xo1 = rows(xo, 0), rows(xo, 1)

    # --- conv1 (3x3, padding=1), split by output-row parity --------------------------
    # out row 2r   uses padded rows (2r, 2r+1, 2r+2)   = (xe[r], xo[r], xe[r+1])
    # out row 2r+1 uses padded rows (2r+1, 2r+2, 2r+3) = (xo[r], xe[r+1], xo[r+1])
    y_even = dot(xe0, a_ref[0]) + dot(xo0, a_ref[1]) + dot(xe1, a_ref[2])
    y_odd = dot(xo0, a_ref[0]) + dot(xe1, a_ref[1]) + dot(xo1, a_ref[2])

    # --- ReLU + 2x2 max-pool (vertical = parity max, horizontal = half max) ----------
    v = jnp.maximum(jnp.maximum(y_even, y_odd), 0.0)                 # (h2*bt, 2*w2c) f32
    pooled = jnp.maximum(v[:, :w2c], v[:, w2c:]).astype(jnp.bfloat16)  # (h2*bt, w2c)

    # --- conv2 (3x3, padding=1): vertical taps via tile-aligned shifted views --------
    zrow = jnp.zeros((bt, w2c), jnp.bfloat16)
    p_up = jnp.concatenate([zrow, pooled[:(h2 - 1) * bt]], axis=0)   # row h -> pooled h-1
    p_dn = jnp.concatenate([pooled[bt:], zrow], axis=0)              # row h -> pooled h+1
    y2 = dot(p_up, b_ref[0]) + dot(pooled, b_ref[1]) + dot(p_dn, b_ref[2])
    y2 = jnp.maximum(y2, 0.0).astype(jnp.bfloat16)                   # (h2*bt, w2c)

    # --- fully connected: one batched (over h) matmul + vector reduce ----------------
    parts = lax.dot_general(
        y2.reshape(h2, bt, w2c), wfc_ref[...],
        dimension_numbers=(((2,), (1,)), ((0,), (0,))),
        preferred_element_type=jnp.float32)                          # (h2, bt, ncls_pad)
    logits = jnp.sum(parts, axis=0) + bfc_ref[...]                   # (bt, ncls_pad)
    out_ref[...] = logits.astype(out_ref.dtype)


def _combined_hwio(k31, k13):
    """PyTorch combined_kernel = k3x1 * k1x3 (OIHW broadcast), converted to HWIO."""
    return jnp.transpose(k31 * k13, (2, 3, 1, 0))


def _conv1_band(w_hwio, width, k_pad, half_pad):
    """(3,3,Cin,Cout) -> (3, k_pad, 2*half_pad) banded matrices acting on lane-packed
    padded rows; output columns are [even-w half | odd-w half], each `half_pad` wide."""
    _, _, cin, cout = w_hwio.shape
    wp = width + 2
    w2 = width // 2
    sel = (jnp.arange(wp)[None, None, :] ==
           (jnp.arange(width)[None, :, None] + jnp.arange(3)[:, None, None])
           ).astype(w_hwio.dtype)                               # (kw, w, j)
    a = jnp.einsum("kwj,hkic->hjiwc", sel, w_hwio)              # (kh, j, ci, w, co)
    a = a.reshape(3, wp * cin, w2, 2, cout)                     # w -> (q, parity)
    a = jnp.transpose(a, (0, 1, 3, 2, 4))                       # (kh, K, parity, q, co)
    a = a.reshape(3, wp * cin, 2, w2 * cout)
    a = jnp.pad(a, ((0, 0), (0, k_pad - wp * cin), (0, 0),
                    (0, half_pad - w2 * cout)))
    return a.reshape(3, k_pad, 2 * half_pad)


def _conv2_band(w_hwio, width, pad_to):
    """(3,3,Cmid,Cout) -> (3, pad_to, pad_to); horizontal zero padding folded in."""
    _, _, cmid, cout = w_hwio.shape
    sel = (jnp.arange(width)[None, None, :] ==
           (jnp.arange(width)[None, :, None] + jnp.arange(3)[:, None, None] - 1)
           ).astype(w_hwio.dtype)                               # (kw, w, j)
    b = jnp.einsum("kwj,hkic->hjiwc", sel, w_hwio)
    b = b.reshape(3, width * cmid, width * cout)
    return jnp.pad(b, ((0, 0), (0, pad_to - width * cmid),
                       (0, pad_to - width * cout)))


@jax.jit
def custom_simple_cnn(x, k3x1, k1x3, k3x1_2, k1x3_2, fc_w, fc_b):
    """CustomSimpleCNN forward: NCHW input -> (N, num_classes) logits."""
    n, cin, height, width = x.shape
    cmid = k3x1.shape[0]
    ncls = fc_w.shape[0]
    assert height % 2 == 0 and width % 2 == 0
    ph, pw = height // 2, width // 2
    assert fc_w.shape[1] == cmid * ph * pw

    # Sizing: batch tile multiple of 16 (bf16 tile-aligned (h,b)->(h*b) reshapes);
    # all lane widths padded to multiples of 128.
    bt = min(32, _round_up(n, 16))
    npad = _round_up(n, bt)
    k1 = _round_up((width + 2) * cin, 128)      # conv1 contraction lanes (120 -> 128)
    w2c = _round_up(pw * cmid, 128)             # pooled lane width (224 -> 256)
    ncls_pad = _round_up(ncls, 128)
    hp2 = (height + 2) // 2

    f32, bf16 = jnp.float32, jnp.bfloat16

    # --- weight preprocessing (wrapper-side, layout-only / tiny) ---------------------
    w1 = _combined_hwio(k3x1, k1x3)                              # (3,3,Cin,Cmid)
    w2 = _combined_hwio(k3x1_2, k1x3_2)                          # (3,3,Cmid,Cmid)
    a = _conv1_band(w1, width, k1, w2c).astype(bf16)             # (3, k1, 2*w2c)
    b = _conv2_band(w2, pw, w2c).astype(bf16)                    # (3, w2c, w2c)

    # FC: PyTorch flattens (C, H2, W2); permute to the kernel's (h, w*c) layout.
    wfc = (fc_w.reshape(ncls, cmid, ph, pw).transpose(2, 3, 1, 0)
           .reshape(ph, pw * cmid, ncls))
    wfc = jnp.pad(wfc, ((0, 0), (0, w2c - pw * cmid),
                        (0, ncls_pad - ncls))).astype(bf16)      # (ph, w2c, ncls_pad)
    bfc = jnp.pad(fc_b, (0, ncls_pad - ncls)).reshape(1, ncls_pad).astype(f32)

    # --- input: NCHW -> zero-padded, lane-packed rows in (row, batch, lane) layout ----
    xp = jnp.pad(jnp.transpose(x, (0, 2, 3, 1)).astype(f32),
                 ((0, npad - n), (1, 1), (1, 1), (0, 0)))
    xp = xp.reshape(npad, height + 2, (width + 2) * cin)
    xp = jnp.pad(xp, ((0, 0), (0, 0), (0, k1 - (width + 2) * cin)))
    xe = jnp.transpose(xp[:, 0::2, :], (1, 0, 2)).astype(bf16)   # (hp2, npad, k1)
    xo = jnp.transpose(xp[:, 1::2, :], (1, 0, 2)).astype(bf16)

    out = pl.pallas_call(
        _cnn_kernel,
        out_shape=jax.ShapeDtypeStruct((npad, ncls_pad), f32),
        grid_spec=pltpu.PrefetchScalarGridSpec(
            num_scalar_prefetch=0,
            grid=(npad // bt,),
            in_specs=[
                pl.BlockSpec((hp2, bt, k1), lambda i: (0, i, 0)),
                pl.BlockSpec((hp2, bt, k1), lambda i: (0, i, 0)),
                pl.BlockSpec((3, k1, 2 * w2c), lambda i: (0, 0, 0)),
                pl.BlockSpec((3, w2c, w2c), lambda i: (0, 0, 0)),
                pl.BlockSpec((ph, w2c, ncls_pad), lambda i: (0, 0, 0)),
                pl.BlockSpec((1, ncls_pad), lambda i: (0, 0)),
            ],
            out_specs=pl.BlockSpec((bt, ncls_pad), lambda i: (i, 0)),
        ),
        compiler_params=pltpu.CompilerParams(
            dimension_semantics=("parallel",)),
    )(xe, xo, a, b, wfc, bfc)
    return out[:n, :ncls].astype(x.dtype)


def _reference(x, k3x1, k1x3, k3x1_2, k1x3_2, fc_w, fc_b):
    """Pure-JAX f32 mirror of the PyTorch module (NCHW / OIHW), for validation."""
    def conv(v, k):
        return lax.conv_general_dilated(
            v, k, window_strides=(1, 1), padding=((1, 1), (1, 1)),
            dimension_numbers=("NCHW", "OIHW", "NCHW"),
            precision=lax.Precision.HIGHEST)

    y = jnp.maximum(conv(x, k3x1 * k1x3), 0.0)
    y = lax.reduce_window(y, jnp.array(-jnp.inf, y.dtype), lax.max,
                          (1, 1, 2, 2), (1, 1, 2, 2), "VALID")
    y = jnp.maximum(conv(y, k3x1_2 * k1x3_2), 0.0)
    flat = y.reshape(y.shape[0], -1)
    return jnp.dot(flat, fc_w.T, precision=lax.Precision.HIGHEST) + fc_b[None, :]


if __name__ == "__main__":
    key = jax.random.PRNGKey(0)
    N, CIN, H, W = 2, 4, 28, 28          # 28x28 is implied by fc = Linear(16*14*14, ncls)
    CMID, NCLS = 16, 10

    ks = jax.random.split(key, 7)
    x = jax.random.normal(ks[0], (N, CIN, H, W), jnp.float32)
    k3x1 = jax.random.normal(ks[1], (CMID, CIN, 3, 1), jnp.float32)
    k1x3 = jax.random.normal(ks[2], (CMID, CIN, 1, 3), jnp.float32)
    k3x1_2 = jax.random.normal(ks[3], (CMID, CMID, 3, 1), jnp.float32)
    k1x3_2 = jax.random.normal(ks[4], (CMID, CMID, 1, 3), jnp.float32)
    fc_in = CMID * (H // 2) * (W // 2)
    bound = 1.0 / float(fc_in) ** 0.5
    fc_w = jax.random.uniform(ks[5], (NCLS, fc_in), jnp.float32, -bound, bound)
    fc_b = jax.random.uniform(ks[6], (NCLS,), jnp.float32, -bound, bound)

    out = jax.block_until_ready(
        custom_simple_cnn(x, k3x1, k1x3, k3x1_2, k1x3_2, fc_w, fc_b))
    ref = jax.block_until_ready(
        _reference(x, k3x1, k1x3, k3x1_2, k1x3_2, fc_w, fc_b))

    assert out.shape == (N, NCLS)
    err = float(jnp.max(jnp.abs(out - ref)) / (jnp.max(jnp.abs(ref)) + 1e-6))
    assert err < 1e-2, f"normalized max error too large: {err}"
    print("KERNEL_OK")
</pallas_src>

<mosaic_0001>
module attributes {stable_mosaic.version = 11 : i64} {
  func.func @_cnn_kernel(%arg0: i32, %arg1: memref<15x16x128xbf16, #tpu.memory_space<vmem>>, %arg2: memref<15x16x128xbf16, #tpu.memory_space<vmem>>, %arg3: memref<3x128x512xbf16, #tpu.memory_space<vmem>>, %arg4: memref<3x256x256xbf16, #tpu.memory_space<vmem>>, %arg5: memref<14x256x128xbf16, #tpu.memory_space<vmem>>, %arg6: memref<1x128xf32, #tpu.memory_space<vmem>>, %arg7: memref<16x128xf32, #tpu.memory_space<vmem>>) attributes {dimension_semantics = [#tpu.dimension_semantics<parallel>], iteration_bounds = array<i64: 1>, scalar_prefetch = 0 : i64, scratch_operands = 0 : i64, tpu.core_type = #tpu.core_type<tc>, window_params = [{transform_indices = @transform_0, window_bounds = array<i64: 15, 16, 128>}, {transform_indices = @transform_1, window_bounds = array<i64: 15, 16, 128>}, {pipeline_mode = #tpu.pipeline_mode<synchronous>, transform_indices = @transform_2, window_bounds = array<i64: 3, 128, 512>}, {pipeline_mode = #tpu.pipeline_mode<synchronous>, transform_indices = @transform_3, window_bounds = array<i64: 3, 256, 256>}, {pipeline_mode = #tpu.pipeline_mode<synchronous>, transform_indices = @transform_4, window_bounds = array<i64: 14, 256, 128>}, {pipeline_mode = #tpu.pipeline_mode<synchronous>, transform_indices = @transform_5, window_bounds = array<i64: 1, 128>}, {transform_indices = @transform_6, window_bounds = array<i64: 16, 128>}]} {
    %c0 = arith.constant 0 : index
    %c0_0 = arith.constant 0 : index
    %c0_1 = arith.constant 0 : index
    %0 = vector.load %arg1[%c0, %c0_0, %c0_1] : memref<15x16x128xbf16, #tpu.memory_space<vmem>>, vector<15x16x128xbf16>
    %c0_2 = arith.constant 0 : index
    %c0_3 = arith.constant 0 : index
    %c0_4 = arith.constant 0 : index
    %1 = vector.load %arg2[%c0_2, %c0_3, %c0_4] : memref<15x16x128xbf16, #tpu.memory_space<vmem>>, vector<15x16x128xbf16>
    %2 = vector.extract_strided_slice %0 {offsets = [0, 0, 0], sizes = [14, 16, 128], strides = [1, 1, 1]} : vector<15x16x128xbf16> to vector<14x16x128xbf16>
    %3 = vector.shape_cast %2 : vector<14x16x128xbf16> to vector<224x128xbf16>
    %4 = vector.extract_strided_slice %0 {offsets = [1, 0, 0], sizes = [14, 16, 128], strides = [1, 1, 1]} : vector<15x16x128xbf16> to vector<14x16x128xbf16>
    %5 = vector.shape_cast %4 : vector<14x16x128xbf16> to vector<224x128xbf16>
    %6 = vector.extract_strided_slice %1 {offsets = [0, 0, 0], sizes = [14, 16, 128], strides = [1, 1, 1]} : vector<15x16x128xbf16> to vector<14x16x128xbf16>
    %7 = vector.shape_cast %6 : vector<14x16x128xbf16> to vector<224x128xbf16>
    %8 = vector.extract_strided_slice %1 {offsets = [1, 0, 0], sizes = [14, 16, 128], strides = [1, 1, 1]} : vector<15x16x128xbf16> to vector<14x16x128xbf16>
    %9 = vector.shape_cast %8 : vector<14x16x128xbf16> to vector<224x128xbf16>
    %c0_5 = arith.constant 0 : index
    %c0_6 = arith.constant 0 : index
    %c0_7 = arith.constant 0 : index
    %10 = vector.load %arg3[%c0_5, %c0_6, %c0_7] : memref<3x128x512xbf16, #tpu.memory_space<vmem>>, vector<1x128x512xbf16>
    %11 = vector.shape_cast %10 : vector<1x128x512xbf16> to vector<128x512xbf16>
    %cst = arith.constant dense<0.000000e+00> : vector<224x512xf32>
    %12 = tpu.matmul %3, %11, %cst {dimension_numbers = #tpu.dot_dimension_numbers<[1], [0], [0], [1], [0, 0, 1, 1], [], []>} : vector<224x128xbf16>, vector<128x512xbf16>, vector<224x512xf32> -> vector<224x512xf32>
    %c1 = arith.constant 1 : index
    %c0_8 = arith.constant 0 : index
    %c0_9 = arith.constant 0 : index
    %13 = vector.load %arg3[%c1, %c0_8, %c0_9] : memref<3x128x512xbf16, #tpu.memory_space<vmem>>, vector<1x128x512xbf16>
    %14 = vector.shape_cast %13 : vector<1x128x512xbf16> to vector<128x512xbf16>
    %cst_10 = arith.constant dense<0.000000e+00> : vector<224x512xf32>
    %15 = tpu.matmul %7, %14, %cst_10 {dimension_numbers = #tpu.dot_dimension_numbers<[1], [0], [0], [1], [0, 0, 1, 1], [], []>} : vector<224x128xbf16>, vector<128x512xbf16>, vector<224x512xf32> -> vector<224x512xf32>
    %16 = arith.addf %12, %15 : vector<224x512xf32>
    %c2 = arith.constant 2 : index
    %c0_11 = arith.constant 0 : index
    %c0_12 = arith.constant 0 : index
    %17 = vector.load %arg3[%c2, %c0_11, %c0_12] : memref<3x128x512xbf16, #tpu.memory_space<vmem>>, vector<1x128x512xbf16>
    %18 = vector.shape_cast %17 : vector<1x128x512xbf16> to vector<128x512xbf16>
    %cst_13 = arith.constant dense<0.000000e+00> : vector<224x512xf32>
    %19 = tpu.matmul %5, %18, %cst_13 {dimension_numbers = #tpu.dot_dimension_numbers<[1], [0], [0], [1], [0, 0, 1, 1], [], []>} : vector<224x128xbf16>, vector<128x512xbf16>, vector<224x512xf32> -> vector<224x512xf32>
    %20 = arith.addf %16, %19 : vector<224x512xf32>
    %c0_14 = arith.constant 0 : index
    %c0_15 = arith.constant 0 : index
    %c0_16 = arith.constant 0 : index
    %21 = vector.load %arg3[%c0_14, %c0_15, %c0_16] : memref<3x128x512xbf16, #tpu.memory_space<vmem>>, vector<1x128x512xbf16>
    %22 = vector.shape_cast %21 : vector<1x128x512xbf16> to vector<128x512xbf16>
    %cst_17 = arith.constant dense<0.000000e+00> : vector<224x512xf32>
    %23 = tpu.matmul %7, %22, %cst_17 {dimension_numbers = #tpu.dot_dimension_numbers<[1], [0], [0], [1], [0, 0, 1, 1], [], []>} : vector<224x128xbf16>, vector<128x512xbf16>, vector<224x512xf32> -> vector<224x512xf32>
    %c1_18 = arith.constant 1 : index
    %c0_19 = arith.constant 0 : index
    %c0_20 = arith.constant 0 : index
    %24 = vector.load %arg3[%c1_18, %c0_19, %c0_20] : memref<3x128x512xbf16, #tpu.memory_space<vmem>>, vector<1x128x512xbf16>
    %25 = vector.shape_cast %24 : vector<1x128x512xbf16> to vector<128x512xbf16>
    %cst_21 = arith.constant dense<0.000000e+00> : vector<224x512xf32>
    %26 = tpu.matmul %5, %25, %cst_21 {dimension_numbers = #tpu.dot_dimension_numbers<[1], [0], [0], [1], [0, 0, 1, 1], [], []>} : vector<224x128xbf16>, vector<128x512xbf16>, vector<224x512xf32> -> vector<224x512xf32>
    %27 = arith.addf %23, %26 : vector<224x512xf32>
    %c2_22 = arith.constant 2 : index
    %c0_23 = arith.constant 0 : index
    %c0_24 = arith.constant 0 : index
    %28 = vector.load %arg3[%c2_22, %c0_23, %c0_24] : memref<3x128x512xbf16, #tpu.memory_space<vmem>>, vector<1x128x512xbf16>
    %29 = vector.shape_cast %28 : vector<1x128x512xbf16> to vector<128x512xbf16>
    %cst_25 = arith.constant dense<0.000000e+00> : vector<224x512xf32>
    %30 = tpu.matmul %9, %29, %cst_25 {dimension_numbers = #tpu.dot_dimension_numbers<[1], [0], [0], [1], [0, 0, 1, 1], [], []>} : vector<224x128xbf16>, vector<128x512xbf16>, vector<224x512xf32> -> vector<224x512xf32>
    %31 = arith.addf %27, %30 : vector<224x512xf32>
    %32 = arith.maximumf %20, %31 : vector<224x512xf32>
    %cst_26 = arith.constant 0.000000e+00 : f32
    %33 = vector.broadcast %cst_26 : f32 to vector<224x512xf32>
    %34 = arith.maximumf %32, %33 : vector<224x512xf32>
    %35 = vector.extract_strided_slice %34 {offsets = [0, 0], sizes = [224, 256], strides = [1, 1]} : vector<224x512xf32> to vector<224x256xf32>
    %36 = vector.extract_strided_slice %34 {offsets = [0, 256], sizes = [224, 256], strides = [1, 1]} : vector<224x512xf32> to vector<224x256xf32>
    %37 = arith.maximumf %35, %36 : vector<224x256xf32>
    %38 = arith.truncf %37 : vector<224x256xf32> to vector<224x256xbf16>
    %cst_27 = arith.constant 0.000000e+00 : bf16
    %39 = vector.broadcast %cst_27 : bf16 to vector<16x256xbf16>
    %40 = vector.extract_strided_slice %38 {offsets = [0, 0], sizes = [208, 256], strides = [1, 1]} : vector<224x256xbf16> to vector<208x256xbf16>
    %41 = tpu.concatenate %39, %40 in 0 : vector<16x256xbf16>, vector<208x256xbf16> -> vector<224x256xbf16>
    %42 = vector.extract_strided_slice %38 {offsets = [16, 0], sizes = [208, 256], strides = [1, 1]} : vector<224x256xbf16> to vector<208x256xbf16>
    %43 = tpu.concatenate %42, %39 in 0 : vector<208x256xbf16>, vector<16x256xbf16> -> vector<224x256xbf16>
    %c0_28 = arith.constant 0 : index
    %c0_29 = arith.constant 0 : index
    %c0_30 = arith.constant 0 : index
    %44 = vector.load %arg4[%c0_28, %c0_29, %c0_30] : memref<3x256x256xbf16, #tpu.memory_space<vmem>>, vector<1x256x256xbf16>
    %45 = vector.shape_cast %44 : vector<1x256x256xbf16> to vector<256x256xbf16>
    %cst_31 = arith.constant dense<0.000000e+00> : vector<224x256xf32>
    %46 = tpu.matmul %41, %45, %cst_31 {dimension_numbers = #tpu.dot_dimension_numbers<[1], [0], [0], [1], [0, 0, 1, 1], [], []>} : vector<224x256xbf16>, vector<256x256xbf16>, vector<224x256xf32> -> vector<224x256xf32>
    %c1_32 = arith.constant 1 : index
    %c0_33 = arith.constant 0 : index
    %c0_34 = arith.constant 0 : index
    %47 = vector.load %arg4[%c1_32, %c0_33, %c0_34] : memref<3x256x256xbf16, #tpu.memory_space<vmem>>, vector<1x256x256xbf16>
    %48 = vector.shape_cast %47 : vector<1x256x256xbf16> to vector<256x256xbf16>
    %cst_35 = arith.constant dense<0.000000e+00> : vector<224x256xf32>
    %49 = tpu.matmul %38, %48, %cst_35 {dimension_numbers = #tpu.dot_dimension_numbers<[1], [0], [0], [1], [0, 0, 1, 1], [], []>} : vector<224x256xbf16>, vector<256x256xbf16>, vector<224x256xf32> -> vector<224x256xf32>
    %50 = arith.addf %46, %49 : vector<224x256xf32>
    %c2_36 = arith.constant 2 : index
    %c0_37 = arith.constant 0 : index
    %c0_38 = arith.constant 0 : index
    %51 = vector.load %arg4[%c2_36, %c0_37, %c0_38] : memref<3x256x256xbf16, #tpu.memory_space<vmem>>, vector<1x256x256xbf16>
    %52 = vector.shape_cast %51 : vector<1x256x256xbf16> to vector<256x256xbf16>
    %cst_39 = arith.constant dense<0.000000e+00> : vector<224x256xf32>
    %53 = tpu.matmul %43, %52, %cst_39 {dimension_numbers = #tpu.dot_dimension_numbers<[1], [0], [0], [1], [0, 0, 1, 1], [], []>} : vector<224x256xbf16>, vector<256x256xbf16>, vector<224x256xf32> -> vector<224x256xf32>
    %54 = arith.addf %50, %53 : vector<224x256xf32>
    %cst_40 = arith.constant 0.000000e+00 : f32
    %55 = vector.broadcast %cst_40 : f32 to vector<224x256xf32>
    %56 = arith.maximumf %54, %55 : vector<224x256xf32>
    %57 = arith.truncf %56 : vector<224x256xf32> to vector<224x256xbf16>
    %58 = vector.shape_cast %57 : vector<224x256xbf16> to vector<14x16x256xbf16>
    %c0_41 = arith.constant 0 : index
    %c0_42 = arith.constant 0 : index
    %c0_43 = arith.constant 0 : index
    %59 = vector.load %arg5[%c0_41, %c0_42, %c0_43] : memref<14x256x128xbf16, #tpu.memory_space<vmem>>, vector<14x256x128xbf16>
    %cst_44 = arith.constant dense<0.000000e+00> : vector<14x16x128xf32>
    %60 = tpu.matmul %58, %59, %cst_44 {dimension_numbers = #tpu.dot_dimension_numbers<[2], [1], [1], [2], [0, 0, 0, 1, 1, 2], [0], [0]>} : vector<14x16x256xbf16>, vector<14x256x128xbf16>, vector<14x16x128xf32> -> vector<14x16x128xf32>
    %cst_45 = arith.constant dense<0.000000e+00> : vector<16x128xf32>
    %61 = vector.multi_reduction <add>, %60, %cst_45 [0] : vector<14x16x128xf32> to vector<16x128xf32>
    %c0_46 = arith.constant 0 : index
    %c0_47 = arith.constant 0 : index
    %62 = vector.load %arg6[%c0_46, %c0_47] : memref<1x128xf32, #tpu.memory_space<vmem>>, vector<1x128xf32>
    %63 = vector.broadcast %62 : vector<1x128xf32> to vector<16x128xf32>
    %64 = arith.addf %61, %63 : vector<16x128xf32>
    %c0_48 = arith.constant 0 : index
    %c0_49 = arith.constant 0 : index
    %65 = vector.load %arg7[%c0_48, %c0_49] : memref<16x128xf32, #tpu.memory_space<vmem>>, vector<16x128xf32>
    tpu.vector_store %arg7[%c0_48, %c0_49], %64 {strides = array<i32>} : memref<16x128xf32, #tpu.memory_space<vmem>>, vector<16x128xf32>,
    return
  }
  func.func @transform_0(%arg0: i32) -> (i32, i32, i32) {
    %c0_i32 = arith.constant 0 : i32
    %c0_i32_0 = arith.constant 0 : i32
    %c0_i32_1 = arith.constant 0 : i32
    return %c0_i32, %arg0, %c0_i32_0 : i32, i32, i32
  }
  func.func @transform_1(%arg0: i32) -> (i32, i32, i32) {
    %c0_i32 = arith.constant 0 : i32
    %c0_i32_0 = arith.constant 0 : i32
    %c0_i32_1 = arith.constant 0 : i32
    return %c0_i32, %arg0, %c0_i32_0 : i32, i32, i32
  }
  func.func @transform_2(%arg0: i32) -> (i32, i32, i32) {
    %c0_i32 = arith.constant 0 : i32
    %c0_i32_0 = arith.constant 0 : i32
    %c0_i32_1 = arith.constant 0 : i32
    %c0_i32_2 = arith.constant 0 : i32
    return %c0_i32, %c0_i32_0, %c0_i32_1 : i32, i32, i32
  }
  func.func @transform_3(%arg0: i32) -> (i32, i32, i32) {
    %c0_i32 = arith.constant 0 : i32
    %c0_i32_0 = arith.constant 0 : i32
    %c0_i32_1 = arith.constant 0 : i32
    %c0_i32_2 = arith.constant 0 : i32
    return %c0_i32, %c0_i32_0, %c0_i32_1 : i32, i32, i32
  }
  func.func @transform_4(%arg0: i32) -> (i32, i32, i32) {
    %c0_i32 = arith.constant 0 : i32
    %c0_i32_0 = arith.constant 0 : i32
    %c0_i32_1 = arith.constant 0 : i32
    %c0_i32_2 = arith.constant 0 : i32
    return %c0_i32, %c0_i32_0, %c0_i32_1 : i32, i32, i32
  }
  func.func @transform_5(%arg0: i32) -> (i32, i32) {
    %c0_i32 = arith.constant 0 : i32
    %c0_i32_0 = arith.constant 0 : i32
    %c0_i32_1 = arith.constant 0 : i32
    return %c0_i32, %c0_i32_0 : i32, i32
  }
  func.func @transform_6(%arg0: i32) -> (i32, i32) {
    %c0_i32 = arith.constant 0 : i32
    %c0_i32_0 = arith.constant 0 : i32
    return %arg0, %c0_i32 : i32, i32
  }
}

</mosaic_0001>

<llo_original>
// kernel: custom_simple_cnn.1
$region0: #{custom_simple_cnn.1}
  #allocation0 [shape = 'u32[]', space=smem, size = 0x4, offset = 0x4, fixed_abs, tag = 'smem constant byte address 0x4 - core index']
  #allocation1 [shape = 'u32[144,128]{1,0:T(1,128)}', space=vmem, size = 0x12000, scoped, tag = 'internal scratch']
  %s0 = inlined_call_operand.vmem [shape: bf16[15,16,128], index: 0, kind: input, shape index: {}]
  %s1 = inlined_call_operand.vmem [shape: bf16[15,16,128], index: 1, kind: input, shape index: {}]
  %s2 = inlined_call_operand.vmem [shape: bf16[3,128,512], index: 2, kind: input, shape index: {}]
  %s3 = inlined_call_operand.vmem [shape: bf16[3,256,256], index: 3, kind: input, shape index: {}]
  %s4 = inlined_call_operand.vmem [shape: bf16[14,256,128], index: 4, kind: input, shape index: {}]
  %s5 = inlined_call_operand.vmem [shape: f32[1,128], index: 5, kind: input, shape index: {}]
  %s6 = inlined_call_operand.vmem [shape: f32[16,128], index: 6, kind: output, shape index: {}]
  %s7 = sld [smem:[#allocation0]]
  $region34: #{custom_simple_cnn.1} parent=0
    _
  %s9 = ssub.s32 1, %s7
  %s10 = scalar_select 0, %s9, %s7
  // Predicated region
  $region2: #{custom_simple_cnn.1} parent=0 // pred_check
    _
  $region3: #{custom_simple_cnn.1} parent=0 // pred_check_branch
    %12 = sbr.rel (0) target = $region5
  $region4: #{custom_simple_cnn.1} parent=0 // pred_region
    _
  $region5: #{custom_simple_cnn.1} parent=0 // pred_fallthru
    _
  // Predicated region
  $region6: #{custom_simple_cnn.1} parent=0 // pred_check
    _
  $region7: #{custom_simple_cnn.1} parent=0 // pred_check_branch
    %14 = sbr.rel (0) target = $region9
  $region8: #{custom_simple_cnn.1} parent=0 // pred_region
    _
  $region9: #{custom_simple_cnn.1} parent=0 // pred_fallthru
    _
  // Predicated region
  $region10: #{custom_simple_cnn.1} parent=0 // pred_check
    _
  $region11: #{custom_simple_cnn.1} parent=0 // pred_check_branch
    %16 = sbr.rel (0) target = $region13
  $region12: #{custom_simple_cnn.1} parent=0 // pred_region
    _
  $region13: #{custom_simple_cnn.1} parent=0 // pred_fallthru
    _
  // Predicated region
  $region14: #{custom_simple_cnn.1} parent=0 // pred_check
    _
  $region15: #{custom_simple_cnn.1} parent=0 // pred_check_branch
    %18 = sbr.rel (0) target = $region17
  $region16: #{custom_simple_cnn.1} parent=0 // pred_region
    _
  $region17: #{custom_simple_cnn.1} parent=0 // pred_fallthru
    _
  // Predicated region
  $region18: #{custom_simple_cnn.1} parent=0 // pred_check
    _
  $region19: #{custom_simple_cnn.1} parent=0 // pred_check_branch
    %20 = sbr.rel (0) target = $region21
  $region20: #{custom_simple_cnn.1} parent=0 // pred_region
    _
  $region21: #{custom_simple_cnn.1} parent=0 // pred_fallthru
    _
  // Predicated region
  $region22: #{custom_simple_cnn.1} parent=0 // pred_check
    _
  $region23: #{custom_simple_cnn.1} parent=0 // pred_check_branch
    %22 = sbr.rel (0) target = $region25
  $region24: #{custom_simple_cnn.1} parent=0 // pred_region
    _
  $region25: #{custom_simple_cnn.1} parent=0 // pred_fallthru
    _
  %v24 = vld [vmem:[%s0] sm:$0xf]
  %v25 = vld [vmem:[%s0 + $0x4] sm:$0xf]
  %v26 = vld [vmem:[%s0 + $0x8] sm:$0xf]
  %v27 = vld [vmem:[%s0 + $0xc] sm:$0xf]
  %v28 = vld [vmem:[%s0 + $0x10] sm:$0xf]
  %v29 = vld [vmem:[%s0 + $0x14] sm:$0xf]
  %v30 = vld [vmem:[%s0 + $0x18] sm:$0xf]
  %v31 = vld [vmem:[%s0 + $0x1c] sm:$0xf]
  %v32 = vld [vmem:[%s0 + $0x20] sm:$0xf]
  %v33 = vld [vmem:[%s0 + $0x24] sm:$0xf]
  %v34 = vld [vmem:[%s0 + $0x28] sm:$0xf]
  %v35 = vld [vmem:[%s0 + $0x2c] sm:$0xf]
  %v36 = vld [vmem:[%s0 + $0x30] sm:$0xf]
  %v37 = vld [vmem:[%s0 + $0x34] sm:$0xf]
  %v38 = vld [vmem:[%s0 + $0x38] sm:$0xf]
  %v39 = vld [vmem:[%s0 + $0x3c] sm:$0xf]
  %v40 = vld [vmem:[%s0 + $0x40] sm:$0xf]
  %v41 = vld [vmem:[%s0 + $0x44] sm:$0xf]
  %v42 = vld [vmem:[%s0 + $0x48] sm:$0xf]
  %v43 = vld [vmem:[%s0 + $0x4c] sm:$0xf]
  %v44 = vld [vmem:[%s0 + $0x50] sm:$0xf]
  %v45 = vld [vmem:[%s0 + $0x54] sm:$0xf]
  %v46 = vld [vmem:[%s0 + $0x58] sm:$0xf]
  %v47 = vld [vmem:[%s0 + $0x5c] sm:$0xf]
  %v48 = vld [vmem:[%s0 + $0x60] sm:$0xf]
  %v49 = vld [vmem:[%s0 + $0x64] sm:$0xf]
  %v50 = vld [vmem:[%s0 + $0x68] sm:$0xf]
  %v51 = vld [vmem:[%s0 + $0x6c] sm:$0xf]
  %v52 = vld [vmem:[%s0 + $0x70] sm:$0xf]
  %v53 = vld [vmem:[%s0 + $0x74] sm:$0xf]
  %v54 = vld [vmem:[%s1] sm:$0xf]
  %v55 = vld [vmem:[%s1 + $0x4] sm:$0xf]
  %v56 = vld [vmem:[%s1 + $0x8] sm:$0xf]
  %v57 = vld [vmem:[%s1 + $0xc] sm:$0xf]
  %v58 = vld [vmem:[%s1 + $0x10] sm:$0xf]
  %v59 = vld [vmem:[%s1 + $0x14] sm:$0xf]
  %v60 = vld [vmem:[%s1 + $0x18] sm:$0xf]
  %v61 = vld [vmem:[%s1 + $0x1c] sm:$0xf]
  %v62 = vld [vmem:[%s1 + $0x20] sm:$0xf]
  %v63 = vld [vmem:[%s1 + $0x24] sm:$0xf]
  %v64 = vld [vmem:[%s1 + $0x28] sm:$0xf]
  %v65 = vld [vmem:[%s1 + $0x2c] sm:$0xf]
  %v66 = vld [vmem:[%s1 + $0x30] sm:$0xf]
  %v67 = vld [vmem:[%s1 + $0x34] sm:$0xf]
  %v68 = vld [vmem:[%s1 + $0x38] sm:$0xf]
  %v69 = vld [vmem:[%s1 + $0x3c] sm:$0xf]
  %v70 = vld [vmem:[%s1 + $0x40] sm:$0xf]
  %v71 = vld [vmem:[%s1 + $0x44] sm:$0xf]
  %v72 = vld [vmem:[%s1 + $0x48] sm:$0xf]
  %v73 = vld [vmem:[%s1 + $0x4c] sm:$0xf]
  %v74 = vld [vmem:[%s1 + $0x50] sm:$0xf]
  %v75 = vld [vmem:[%s1 + $0x54] sm:$0xf]
  %v76 = vld [vmem:[%s1 + $0x58] sm:$0xf]
  %v77 = vld [vmem:[%s1 + $0x5c] sm:$0xf]
  %v78 = vld [vmem:[%s1 + $0x60] sm:$0xf]
  %v79 = vld [vmem:[%s1 + $0x64] sm:$0xf]
  %v80 = vld [vmem:[%s1 + $0x68] sm:$0xf]
  %v81 = vld [vmem:[%s1 + $0x6c] sm:$0xf]
  %v82 = vld [vmem:[%s1 + $0x70] sm:$0xf]
  %v83 = vld [vmem:[%s1 + $0x74] sm:$0xf]
  %v84 = vld [vmem:[%s2] sm:$0xff]
  %v85 = vld [vmem:[%s2 + $0x8] sm:$0xff]
  %v86 = vld [vmem:[%s2 + $0x10] sm:$0xff]
  %v87 = vld [vmem:[%s2 + $0x18] sm:$0xff]
  %v88 = vld [vmem:[%s2 + $0x20] sm:$0xff]
  %v89 = vld [vmem:[%s2 + $0x28] sm:$0xff]
  %v90 = vld [vmem:[%s2 + $0x30] sm:$0xff]
  %v91 = vld [vmem:[%s2 + $0x38] sm:$0xff]
  %v92 = vld [vmem:[%s2 + $0x40] sm:$0xff]
  %v93 = vld [vmem:[%s2 + $0x48] sm:$0xff]
  %v94 = vld [vmem:[%s2 + $0x50] sm:$0xff]
  %v95 = vld [vmem:[%s2 + $0x58] sm:$0xff]
  %v96 = vld [vmem:[%s2 + $0x60] sm:$0xff]
  %v97 = vld [vmem:[%s2 + $0x68] sm:$0xff]
  %v98 = vld [vmem:[%s2 + $0x70] sm:$0xff]
  %v99 = vld [vmem:[%s2 + $0x78] sm:$0xff]
  %v100 = vld [vmem:[%s2 + $0x80] sm:$0xff]
  %v101 = vld [vmem:[%s2 + $0x88] sm:$0xff]
  %v102 = vld [vmem:[%s2 + $0x90] sm:$0xff]
  %v103 = vld [vmem:[%s2 + $0x98] sm:$0xff]
  %v104 = vld [vmem:[%s2 + $0xa0] sm:$0xff]
  %v105 = vld [vmem:[%s2 + $0xa8] sm:$0xff]
  %v106 = vld [vmem:[%s2 + $0xb0] sm:$0xff]
  %v107 = vld [vmem:[%s2 + $0xb8] sm:$0xff]
  %v108 = vld [vmem:[%s2 + $0xc0] sm:$0xff]
  %v109 = vld [vmem:[%s2 + $0xc8] sm:$0xff]
  %v110 = vld [vmem:[%s2 + $0xd0] sm:$0xff]
  %v111 = vld [vmem:[%s2 + $0xd8] sm:$0xff]
  %v112 = vld [vmem:[%s2 + $0xe0] sm:$0xff]
  %v113 = vld [vmem:[%s2 + $0xe8] sm:$0xff]
  %v114 = vld [vmem:[%s2 + $0xf0] sm:$0xff]
  %v115 = vld [vmem:[%s2 + $0xf8] sm:$0xff]
  %s116 = scalar_lea.vmem %s2, 256
  %v117 = vld [vmem:[%s116] sm:$0xff]
  %v118 = vld [vmem:[%s116 + $0x8] sm:$0xff]
  %v119 = vld [vmem:[%s116 + $0x10] sm:$0xff]
  %v120 = vld [vmem:[%s116 + $0x18] sm:$0xff]
  %v121 = vld [vmem:[%s116 + $0x20] sm:$0xff]
  %v122 = vld [vmem:[%s116 + $0x28] sm:$0xff]
  %v123 = vld [vmem:[%s116 + $0x30] sm:$0xff]
  %v124 = vld [vmem:[%s116 + $0x38] sm:$0xff]
  %v125 = vld [vmem:[%s116 + $0x40] sm:$0xff]
  %v126 = vld [vmem:[%s116 + $0x48] sm:$0xff]
  %v127 = vld [vmem:[%s116 + $0x50] sm:$0xff]
  %v128 = vld [vmem:[%s116 + $0x58] sm:$0xff]
  %v129 = vld [vmem:[%s116 + $0x60] sm:$0xff]
  %v130 = vld [vmem:[%s116 + $0x68] sm:$0xff]
  %v131 = vld [vmem:[%s116 + $0x70] sm:$0xff]
  %v132 = vld [vmem:[%s116 + $0x78] sm:$0xff]
  %v133 = vld [vmem:[%s116 + $0x80] sm:$0xff]
  %v134 = vld [vmem:[%s116 + $0x88] sm:$0xff]
  %v135 = vld [vmem:[%s116 + $0x90] sm:$0xff]
  %v136 = vld [vmem:[%s116 + $0x98] sm:$0xff]
  %v137 = vld [vmem:[%s116 + $0xa0] sm:$0xff]
  %v138 = vld [vmem:[%s116 + $0xa8] sm:$0xff]
  %v139 = vld [vmem:[%s116 + $0xb0] sm:$0xff]
  %v140 = vld [vmem:[%s116 + $0xb8] sm:$0xff]
  %v141 = vld [vmem:[%s116 + $0xc0] sm:$0xff]
  %v142 = vld [vmem:[%s116 + $0xc8] sm:$0xff]
  %v143 = vld [vmem:[%s116 + $0xd0] sm:$0xff]
  %v144 = vld [vmem:[%s116 + $0xd8] sm:$0xff]
  %v145 = vld [vmem:[%s116 + $0xe0] sm:$0xff]
  %v146 = vld [vmem:[%s116 + $0xe8] sm:$0xff]
  %v147 = vld [vmem:[%s116 + $0xf0] sm:$0xff]
  %v148 = vld [vmem:[%s116 + $0xf8] sm:$0xff]
  %v177 = vunpack.c.l.b16 %v54
  %v178 = vunpack.c.l.b16 %v55
  %v179 = vunpack.c.l.b16 %v56
  %v180 = vunpack.c.l.b16 %v57
  %v181 = vunpack.c.l.b16 %v58
  %v182 = vunpack.c.l.b16 %v59
  %v183 = vunpack.c.l.b16 %v60
  %v184 = vunpack.c.l.b16 %v61
  %v185 = vunpack.c.l.b16 %v62
  %v186 = vunpack.c.l.b16 %v63
  %v187 = vunpack.c.l.b16 %v64
  %v188 = vunpack.c.l.b16 %v65
  %v189 = vunpack.c.l.b16 %v66
  %v190 = vunpack.c.l.b16 %v67
  %v191 = vunpack.c.l.b16 %v68
  %v192 = vunpack.c.l.b16 %v69
  %v193 = vunpack.c.l.b16 %v70
  %v194 = vunpack.c.l.b16 %v71
  %v195 = vunpack.c.l.b16 %v72
  %v196 = vunpack.c.l.b16 %v73
  %v197 = vunpack.c.l.b16 %v74
  %v198 = vunpack.c.l.b16 %v75
  %v199 = vunpack.c.l.b16 %v76
  %v200 = vunpack.c.l.b16 %v77
  %v201 = vunpack.c.l.b16 %v78
  %v202 = vunpack.c.l.b16 %v79
  %v203 = vunpack.c.l.b16 %v80
  %v204 = vunpack.c.l.b16 %v81
  %v205 = vpack.c.b16 %v178, %v177
  %v206 = vpack.c.b16 %v180, %v179
  %v207 = vpack.c.b16 %v182, %v181
  %v208 = vpack.c.b16 %v184, %v183
  %v209 = vpack.c.b16 %v186, %v185
  %v210 = vpack.c.b16 %v188, %v187
  %v211 = vpack.c.b16 %v190, %v189
  %v212 = vpack.c.b16 %v192, %v191
  %v213 = vpack.c.b16 %v194, %v193
  %v214 = vpack.c.b16 %v196, %v195
  %v215 = vpack.c.b16 %v198, %v197
  %v216 = vpack.c.b16 %v200, %v199
  %v217 = vpack.c.b16 %v202, %v201
  %v218 = vpack.c.b16 %v204, %v203
  %v265 = vunpack.c.l.b16 %v117
  %v266 = vunpack.c.h.b16 %v117
  %v267 = vunpack.c.l.b16 %v118
  %v268 = vunpack.c.h.b16 %v118
  %v269 = vunpack.c.l.b16 %v119
  %v270 = vunpack.c.h.b16 %v119
  %v271 = vunpack.c.l.b16 %v120
  %v272 = vunpack.c.h.b16 %v120
  %v273 = vunpack.c.l.b16 %v121
  %v274 = vunpack.c.h.b16 %v121
  %v275 = vunpack.c.l.b16 %v122
  %v276 = vunpack.c.h.b16 %v122
  %v277 = vunpack.c.l.b16 %v123
  %v278 = vunpack.c.h.b16 %v123
  %v279 = vunpack.c.l.b16 %v124
  %v280 = vunpack.c.h.b16 %v124
  %v281 = vunpack.c.l.b16 %v125
  %v282 = vunpack.c.h.b16 %v125
  %v283 = vunpack.c.l.b16 %v126
  %v284 = vunpack.c.h.b16 %v126
  %v285 = vunpack.c.l.b16 %v127
  %v286 = vunpack.c.h.b16 %v127
  %v287 = vunpack.c.l.b16 %v128
  %v288 = vunpack.c.h.b16 %v128
  %v289 = vunpack.c.l.b16 %v129
  %v290 = vunpack.c.h.b16 %v129
  %v291 = vunpack.c.l.b16 %v130
  %v292 = vunpack.c.h.b16 %v130
  %v293 = vunpack.c.l.b16 %v131
  %v294 = vunpack.c.h.b16 %v131
  %v295 = vunpack.c.l.b16 %v132
  %v296 = vunpack.c.h.b16 %v132
  %v297 = vunpack.c.l.b16 %v133
  %v298 = vunpack.c.h.b16 %v133
  %v299 = vunpack.c.l.b16 %v134
  %v300 = vunpack.c.h.b16 %v134
  %v301 = vunpack.c.l.b16 %v135
  %v302 = vunpack.c.h.b16 %v135
  %v303 = vunpack.c.l.b16 %v136
  %v304 = vunpack.c.h.b16 %v136
  %v305 = vunpack.c.l.b16 %v137
  %v306 = vunpack.c.h.b16 %v137
  %v307 = vunpack.c.l.b16 %v138
  %v308 = vunpack.c.h.b16 %v138
  %v309 = vunpack.c.l.b16 %v139
  %v310 = vunpack.c.h.b16 %v139
  %v311 = vunpack.c.l.b16 %v140
  %v312 = vunpack.c.h.b16 %v140
  %v313 = vunpack.c.l.b16 %v141
  %v314 = vunpack.c.h.b16 %v141
  %v315 = vunpack.c.l.b16 %v142
  %v316 = vunpack.c.h.b16 %v142
  %v317 = vunpack.c.l.b16 %v143
  %v318 = vunpack.c.h.b16 %v143
  %v319 = vunpack.c.l.b16 %v144
  %v320 = vunpack.c.h.b16 %v144
  %v321 = vunpack.c.l.b16 %v145
  %v322 = vunpack.c.h.b16 %v145
  %v323 = vunpack.c.l.b16 %v146
  %v324 = vunpack.c.h.b16 %v146
  %v325 = vunpack.c.l.b16 %v147
  %v326 = vunpack.c.h.b16 %v147
  %v327 = vunpack.c.l.b16 %v148
  %v328 = vunpack.c.h.b16 %v148
  %v329 = vpack.c.b16 %v269, %v265
  %v330 = vpack.c.b16 %v270, %v266
  %v331 = vpack.c.b16 %v271, %v267
  %v332 = vpack.c.b16 %v272, %v268
  %v333 = vpack.c.b16 %v277, %v273
  %v334 = vpack.c.b16 %v278, %v274
  %v335 = vpack.c.b16 %v279, %v275
  %v336 = vpack.c.b16 %v280, %v276
  %v337 = vpack.c.b16 %v285, %v281
  %v338 = vpack.c.b16 %v286, %v282
  %v339 = vpack.c.b16 %v287, %v283
  %v340 = vpack.c.b16 %v288, %v284
  %v341 = vpack.c.b16 %v293, %v289
  %v342 = vpack.c.b16 %v294, %v290
  %v343 = vpack.c.b16 %v295, %v291
  %v344 = vpack.c.b16 %v296, %v292
  %v345 = vpack.c.b16 %v301, %v297
  %v346 = vpack.c.b16 %v302, %v298
  %v347 = vpack.c.b16 %v303, %v299
  %v348 = vpack.c.b16 %v304, %v300
  %v349 = vpack.c.b16 %v309, %v305
  %v350 = vpack.c.b16 %v310, %v306
  %v351 = vpack.c.b16 %v311, %v307
  %v352 = vpack.c.b16 %v312, %v308
  %v353 = vpack.c.b16 %v317, %v313
  %v354 = vpack.c.b16 %v318, %v314
  %v355 = vpack.c.b16 %v319, %v315
  %v356 = vpack.c.b16 %v320, %v316
  %v357 = vpack.c.b16 %v325, %v321
  %v358 = vpack.c.b16 %v326, %v322
  %v359 = vpack.c.b16 %v327, %v323
  %v360 = vpack.c.b16 %v328, %v324
  %393 = vmatprep.subr.bf16.mxu0 %v358
  %394 = vmatpush1.bf16.msra.mxu0 %v357
  %395 = vmatprep.subr.bf16.mxu0 %v354
  %396 = vmatpush1.bf16.msra.mxu0 %v353
  %397 = vmatprep.subr.bf16.mxu0 %v350
  %398 = vmatpush1.bf16.msra.mxu0 %v349
  %399 = vmatprep.subr.bf16.mxu0 %v346
  %400 = vmatpush1.bf16.msra.mxu0 %v345
  %401 = vmatprep.subr.bf16.mxu0 %v342
  %402 = vmatpush1.bf16.msra.mxu0 %v341
  %403 = vmatprep.subr.bf16.mxu0 %v338
  %404 = vmatpush1.bf16.msra.mxu0 %v337
  %405 = vmatprep.subr.bf16.mxu0 %v334
  %406 = vmatpush1.bf16.msra.mxu0 %v333
  %407 = vmatprep.subr.bf16.mxu0 %v330
  %408 = vmatpush1.bf16.msra.mxu0 %v329
  %409 = vmatprep.subr.bf16.mxu0 0
  %410 = vmatpush2.bf16.msra.mxu0 0
  %411 = vmatprep.subr.bf16.mxu0 0
  %412 = vmatpush2.bf16.msra.mxu0 0
  %413 = vmatprep.subr.bf16.mxu0 0
  %414 = vmatpush2.bf16.msra.mxu0 0
  %415 = vmatprep.subr.bf16.mxu0 0
  %416 = vmatpush2.bf16.msra.mxu0 0
  %417 = vmatprep.subr.bf16.mxu0 0
  %418 = vmatpush2.bf16.msra.mxu0 0
  %419 = vmatprep.subr.bf16.mxu0 0
  %420 = vmatpush2.bf16.msra.mxu0 0
  %421 = vmatprep.subr.bf16.mxu0 0
  %422 = vmatpush2.bf16.msra.mxu0 0
  %423 = vmatprep.subr.bf16.mxu0 0
  %424 = vmatpush2.bf16.msra.mxu0 0
  %425 = vmatprep.mubr.bf16.mxu0 0
  %426 = vmatmul.mubr.bf16.gmra.mxu0 %v205
  %v427 = vpop.f32.mrf.mxu0
  %v428 = vadd.f32 0.0, %v427
  %v429 = vpop.f32.mrf.mxu0
  %v430 = vadd.f32 0.0, %v429
  %v431 = vpop.f32.mrf.mxu0
  %v432 = vadd.f32 0.0, %v431
  %v433 = vpop.f32.mrf.mxu0
  %v434 = vadd.f32 0.0, %v433
  %435 = vmatprep.mubr.bf16.mxu0 0
  %436 = vmatmul.mubr.bf16.gmra.mxu0 %v206
  %v437 = vpop.f32.mrf.mxu0
  %v438 = vadd.f32 0.0, %v437
  %v439 = vpop.f32.mrf.mxu0
  %v440 = vadd.f32 0.0, %v439
  %v441 = vpop.f32.mrf.mxu0
  %v442 = vadd.f32 0.0, %v441
  %v443 = vpop.f32.mrf.mxu0
  %v444 = vadd.f32 0.0, %v443
  %445 = vmatprep.mubr.bf16.mxu0 0
  %446 = vmatmul.mubr.bf16.gmra.mxu0 %v207
  %v447 = vpop.f32.mrf.mxu0
  %v448 = vadd.f32 0.0, %v447
  %v449 = vpop.f32.mrf.mxu0
  %v450 = vadd.f32 0.0, %v449
  %v451 = vpop.f32.mrf.mxu0
  %v452 = vadd.f32 0.0, %v451
  %v453 = vpop.f32.mrf.mxu0
  %v454 = vadd.f32 0.0, %v453
  %455 = vmatprep.mubr.bf16.mxu0 0
  %456 = vmatmul.mubr.bf16.gmra.mxu0 %v208
  %v457 = vpop.f32.mrf.mxu0
  %v458 = vadd.f32 0.0, %v457
  %v459 = vpop.f32.mrf.mxu0
  %v460 = vadd.f32 0.0, %v459
  %v461 = vpop.f32.mrf.mxu0
  %v462 = vadd.f32 0.0, %v461
  %v463 = vpop.f32.mrf.mxu0
  %v464 = vadd.f32 0.0, %v463
  %465 = vmatprep.mubr.bf16.mxu0 0
  %466 = vmatmul.mubr.bf16.gmra.mxu0 %v209
  %v467 = vpop.f32.mrf.mxu0
  %v468 = vadd.f32 0.0, %v467
  %v469 = vpop.f32.mrf.mxu0
  %v470 = vadd.f32 0.0, %v469
  %v471 = vpop.f32.mrf.mxu0
  %v472 = vadd.f32 0.0, %v471
  %v473 = vpop.f32.mrf.mxu0
  %v474 = vadd.f32 0.0, %v473
  %475 = vmatprep.mubr.bf16.mxu0 0
  %476 = vmatmul.mubr.bf16.gmra.mxu0 %v210
  %v477 = vpop.f32.mrf.mxu0
  %v478 = vadd.f32 0.0, %v477
  %v479 = vpop.f32.mrf.mxu0
  %v480 = vadd.f32 0.0, %v479
  %v481 = vpop.f32.mrf.mxu0
  %v482 = vadd.f32 0.0, %v481
  %v483 = vpop.f32.mrf.mxu0
  %v484 = vadd.f32 0.0, %v483
  %485 = vmatprep.mubr.bf16.mxu0 0
  %486 = vmatmul.mubr.bf16.gmra.mxu0 %v211
  %v487 = vpop.f32.mrf.mxu0
  %v488 = vadd.f32 0.0, %v487
  %v489 = vpop.f32.mrf.mxu0
  %v490 = vadd.f32 0.0, %v489
  %v491 = vpop.f32.mrf.mxu0
  %v492 = vadd.f32 0.0, %v491
  %v493 = vpop.f32.mrf.mxu0
  %v494 = vadd.f32 0.0, %v493
  %495 = vmatprep.mubr.bf16.mxu0 0
  %496 = vmatmul.mubr.bf16.gmra.mxu0 %v212
  %v497 = vpop.f32.mrf.mxu0
  %v498 = vadd.f32 0.0, %v497
  %v499 = vpop.f32.mrf.mxu0
  %v500 = vadd.f32 0.0, %v499
  %v501 = vpop.f32.mrf.mxu0
  %v502 = vadd.f32 0.0, %v501
  %v503 = vpop.f32.mrf.mxu0
  %v504 = vadd.f32 0.0, %v503
  %505 = vmatprep.mubr.bf16.mxu0 0
  %506 = vmatmul.mubr.bf16.gmra.mxu0 %v213
  %v507 = vpop.f32.mrf.mxu0
  %v508 = vadd.f32 0.0, %v507
  %v509 = vpop.f32.mrf.mxu0
  %v510 = vadd.f32 0.0, %v509
  %v511 = vpop.f32.mrf.mxu0
  %v512 = vadd.f32 0.0, %v511
  %v513 = vpop.f32.mrf.mxu0
  %v514 = vadd.f32 0.0, %v513
  %515 = vmatprep.mubr.bf16.mxu0 0
  %516 = vmatmul.mubr.bf16.gmra.mxu0 %v214
  %v517 = vpop.f32.mrf.mxu0
  %v518 = vadd.f32 0.0, %v517
  %v519 = vpop.f32.mrf.mxu0
  %v520 = vadd.f32 0.0, %v519
  %v521 = vpop.f32.mrf.mxu0
  %v522 = vadd.f32 0.0, %v521
  %v523 = vpop.f32.mrf.mxu0
  %v524 = vadd.f32 0.0, %v523
  %525 = vmatprep.mubr.bf16.mxu0 0
  %526 = vmatmul.mubr.bf16.gmra.mxu0 %v215
  %v527 = vpop.f32.mrf.mxu0
  %v528 = vadd.f32 0.0, %v527
  %v529 = vpop.f32.mrf.mxu0
  %v530 = vadd.f32 0.0, %v529
  %v531 = vpop.f32.mrf.mxu0
  %v532 = vadd.f32 0.0, %v531
  %v533 = vpop.f32.mrf.mxu0
  %v534 = vadd.f32 0.0, %v533
  %535 = vmatprep.mubr.bf16.mxu0 0
  %536 = vmatmul.mubr.bf16.gmra.mxu0 %v216
  %v537 = vpop.f32.mrf.mxu0
  %v538 = vadd.f32 0.0, %v537
  %v539 = vpop.f32.mrf.mxu0
  %v540 = vadd.f32 0.0, %v539
  %v541 = vpop.f32.mrf.mxu0
  %v542 = vadd.f32 0.0, %v541
  %v543 = vpop.f32.mrf.mxu0
  %v544 = vadd.f32 0.0, %v543
  %545 = vmatprep.mubr.bf16.mxu0 0
  %546 = vmatmul.mubr.bf16.gmra.mxu0 %v217
  %v547 = vpop.f32.mrf.mxu0
  %v548 = vadd.f32 0.0, %v547
  %v549 = vpop.f32.mrf.mxu0
  %v550 = vadd.f32 0.0, %v549
  %v551 = vpop.f32.mrf.mxu0
  %v552 = vadd.f32 0.0, %v551
  %v553 = vpop.f32.mrf.mxu0
  %v554 = vadd.f32 0.0, %v553
  %555 = vmatprep.mubr.bf16.mxu0 0
  %556 = vmatmul.mubr.bf16.gmra.mxu0 %v218
  %v557 = vpop.f32.mrf.mxu0
  %v558 = vadd.f32 0.0, %v557
  %v559 = vpop.f32.mrf.mxu0
  %v560 = vadd.f32 0.0, %v559
  %v561 = vpop.f32.mrf.mxu0
  %v562 = vadd.f32 0.0, %v561
  %v563 = vpop.f32.mrf.mxu0
  %v564 = vadd.f32 0.0, %v563
  %565 = vdwg.mxu0
  %566 = vmatprep.subr.bf16.mxu0 %v360
  %567 = vmatpush1.bf16.msra.mxu0 %v359
  %568 = vmatprep.subr.bf16.mxu0 %v356
  %569 = vmatpush1.bf16.msra.mxu0 %v355
  %570 = vmatprep.subr.bf16.mxu0 %v352
  %571 = vmatpush1.bf16.msra.mxu0 %v351
  %572 = vmatprep.subr.bf16.mxu0 %v348
  %573 = vmatpush1.bf16.msra.mxu0 %v347
  %574 = vmatprep.subr.bf16.mxu0 %v344
  %575 = vmatpush1.bf16.msra.mxu0 %v343
  %576 = vmatprep.subr.bf16.mxu0 %v340
  %577 = vmatpush1.bf16.msra.mxu0 %v339
  %578 = vmatprep.subr.bf16.mxu0 %v336
  %579 = vmatpush1.bf16.msra.mxu0 %v335
  %580 = vmatprep.subr.bf16.mxu0 %v332
  %581 = vmatpush1.bf16.msra.mxu0 %v331
  %582 = vmatprep.subr.bf16.mxu0 0
  %583 = vmatpush2.bf16.msra.mxu0 0
  %584 = vmatprep.subr.bf16.mxu0 0
  %585 = vmatpush2.bf16.msra.mxu0 0
  %586 = vmatprep.subr.bf16.mxu0 0
  %587 = vmatpush2.bf16.msra.mxu0 0
  %588 = vmatprep.subr.bf16.mxu0 0
  %589 = vmatpush2.bf16.msra.mxu0 0
  %590 = vmatprep.subr.bf16.mxu0 0
  %591 = vmatpush2.bf16.msra.mxu0 0
  %592 = vmatprep.subr.bf16.mxu0 0
  %593 = vmatpush2.bf16.msra.mxu0 0
  %594 = vmatprep.subr.bf16.mxu0 0
  %595 = vmatpush2.bf16.msra.mxu0 0
  %596 = vmatprep.subr.bf16.mxu0 0
  %597 = vmatpush2.bf16.msra.mxu0 0
  %598 = vmatprep.mubr.bf16.mxu0 0
  %599 = vmatmul.mubr.bf16.gmra.mxu0 %v205
  %v600 = vpop.f32.mrf.mxu0
  %v601 = vadd.f32 0.0, %v600
  %v602 = vpop.f32.mrf.mxu0
  %v603 = vadd.f32 0.0, %v602
  %v604 = vpop.f32.mrf.mxu0
  %v605 = vadd.f32 0.0, %v604
  %v606 = vpop.f32.mrf.mxu0
  %v607 = vadd.f32 0.0, %v606
  %608 = vmatprep.mubr.bf16.mxu0 0
  %609 = vmatmul.mubr.bf16.gmra.mxu0 %v206
  %v610 = vpop.f32.mrf.mxu0
  %v611 = vadd.f32 0.0, %v610
  %v612 = vpop.f32.mrf.mxu0
  %v613 = vadd.f32 0.0, %v612
  %v614 = vpop.f32.mrf.mxu0
  %v615 = vadd.f32 0.0, %v614
  %v616 = vpop.f32.mrf.mxu0
  %v617 = vadd.f32 0.0, %v616
  %618 = vmatprep.mubr.bf16.mxu0 0
  %619 = vmatmul.mubr.bf16.gmra.mxu0 %v207
  %v620 = vpop.f32.mrf.mxu0
  %v621 = vadd.f32 0.0, %v620
  %v622 = vpop.f32.mrf.mxu0
  %v623 = vadd.f32 0.0, %v622
  %v624 = vpop.f32.mrf.mxu0
  %v625 = vadd.f32 0.0, %v624
  %v626 = vpop.f32.mrf.mxu0
  %v627 = vadd.f32 0.0, %v626
  %628 = vmatprep.mubr.bf16.mxu0 0
  %629 = vmatmul.mubr.bf16.gmra.mxu0 %v208
  %v630 = vpop.f32.mrf.mxu0
  %v631 = vadd.f32 0.0, %v630
  %v632 = vpop.f32.mrf.mxu0
  %v633 = vadd.f32 0.0, %v632
  %v634 = vpop.f32.mrf.mxu0
  %v635 = vadd.f32 0.0, %v634
  %v636 = vpop.f32.mrf.mxu0
  %v637 = vadd.f32 0.0, %v636
  %638 = vmatprep.mubr.bf16.mxu0 0
  %639 = vmatmul.mubr.bf16.gmra.mxu0 %v209
  %v640 = vpop.f32.mrf.mxu0
  %v641 = vadd.f32 0.0, %v640
  %v642 = vpop.f32.mrf.mxu0
  %v643 = vadd.f32 0.0, %v642
  %v644 = vpop.f32.mrf.mxu0
  %v645 = vadd.f32 0.0, %v644
  %v646 = vpop.f32.mrf.mxu0
  %v647 = vadd.f32 0.0, %v646
  %648 = vmatprep.mubr.bf16.mxu0 0
  %649 = vmatmul.mubr.bf16.gmra.mxu0 %v210
  %v650 = vpop.f32.mrf.mxu0
  %v651 = vadd.f32 0.0, %v650
  %v652 = vpop.f32.mrf.mxu0
  %v653 = vadd.f32 0.0, %v652
  %v654 = vpop.f32.mrf.mxu0
  %v655 = vadd.f32 0.0, %v654
  %v656 = vpop.f32.mrf.mxu0
  %v657 = vadd.f32 0.0, %v656
  %658 = vmatprep.mubr.bf16.mxu0 0
  %659 = vmatmul.mubr.bf16.gmra.mxu0 %v211
  %v660 = vpop.f32.mrf.mxu0
  %v661 = vadd.f32 0.0, %v660
  %v662 = vpop.f32.mrf.mxu0
  %v663 = vadd.f32 0.0, %v662
  %v664 = vpop.f32.mrf.mxu0
  %v665 = vadd.f32 0.0, %v664
  %v666 = vpop.f32.mrf.mxu0
  %v667 = vadd.f32 0.0, %v666
  %668 = vmatprep.mubr.bf16.mxu0 0
  %669 = vmatmul.mubr.bf16.gmra.mxu0 %v212
  %v670 = vpop.f32.mrf.mxu0
  %v671 = vadd.f32 0.0, %v670
  %v672 = vpop.f32.mrf.mxu0
  %v673 = vadd.f32 0.0, %v672
  %v674 = vpop.f32.mrf.mxu0
  %v675 = vadd.f32 0.0, %v674
  %v676 = vpop.f32.mrf.mxu0
  %v677 = vadd.f32 0.0, %v676
  %678 = vmatprep.mubr.bf16.mxu0 0
  %679 = vmatmul.mubr.bf16.gmra.mxu0 %v213
  %v680 = vpop.f32.mrf.mxu0
  %v681 = vadd.f32 0.0, %v680
  %v682 = vpop.f32.mrf.mxu0
  %v683 = vadd.f32 0.0, %v682
  %v684 = vpop.f32.mrf.mxu0
  %v685 = vadd.f32 0.0, %v684
  %v686 = vpop.f32.mrf.mxu0
  %v687 = vadd.f32 0.0, %v686
  %688 = vmatprep.mubr.bf16.mxu0 0
  %689 = vmatmul.mubr.bf16.gmra.mxu0 %v214
  %v690 = vpop.f32.mrf.mxu0
  %v691 = vadd.f32 0.0, %v690
  %v692 = vpop.f32.mrf.mxu0
  %v693 = vadd.f32 0.0, %v692
  %v694 = vpop.f32.mrf.mxu0
  %v695 = vadd.f32 0.0, %v694
  %v696 = vpop.f32.mrf.mxu0
  %v697 = vadd.f32 0.0, %v696
  %698 = vmatprep.mubr.bf16.mxu0 0
  %699 = vmatmul.mubr.bf16.gmra.mxu0 %v215
  %v700 = vpop.f32.mrf.mxu0
  %v701 = vadd.f32 0.0, %v700
  %v702 = vpop.f32.mrf.mxu0
  %v703 = vadd.f32 0.0, %v702
  %v704 = vpop.f32.mrf.mxu0
  %v705 = vadd.f32 0.0, %v704
  %v706 = vpop.f32.mrf.mxu0
  %v707 = vadd.f32 0.0, %v706
  %708 = vmatprep.mubr.bf16.mxu0 0
  %709 = vmatmul.mubr.bf16.gmra.mxu0 %v216
  %v710 = vpop.f32.mrf.mxu0
  %v711 = vadd.f32 0.0, %v710
  %v712 = vpop.f32.mrf.mxu0
  %v713 = vadd.f32 0.0, %v712
  %v714 = vpop.f32.mrf.mxu0
  %v715 = vadd.f32 0.0, %v714
  %v716 = vpop.f32.mrf.mxu0
  %v717 = vadd.f32 0.0, %v716
  %718 = vmatprep.mubr.bf16.mxu0 0
  %719 = vmatmul.mubr.bf16.gmra.mxu0 %v217
  %v720 = vpop.f32.mrf.mxu0
  %v721 = vadd.f32 0.0, %v720
  %v722 = vpop.f32.mrf.mxu0
  %v723 = vadd.f32 0.0, %v722
  %v724 = vpop.f32.mrf.mxu0
  %v725 = vadd.f32 0.0, %v724
  %v726 = vpop.f32.mrf.mxu0
  %v727 = vadd.f32 0.0, %v726
  %728 = vmatprep.mubr.bf16.mxu0 0
  %729 = vmatmul.mubr.bf16.gmra.mxu0 %v218
  %v730 = vpop.f32.mrf.mxu0
  %v731 = vadd.f32 0.0, %v730
  %v732 = vpop.f32.mrf.mxu0
  %v733 = vadd.f32 0.0, %v732
  %v734 = vpop.f32.mrf.mxu0
  %v735 = vadd.f32 0.0, %v734
  %v736 = vpop.f32.mrf.mxu0
  %v737 = vadd.f32 0.0, %v736
  %738 = vdwg.mxu0
  %v767 = vunpack.c.l.b16 %v24
  %v768 = vunpack.c.l.b16 %v25
  %v769 = vunpack.c.l.b16 %v26
  %v770 = vunpack.c.l.b16 %v27
  %v771 = vunpack.c.l.b16 %v28
  %v772 = vunpack.c.l.b16 %v29
  %v773 = vunpack.c.l.b16 %v30
  %v774 = vunpack.c.l.b16 %v31
  %v775 = vunpack.c.l.b16 %v32
  %v776 = vunpack.c.l.b16 %v33
  %v777 = vunpack.c.l.b16 %v34
  %v778 = vunpack.c.l.b16 %v35
  %v779 = vunpack.c.l.b16 %v36
  %v780 = vunpack.c.l.b16 %v37
  %v781 = vunpack.c.l.b16 %v38
  %v782 = vunpack.c.l.b16 %v39
  %v783 = vunpack.c.l.b16 %v40
  %v784 = vunpack.c.l.b16 %v41
  %v785 = vunpack.c.l.b16 %v42
  %v786 = vunpack.c.l.b16 %v43
  %v787 = vunpack.c.l.b16 %v44
  %v788 = vunpack.c.l.b16 %v45
  %v789 = vunpack.c.l.b16 %v46
  %v790 = vunpack.c.l.b16 %v47
  %v791 = vunpack.c.l.b16 %v48
  %v792 = vunpack.c.l.b16 %v49
  %v793 = vunpack.c.l.b16 %v50
  %v794 = vunpack.c.l.b16 %v51
  %v795 = vpack.c.b16 %v768, %v767
  %v796 = vpack.c.b16 %v770, %v769
  %v797 = vpack.c.b16 %v772, %v771
  %v798 = vpack.c.b16 %v774, %v773
  %v799 = vpack.c.b16 %v776, %v775
  %v800 = vpack.c.b16 %v778, %v777
  %v801 = vpack.c.b16 %v780, %v779
  %v802 = vpack.c.b16 %v782, %v781
  %v803 = vpack.c.b16 %v784, %v783
  %v804 = vpack.c.b16 %v786, %v785
  %v805 = vpack.c.b16 %v788, %v787
  %v806 = vpack.c.b16 %v790, %v789
  %v807 = vpack.c.b16 %v792, %v791
  %v808 = vpack.c.b16 %v794, %v793
  %v855 = vunpack.c.l.b16 %v84
  %v856 = vunpack.c.h.b16 %v84
  %v857 = vunpack.c.l.b16 %v85
  %v858 = vunpack.c.h.b16 %v85
  %v859 = vunpack.c.l.b16 %v86
  %v860 = vunpack.c.h.b16 %v86
  %v861 = vunpack.c.l.b16 %v87
  %v862 = vunpack.c.h.b16 %v87
  %v863 = vunpack.c.l.b16 %v88
  %v864 = vunpack.c.h.b16 %v88
  %v865 = vunpack.c.l.b16 %v89
  %v866 = vunpack.c.h.b16 %v89
  %v867 = vunpack.c.l.b16 %v90
  %v868 = vunpack.c.h.b16 %v90
  %v869 = vunpack.c.l.b16 %v91
  %v870 = vunpack.c.h.b16 %v91
  %v871 = vunpack.c.l.b16 %v92
  %v872 = vunpack.c.h.b16 %v92
  %v873 = vunpack.c.l.b16 %v93
  %v874 = vunpack.c.h.b16 %v93
  %v875 = vunpack.c.l.b16 %v94
  %v876 = vunpack.c.h.b16 %v94
  %v877 = vunpack.c.l.b16 %v95
  %v878 = vunpack.c.h.b16 %v95
  %v879 = vunpack.c.l.b16 %v96
  %v880 = vunpack.c.h.b16 %v96
  %v881 = vunpack.c.l.b16 %v97
  %v882 = vunpack.c.h.b16 %v97
  %v883 = vunpack.c.l.b16 %v98
  %v884 = vunpack.c.h.b16 %v98
  %v885 = vunpack.c.l.b16 %v99
  %v886 = vunpack.c.h.b16 %v99
  %v887 = vunpack.c.l.b16 %v100
  %v888 = vunpack.c.h.b16 %v100
  %v889 = vunpack.c.l.b16 %v101
  %v890 = vunpack.c.h.b16 %v101
  %v891 = vunpack.c.l.b16 %v102
  %v892 = vunpack.c.h.b16 %v102
  %v893 = vunpack.c.l.b16 %v103
  %v894 = vunpack.c.h.b16 %v103
  %v895 = vunpack.c.l.b16 %v104
  %v896 = vunpack.c.h.b16 %v104
  %v897 = vunpack.c.l.b16 %v105
  %v898 = vunpack.c.h.b16 %v105
  %v899 = vunpack.c.l.b16 %v106
  %v900 = vunpack.c.h.b16 %v106
  %v901 = vunpack.c.l.b16 %v107
  %v902 = vunpack.c.h.b16 %v107
  %v903 = vunpack.c.l.b16 %v108
  %v904 = vunpack.c.h.b16 %v108
  %v905 = vunpack.c.l.b16 %v109
  %v906 = vunpack.c.h.b16 %v109
  %v907 = vunpack.c.l.b16 %v110
  %v908 = vunpack.c.h.b16 %v110
  %v909 = vunpack.c.l.b16 %v111
  %v910 = vunpack.c.h.b16 %v111
  %v911 = vunpack.c.l.b16 %v112
  %v912 = vunpack.c.h.b16 %v112
  %v913 = vunpack.c.l.b16 %v113
  %v914 = vunpack.c.h.b16 %v113
  %v915 = vunpack.c.l.b16 %v114
  %v916 = vunpack.c.h.b16 %v114
  %v917 = vunpack.c.l.b16 %v115
  %v918 = vunpack.c.h.b16 %v115
  %v919 = vpack.c.b16 %v859, %v855
  %v920 = vpack.c.b16 %v860, %v856
  %v921 = vpack.c.b16 %v861, %v857
  %v922 = vpack.c.b16 %v862, %v858
  %v923 = vpack.c.b16 %v867, %v863
  %v924 = vpack.c.b16 %v868, %v864
  %v925 = vpack.c.b16 %v869, %v865
  %v926 = vpack.c.b16 %v870, %v866
  %v927 = vpack.c.b16 %v875, %v871
  %v928 = vpack.c.b16 %v876, %v872
  %v929 = vpack.c.b16 %v877, %v873
  %v930 = vpack.c.b16 %v878, %v874
  %v931 = vpack.c.b16 %v883, %v879
  %v932 = vpack.c.b16 %v884, %v880
  %v933 = vpack.c.b16 %v885, %v881
  %v934 = vpack.c.b16 %v886, %v882
  %v935 = vpack.c.b16 %v891, %v887
  %v936 = vpack.c.b16 %v892, %v888
  %v937 = vpack.c.b16 %v893, %v889
  %v938 = vpack.c.b16 %v894, %v890
  %v939 = vpack.c.b16 %v899, %v895
  %v940 = vpack.c.b16 %v900, %v896
  %v941 = vpack.c.b16 %v901, %v897
  %v942 = vpack.c.b16 %v902, %v898
  %v943 = vpack.c.b16 %v907, %v903
  %v944 = vpack.c.b16 %v908, %v904
  %v945 = vpack.c.b16 %v909, %v905
  %v946 = vpack.c.b16 %v910, %v906
  %v947 = vpack.c.b16 %v915, %v911
  %v948 = vpack.c.b16 %v916, %v912
  %v949 = vpack.c.b16 %v917, %v913
  %v950 = vpack.c.b16 %v918, %v914
  %983 = vmatprep.subr.bf16.mxu0 %v948
  %984 = vmatpush1.bf16.msra.mxu0 %v947
  %985 = vmatprep.subr.bf16.mxu0 %v944
  %986 = vmatpush1.bf16.msra.mxu0 %v943
  %987 = vmatprep.subr.bf16.mxu0 %v940
  %988 = vmatpush1.bf16.msra.mxu0 %v939
  %989 = vmatprep.subr.bf16.mxu0 %v936
  %990 = vmatpush1.bf16.msra.mxu0 %v935
  %991 = vmatprep.subr.bf16.mxu0 %v932
  %992 = vmatpush1.bf16.msra.mxu0 %v931
  %993 = vmatprep.subr.bf16.mxu0 %v928
  %994 = vmatpush1.bf16.msra.mxu0 %v927
  %995 = vmatprep.subr.bf16.mxu0 %v924
  %996 = vmatpush1.bf16.msra.mxu0 %v923
  %997 = vmatprep.subr.bf16.mxu0 %v920
  %998 = vmatpush1.bf16.msra.mxu0 %v919
  %999 = vmatprep.subr.bf16.mxu0 0
  %1000 = vmatpush2.bf16.msra.mxu0 0
  %1001 = vmatprep.subr.bf16.mxu0 0
  %1002 = vmatpush2.bf16.msra.mxu0 0
  %1003 = vmatprep.subr.bf16.mxu0 0
  %1004 = vmatpush2.bf16.msra.mxu0 0
  %1005 = vmatprep.subr.bf16.mxu0 0
  %1006 = vmatpush2.bf16.msra.mxu0 0
  %1007 = vmatprep.subr.bf16.mxu0 0
  %1008 = vmatpush2.bf16.msra.mxu0 0
  %1009 = vmatprep.subr.bf16.mxu0 0
  %1010 = vmatpush2.bf16.msra.mxu0 0
  %1011 = vmatprep.subr.bf16.mxu0 0
  %1012 = vmatpush2.bf16.msra.mxu0 0
  %1013 = vmatprep.subr.bf16.mxu0 0
  %1014 = vmatpush2.bf16.msra.mxu0 0
  %1015 = vmatprep.mubr.bf16.mxu0 0
  %1016 = vmatmul.mubr.bf16.gmra.mxu0 %v795
  %v1017 = vpop.f32.mrf.mxu0
  %v1018 = vadd.f32 %v428, %v1017
  %v1019 = vpop.f32.mrf.mxu0
  %v1020 = vadd.f32 %v430, %v1019
  %v1021 = vpop.f32.mrf.mxu0
  %v1022 = vadd.f32 %v432, %v1021
  %v1023 = vpop.f32.mrf.mxu0
  %v1024 = vadd.f32 %v434, %v1023
  %1025 = vmatprep.mubr.bf16.mxu0 0
  %1026 = vmatmul.mubr.bf16.gmra.mxu0 %v796
  %v1027 = vpop.f32.mrf.mxu0
  %v1028 = vadd.f32 %v438, %v1027
  %v1029 = vpop.f32.mrf.mxu0
  %v1030 = vadd.f32 %v440, %v1029
  %v1031 = vpop.f32.mrf.mxu0
  %v1032 = vadd.f32 %v442, %v1031
  %v1033 = vpop.f32.mrf.mxu0
  %v1034 = vadd.f32 %v444, %v1033
  %1035 = vmatprep.mubr.bf16.mxu0 0
  %1036 = vmatmul.mubr.bf16.gmra.mxu0 %v797
  %v1037 = vpop.f32.mrf.mxu0
  %v1038 = vadd.f32 %v448, %v1037
  %v1039 = vpop.f32.mrf.mxu0
  %v1040 = vadd.f32 %v450, %v1039
  %v1041 = vpop.f32.mrf.mxu0
  %v1042 = vadd.f32 %v452, %v1041
  %v1043 = vpop.f32.mrf.mxu0
  %v1044 = vadd.f32 %v454, %v1043
  %1045 = vmatprep.mubr.bf16.mxu0 0
  %1046 = vmatmul.mubr.bf16.gmra.mxu0 %v798
  %v1047 = vpop.f32.mrf.mxu0
  %v1048 = vadd.f32 %v458, %v1047
  %v1049 = vpop.f32.mrf.mxu0
  %v1050 = vadd.f32 %v460, %v1049
  %v1051 = vpop.f32.mrf.mxu0
  %v1052 = vadd.f32 %v462, %v1051
  %v1053 = vpop.f32.mrf.mxu0
  %v1054 = vadd.f32 %v464, %v1053
  %1055 = vmatprep.mubr.bf16.mxu0 0
  %1056 = vmatmul.mubr.bf16.gmra.mxu0 %v799
  %v1057 = vpop.f32.mrf.mxu0
  %v1058 = vadd.f32 %v468, %v1057
  %v1059 = vpop.f32.mrf.mxu0
  %v1060 = vadd.f32 %v470, %v1059
  %v1061 = vpop.f32.mrf.mxu0
  %v1062 = vadd.f32 %v472, %v1061
  %v1063 = vpop.f32.mrf.mxu0
  %v1064 = vadd.f32 %v474, %v1063
  %1065 = vmatprep.mubr.bf16.mxu0 0
  %1066 = vmatmul.mubr.bf16.gmra.mxu0 %v800
  %v1067 = vpop.f32.mrf.mxu0
  %v1068 = vadd.f32 %v478, %v1067
  %v1069 = vpop.f32.mrf.mxu0
  %v1070 = vadd.f32 %v480, %v1069
  %v1071 = vpop.f32.mrf.mxu0
  %v1072 = vadd.f32 %v482, %v1071
  %v1073 = vpop.f32.mrf.mxu0
  %v1074 = vadd.f32 %v484, %v1073
  %1075 = vmatprep.mubr.bf16.mxu0 0
  %1076 = vmatmul.mubr.bf16.gmra.mxu0 %v801
  %v1077 = vpop.f32.mrf.mxu0
  %v1078 = vadd.f32 %v488, %v1077
  %v1079 = vpop.f32.mrf.mxu0
  %v1080 = vadd.f32 %v490, %v1079
  %v1081 = vpop.f32.mrf.mxu0
  %v1082 = vadd.f32 %v492, %v1081
  %v1083 = vpop.f32.mrf.mxu0
  %v1084 = vadd.f32 %v494, %v1083
  %1085 = vmatprep.mubr.bf16.mxu0 0
  %1086 = vmatmul.mubr.bf16.gmra.mxu0 %v802
  %v1087 = vpop.f32.mrf.mxu0
  %v1088 = vadd.f32 %v498, %v1087
  %v1089 = vpop.f32.mrf.mxu0
  %v1090 = vadd.f32 %v500, %v1089
  %v1091 = vpop.f32.mrf.mxu0
  %v1092 = vadd.f32 %v502, %v1091
  %v1093 = vpop.f32.mrf.mxu0
  %v1094 = vadd.f32 %v504, %v1093
  %1095 = vmatprep.mubr.bf16.mxu0 0
  %1096 = vmatmul.mubr.bf16.gmra.mxu0 %v803
  %v1097 = vpop.f32.mrf.mxu0
  %v1098 = vadd.f32 %v508, %v1097
  %v1099 = vpop.f32.mrf.mxu0
  %v1100 = vadd.f32 %v510, %v1099
  %v1101 = vpop.f32.mrf.mxu0
  %v1102 = vadd.f32 %v512, %v1101
  %v1103 = vpop.f32.mrf.mxu0
  %v1104 = vadd.f32 %v514, %v1103
  %1105 = vmatprep.mubr.bf16.mxu0 0
  %1106 = vmatmul.mubr.bf16.gmra.mxu0 %v804
  %v1107 = vpop.f32.mrf.mxu0
  %v1108 = vadd.f32 %v518, %v1107
  %v1109 = vpop.f32.mrf.mxu0
  %v1110 = vadd.f32 %v520, %v1109
  %v1111 = vpop.f32.mrf.mxu0
  %v1112 = vadd.f32 %v522, %v1111
  %v1113 = vpop.f32.mrf.mxu0
  %v1114 = vadd.f32 %v524, %v1113
  %1115 = vmatprep.mubr.bf16.mxu0 0
  %1116 = vmatmul.mubr.bf16.gmra.mxu0 %v805
  %v1117 = vpop.f32.mrf.mxu0
  %v1118 = vadd.f32 %v528, %v1117
  %v1119 = vpop.f32.mrf.mxu0
  %v1120 = vadd.f32 %v530, %v1119
  %v1121 = vpop.f32.mrf.mxu0
  %v1122 = vadd.f32 %v532, %v1121
  %v1123 = vpop.f32.mrf.mxu0
  %v1124 = vadd.f32 %v534, %v1123
  %1125 = vmatprep.mubr.bf16.mxu0 0
  %1126 = vmatmul.mubr.bf16.gmra.mxu0 %v806
  %v1127 = vpop.f32.mrf.mxu0
  %v1128 = vadd.f32 %v538, %v1127
  %v1129 = vpop.f32.mrf.mxu0
  %v1130 = vadd.f32 %v540, %v1129
  %v1131 = vpop.f32.mrf.mxu0
  %v1132 = vadd.f32 %v542, %v1131
  %v1133 = vpop.f32.mrf.mxu0
  %v1134 = vadd.f32 %v544, %v1133
  %1135 = vmatprep.mubr.bf16.mxu0 0
  %1136 = vmatmul.mubr.bf16.gmra.mxu0 %v807
  %v1137 = vpop.f32.mrf.mxu0
  %v1138 = vadd.f32 %v548, %v1137
  %v1139 = vpop.f32.mrf.mxu0
  %v1140 = vadd.f32 %v550, %v1139
  %v1141 = vpop.f32.mrf.mxu0
  %v1142 = vadd.f32 %v552, %v1141
  %v1143 = vpop.f32.mrf.mxu0
  %v1144 = vadd.f32 %v554, %v1143
  %1145 = vmatprep.mubr.bf16.mxu0 0
  %1146 = vmatmul.mubr.bf16.gmra.mxu0 %v808
  %v1147 = vpop.f32.mrf.mxu0
  %v1148 = vadd.f32 %v558, %v1147
  %v1149 = vpop.f32.mrf.mxu0
  %v1150 = vadd.f32 %v560, %v1149
  %v1151 = vpop.f32.mrf.mxu0
  %v1152 = vadd.f32 %v562, %v1151
  %v1153 = vpop.f32.mrf.mxu0
  %v1154 = vadd.f32 %v564, %v1153
  %1155 = vdwg.mxu0
  %1156 = vmatprep.subr.bf16.mxu0 %v950
  %1157 = vmatpush1.bf16.msra.mxu0 %v949
  %1158 = vmatprep.subr.bf16.mxu0 %v946
  %1159 = vmatpush1.bf16.msra.mxu0 %v945
  %1160 = vmatprep.subr.bf16.mxu0 %v942
  %1161 = vmatpush1.bf16.msra.mxu0 %v941
  %1162 = vmatprep.subr.bf16.mxu0 %v938
  %1163 = vmatpush1.bf16.msra.mxu0 %v937
  %1164 = vmatprep.subr.bf16.mxu0 %v934
  %1165 = vmatpush1.bf16.msra.mxu0 %v933
  %1166 = vmatprep.subr.bf16.mxu0 %v930
  %1167 = vmatpush1.bf16.msra.mxu0 %v929
  %1168 = vmatprep.subr.bf16.mxu0 %v926
  %1169 = vmatpush1.bf16.msra.mxu0 %v925
  %1170 = vmatprep.subr.bf16.mxu0 %v922
  %1171 = vmatpush1.bf16.msra.mxu0 %v921
  %1172 = vmatprep.subr.bf16.mxu0 0
  %1173 = vmatpush2.bf16.msra.mxu0 0
  %1174 = vmatprep.subr.bf16.mxu0 0
  %1175 = vmatpush2.bf16.msra.mxu0 0
  %1176 = vmatprep.subr.bf16.mxu0 0
  %1177 = vmatpush2.bf16.msra.mxu0 0
  %1178 = vmatprep.subr.bf16.mxu0 0
  %1179 = vmatpush2.bf16.msra.mxu0 0
  %1180 = vmatprep.subr.bf16.mxu0 0
  %1181 = vmatpush2.bf16.msra.mxu0 0
  %1182 = vmatprep.subr.bf16.mxu0 0
  %1183 = vmatpush2.bf16.msra.mxu0 0
  %1184 = vmatprep.subr.bf16.mxu0 0
  %1185 = vmatpush2.bf16.msra.mxu0 0
  %1186 = vmatprep.subr.bf16.mxu0 0
  %1187 = vmatpush2.bf16.msra.mxu0 0
  %1188 = vmatprep.mubr.bf16.mxu0 0
  %1189 = vmatmul.mubr.bf16.gmra.mxu0 %v795
  %v1190 = vpop.f32.mrf.mxu0
  %v1191 = vadd.f32 %v601, %v1190
  %v1192 = vpop.f32.mrf.mxu0
  %v1193 = vadd.f32 %v603, %v1192
  %v1194 = vpop.f32.mrf.mxu0
  %v1195 = vadd.f32 %v605, %v1194
  %v1196 = vpop.f32.mrf.mxu0
  %v1197 = vadd.f32 %v607, %v1196
  %1198 = vmatprep.mubr.bf16.mxu0 0
  %1199 = vmatmul.mubr.bf16.gmra.mxu0 %v796
  %v1200 = vpop.f32.mrf.mxu0
  %v1201 = vadd.f32 %v611, %v1200
  %v1202 = vpop.f32.mrf.mxu0
  %v1203 = vadd.f32 %v613, %v1202
  %v1204 = vpop.f32.mrf.mxu0
  %v1205 = vadd.f32 %v615, %v1204
  %v1206 = vpop.f32.mrf.mxu0
  %v1207 = vadd.f32 %v617, %v1206
  %1208 = vmatprep.mubr.bf16.mxu0 0
  %1209 = vmatmul.mubr.bf16.gmra.mxu0 %v797
  %v1210 = vpop.f32.mrf.mxu0
  %v1211 = vadd.f32 %v621, %v1210
  %v1212 = vpop.f32.mrf.mxu0
  %v1213 = vadd.f32 %v623, %v1212
  %v1214 = vpop.f32.mrf.mxu0
  %v1215 = vadd.f32 %v625, %v1214
  %v1216 = vpop.f32.mrf.mxu0
  %v1217 = vadd.f32 %v627, %v1216
  %1218 = vmatprep.mubr.bf16.mxu0 0
  %1219 = vmatmul.mubr.bf16.gmra.mxu0 %v798
  %v1220 = vpop.f32.mrf.mxu0
  %v1221 = vadd.f32 %v631, %v1220
  %v1222 = vpop.f32.mrf.mxu0
  %v1223 = vadd.f32 %v633, %v1222
  %v1224 = vpop.f32.mrf.mxu0
  %v1225 = vadd.f32 %v635, %v1224
  %v1226 = vpop.f32.mrf.mxu0
  %v1227 = vadd.f32 %v637, %v1226
  %1228 = vmatprep.mubr.bf16.mxu0 0
  %1229 = vmatmul.mubr.bf16.gmra.mxu0 %v799
  %v1230 = vpop.f32.mrf.mxu0
  %v1231 = vadd.f32 %v641, %v1230
  %v1232 = vpop.f32.mrf.mxu0
  %v1233 = vadd.f32 %v643, %v1232
  %v1234 = vpop.f32.mrf.mxu0
  %v1235 = vadd.f32 %v645, %v1234
  %v1236 = vpop.f32.mrf.mxu0
  %v1237 = vadd.f32 %v647, %v1236
  %1238 = vmatprep.mubr.bf16.mxu0 0
  %1239 = vmatmul.mubr.bf16.gmra.mxu0 %v800
  %v1240 = vpop.f32.mrf.mxu0
  %v1241 = vadd.f32 %v651, %v1240
  %v1242 = vpop.f32.mrf.mxu0
  %v1243 = vadd.f32 %v653, %v1242
  %v1244 = vpop.f32.mrf.mxu0
  %v1245 = vadd.f32 %v655, %v1244
  %v1246 = vpop.f32.mrf.mxu0
  %v1247 = vadd.f32 %v657, %v1246
  %1248 = vmatprep.mubr.bf16.mxu0 0
  %1249 = vmatmul.mubr.bf16.gmra.mxu0 %v801
  %v1250 = vpop.f32.mrf.mxu0
  %v1251 = vadd.f32 %v661, %v1250
  %v1252 = vpop.f32.mrf.mxu0
  %v1253 = vadd.f32 %v663, %v1252
  %v1254 = vpop.f32.mrf.mxu0
  %v1255 = vadd.f32 %v665, %v1254
  %v1256 = vpop.f32.mrf.mxu0
  %v1257 = vadd.f32 %v667, %v1256
  %1258 = vmatprep.mubr.bf16.mxu0 0
  %1259 = vmatmul.mubr.bf16.gmra.mxu0 %v802
  %v1260 = vpop.f32.mrf.mxu0
  %v1261 = vadd.f32 %v671, %v1260
  %v1262 = vpop.f32.mrf.mxu0
  %v1263 = vadd.f32 %v673, %v1262
  %v1264 = vpop.f32.mrf.mxu0
  %v1265 = vadd.f32 %v675, %v1264
  %v1266 = vpop.f32.mrf.mxu0
  %v1267 = vadd.f32 %v677, %v1266
  %1268 = vmatprep.mubr.bf16.mxu0 0
  %1269 = vmatmul.mubr.bf16.gmra.mxu0 %v803
  %v1270 = vpop.f32.mrf.mxu0
  %v1271 = vadd.f32 %v681, %v1270
  %v1272 = vpop.f32.mrf.mxu0
  %v1273 = vadd.f32 %v683, %v1272
  %v1274 = vpop.f32.mrf.mxu0
  %v1275 = vadd.f32 %v685, %v1274
  %v1276 = vpop.f32.mrf.mxu0
  %v1277 = vadd.f32 %v687, %v1276
  %1278 = vmatprep.mubr.bf16.mxu0 0
  %1279 = vmatmul.mubr.bf16.gmra.mxu0 %v804
  %v1280 = vpop.f32.mrf.mxu0
  %v1281 = vadd.f32 %v691, %v1280
  %v1282 = vpop.f32.mrf.mxu0
  %v1283 = vadd.f32 %v693, %v1282
  %v1284 = vpop.f32.mrf.mxu0
  %v1285 = vadd.f32 %v695, %v1284
  %v1286 = vpop.f32.mrf.mxu0
  %v1287 = vadd.f32 %v697, %v1286
  %1288 = vmatprep.mubr.bf16.mxu0 0
  %1289 = vmatmul.mubr.bf16.gmra.mxu0 %v805
  %v1290 = vpop.f32.mrf.mxu0
  %v1291 = vadd.f32 %v701, %v1290
  %v1292 = vpop.f32.mrf.mxu0
  %v1293 = vadd.f32 %v703, %v1292
  %v1294 = vpop.f32.mrf.mxu0
  %v1295 = vadd.f32 %v705, %v1294
  %v1296 = vpop.f32.mrf.mxu0
  %v1297 = vadd.f32 %v707, %v1296
  %1298 = vmatprep.mubr.bf16.mxu0 0
  %1299 = vmatmul.mubr.bf16.gmra.mxu0 %v806
  %v1300 = vpop.f32.mrf.mxu0
  %v1301 = vadd.f32 %v711, %v1300
  %v1302 = vpop.f32.mrf.mxu0
  %v1303 = vadd.f32 %v713, %v1302
  %v1304 = vpop.f32.mrf.mxu0
  %v1305 = vadd.f32 %v715, %v1304
  %v1306 = vpop.f32.mrf.mxu0
  %v1307 = vadd.f32 %v717, %v1306
  %1308 = vmatprep.mubr.bf16.mxu0 0
  %1309 = vmatmul.mubr.bf16.gmra.mxu0 %v807
  %v1310 = vpop.f32.mrf.mxu0
  %v1311 = vadd.f32 %v721, %v1310
  %v1312 = vpop.f32.mrf.mxu0
  %v1313 = vadd.f32 %v723, %v1312
  %v1314 = vpop.f32.mrf.mxu0
  %v1315 = vadd.f32 %v725, %v1314
  %v1316 = vpop.f32.mrf.mxu0
  %v1317 = vadd.f32 %v727, %v1316
  %1318 = vmatprep.mubr.bf16.mxu0 0
  %1319 = vmatmul.mubr.bf16.gmra.mxu0 %v808
  %v1320 = vpop.f32.mrf.mxu0
  %v1321 = vadd.f32 %v731, %v1320
  %v1322 = vpop.f32.mrf.mxu0
  %v1323 = vadd.f32 %v733, %v1322
  %v1324 = vpop.f32.mrf.mxu0
  %v1325 = vadd.f32 %v735, %v1324
  %v1326 = vpop.f32.mrf.mxu0
  %v1327 = vadd.f32 %v737, %v1326
  %1328 = vdwg.mxu0
  %s1329 = scalar_lea.vmem %s2, 512
  %v1330 = vld [vmem:[%s1329] sm:$0xff]
  %v1331 = vld [vmem:[%s1329 + $0x8] sm:$0xff]
  %v1332 = vld [vmem:[%s1329 + $0x10] sm:$0xff]
  %v1333 = vld [vmem:[%s1329 + $0x18] sm:$0xff]
  %v1334 = vld [vmem:[%s1329 + $0x20] sm:$0xff]
  %v1335 = vld [vmem:[%s1329 + $0x28] sm:$0xff]
  %v1336 = vld [vmem:[%s1329 + $0x30] sm:$0xff]
  %v1337 = vld [vmem:[%s1329 + $0x38] sm:$0xff]
  %v1338 = vld [vmem:[%s1329 + $0x40] sm:$0xff]
  %v1339 = vld [vmem:[%s1329 + $0x48] sm:$0xff]
  %v1340 = vld [vmem:[%s1329 + $0x50] sm:$0xff]
  %v1341 = vld [vmem:[%s1329 + $0x58] sm:$0xff]
  %v1342 = vld [vmem:[%s1329 + $0x60] sm:$0xff]
  %v1343 = vld [vmem:[%s1329 + $0x68] sm:$0xff]
  %v1344 = vld [vmem:[%s1329 + $0x70] sm:$0xff]
  %v1345 = vld [vmem:[%s1329 + $0x78] sm:$0xff]
  %v1346 = vld [vmem:[%s1329 + $0x80] sm:$0xff]
  %v1347 = vld [vmem:[%s1329 + $0x88] sm:$0xff]
  %v1348 = vld [vmem:[%s1329 + $0x90] sm:$0xff]
  %v1349 = vld [vmem:[%s1329 + $0x98] sm:$0xff]
  %v1350 = vld [vmem:[%s1329 + $0xa0] sm:$0xff]
  %v1351 = vld [vmem:[%s1329 + $0xa8] sm:$0xff]
  %v1352 = vld [vmem:[%s1329 + $0xb0] sm:$0xff]
  %v1353 = vld [vmem:[%s1329 + $0xb8] sm:$0xff]
  %v1354 = vld [vmem:[%s1329 + $0xc0] sm:$0xff]
  %v1355 = vld [vmem:[%s1329 + $0xc8] sm:$0xff]
  %v1356 = vld [vmem:[%s1329 + $0xd0] sm:$0xff]
  %v1357 = vld [vmem:[%s1329 + $0xd8] sm:$0xff]
  %v1358 = vld [vmem:[%s1329 + $0xe0] sm:$0xff]
  %v1359 = vld [vmem:[%s1329 + $0xe8] sm:$0xff]
  %v1360 = vld [vmem:[%s1329 + $0xf0] sm:$0xff]
  %v1361 = vld [vmem:[%s1329 + $0xf8] sm:$0xff]
  %v1364 = vunpack.c.l.b16 %v52
  %v1365 = vunpack.c.l.b16 %v53
  %v1366 = vpack.c.b16 %v1365, %v1364
  %v1400 = vunpack.c.l.b16 %v1330
  %v1401 = vunpack.c.h.b16 %v1330
  %v1402 = vunpack.c.l.b16 %v1331
  %v1403 = vunpack.c.h.b16 %v1331
  %v1404 = vunpack.c.l.b16 %v1332
  %v1405 = vunpack.c.h.b16 %v1332
  %v1406 = vunpack.c.l.b16 %v1333
  %v1407 = vunpack.c.h.b16 %v1333
  %v1408 = vunpack.c.l.b16 %v1334
  %v1409 = vunpack.c.h.b16 %v1334
  %v1410 = vunpack.c.l.b16 %v1335
  %v1411 = vunpack.c.h.b16 %v1335
  %v1412 = vunpack.c.l.b16 %v1336
  %v1413 = vunpack.c.h.b16 %v1336
  %v1414 = vunpack.c.l.b16 %v1337
  %v1415 = vunpack.c.h.b16 %v1337
  %v1416 = vunpack.c.l.b16 %v1338
  %v1417 = vunpack.c.h.b16 %v1338
  %v1418 = vunpack.c.l.b16 %v1339
  %v1419 = vunpack.c.h.b16 %v1339
  %v1420 = vunpack.c.l.b16 %v1340
  %v1421 = vunpack.c.h.b16 %v1340
  %v1422 = vunpack.c.l.b16 %v1341
  %v1423 = vunpack.c.h.b16 %v1341
  %v1424 = vunpack.c.l.b16 %v1342
  %v1425 = vunpack.c.h.b16 %v1342
  %v1426 = vunpack.c.l.b16 %v1343
  %v1427 = vunpack.c.h.b16 %v1343
  %v1428 = vunpack.c.l.b16 %v1344
  %v1429 = vunpack.c.h.b16 %v1344
  %v1430 = vunpack.c.l.b16 %v1345
  %v1431 = vunpack.c.h.b16 %v1345
  %v1432 = vunpack.c.l.b16 %v1346
  %v1433 = vunpack.c.h.b16 %v1346
  %v1434 = vunpack.c.l.b16 %v1347
  %v1435 = vunpack.c.h.b16 %v1347
  %v1436 = vunpack.c.l.b16 %v1348
  %v1437 = vunpack.c.h.b16 %v1348
  %v1438 = vunpack.c.l.b16 %v1349
  %v1439 = vunpack.c.h.b16 %v1349
  %v1440 = vunpack.c.l.b16 %v1350
  %v1441 = vunpack.c.h.b16 %v1350
  %v1442 = vunpack.c.l.b16 %v1351
  %v1443 = vunpack.c.h.b16 %v1351
  %v1444 = vunpack.c.l.b16 %v1352
  %v1445 = vunpack.c.h.b16 %v1352
  %v1446 = vunpack.c.l.b16 %v1353
  %v1447 = vunpack.c.h.b16 %v1353
  %v1448 = vunpack.c.l.b16 %v1354
  %v1449 = vunpack.c.h.b16 %v1354
  %v1450 = vunpack.c.l.b16 %v1355
  %v1451 = vunpack.c.h.b16 %v1355
  %v1452 = vunpack.c.l.b16 %v1356
  %v1453 = vunpack.c.h.b16 %v1356
  %v1454 = vunpack.c.l.b16 %v1357
  %v1455 = vunpack.c.h.b16 %v1357
  %v1456 = vunpack.c.l.b16 %v1358
  %v1457 = vunpack.c.h.b16 %v1358
  %v1458 = vunpack.c.l.b16 %v1359
  %v1459 = vunpack.c.h.b16 %v1359
  %v1460 = vunpack.c.l.b16 %v1360
  %v1461 = vunpack.c.h.b16 %v1360
  %v1462 = vunpack.c.l.b16 %v1361
  %v1463 = vunpack.c.h.b16 %v1361
  %v1464 = vpack.c.b16 %v1404, %v1400
  %v1465 = vpack.c.b16 %v1405, %v1401
  %v1466 = vpack.c.b16 %v1406, %v1402
  %v1467 = vpack.c.b16 %v1407, %v1403
  %v1468 = vpack.c.b16 %v1412, %v1408
  %v1469 = vpack.c.b16 %v1413, %v1409
  %v1470 = vpack.c.b16 %v1414, %v1410
  %v1471 = vpack.c.b16 %v1415, %v1411
  %v1472 = vpack.c.b16 %v1420, %v1416
  %v1473 = vpack.c.b16 %v1421, %v1417
  %v1474 = vpack.c.b16 %v1422, %v1418
  %v1475 = vpack.c.b16 %v1423, %v1419
  %v1476 = vpack.c.b16 %v1428, %v1424
  %v1477 = vpack.c.b16 %v1429, %v1425
  %v1478 = vpack.c.b16 %v1430, %v1426
  %v1479 = vpack.c.b16 %v1431, %v1427
  %v1480 = vpack.c.b16 %v1436, %v1432
  %v1481 = vpack.c.b16 %v1437, %v1433
  %v1482 = vpack.c.b16 %v1438, %v1434
  %v1483 = vpack.c.b16 %v1439, %v1435
  %v1484 = vpack.c.b16 %v1444, %v1440
  %v1485 = vpack.c.b16 %v1445, %v1441
  %v1486 = vpack.c.b16 %v1446, %v1442
  %v1487 = vpack.c.b16 %v1447, %v1443
  %v1488 = vpack.c.b16 %v1452, %v1448
  %v1489 = vpack.c.b16 %v1453, %v1449
  %v1490 = vpack.c.b16 %v1454, %v1450
  %v1491 = vpack.c.b16 %v1455, %v1451
  %v1492 = vpack.c.b16 %v1460, %v1456
  %v1493 = vpack.c.b16 %v1461, %v1457
  %v1494 = vpack.c.b16 %v1462, %v1458
  %v1495 = vpack.c.b16 %v1463, %v1459
  %1528 = vmatprep.subr.bf16.mxu0 %v1493
  %1529 = vmatpush1.bf16.msra.mxu0 %v1492
  %1530 = vmatprep.subr.bf16.mxu0 %v1489
  %1531 = vmatpush1.bf16.msra.mxu0 %v1488
  %1532 = vmatprep.subr.bf16.mxu0 %v1485
  %1533 = vmatpush1.bf16.msra.mxu0 %v1484
  %1534 = vmatprep.subr.bf16.mxu0 %v1481
  %1535 = vmatpush1.bf16.msra.mxu0 %v1480
  %1536 = vmatprep.subr.bf16.mxu0 %v1477
  %1537 = vmatpush1.bf16.msra.mxu0 %v1476
  %1538 = vmatprep.subr.bf16.mxu0 %v1473
  %1539 = vmatpush1.bf16.msra.mxu0 %v1472
  %1540 = vmatprep.subr.bf16.mxu0 %v1469
  %1541 = vmatpush1.bf16.msra.mxu0 %v1468
  %1542 = vmatprep.subr.bf16.mxu0 %v1465
  %1543 = vmatpush1.bf16.msra.mxu0 %v1464
  %1544 = vmatprep.subr.bf16.mxu0 0
  %1545 = vmatpush2.bf16.msra.mxu0 0
  %1546 = vmatprep.subr.bf16.mxu0 0
  %1547 = vmatpush2.bf16.msra.mxu0 0
  %1548 = vmatprep.subr.bf16.mxu0 0
  %1549 = vmatpush2.bf16.msra.mxu0 0
  %1550 = vmatprep.subr.bf16.mxu0 0
  %1551 = vmatpush2.bf16.msra.mxu0 0
  %1552 = vmatprep.subr.bf16.mxu0 0
  %1553 = vmatpush2.bf16.msra.mxu0 0
  %1554 = vmatprep.subr.bf16.mxu0 0
  %1555 = vmatpush2.bf16.msra.mxu0 0
  %1556 = vmatprep.subr.bf16.mxu0 0
  %1557 = vmatpush2.bf16.msra.mxu0 0
  %1558 = vmatprep.subr.bf16.mxu0 0
  %1559 = vmatpush2.bf16.msra.mxu0 0
  %1560 = vmatprep.mubr.bf16.mxu0 0
  %1561 = vmatmul.mubr.bf16.gmra.mxu0 %v796
  %v1562 = vpop.f32.mrf.mxu0
  %v1563 = vadd.f32 0.0, %v1562
  %v1564 = vpop.f32.mrf.mxu0
  %v1565 = vadd.f32 0.0, %v1564
  %v1566 = vpop.f32.mrf.mxu0
  %v1567 = vadd.f32 0.0, %v1566
  %v1568 = vpop.f32.mrf.mxu0
  %v1569 = vadd.f32 0.0, %v1568
  %1570 = vmatprep.mubr.bf16.mxu0 0
  %1571 = vmatmul.mubr.bf16.gmra.mxu0 %v797
  %v1572 = vpop.f32.mrf.mxu0
  %v1573 = vadd.f32 0.0, %v1572
  %v1574 = vpop.f32.mrf.mxu0
  %v1575 = vadd.f32 0.0, %v1574
  %v1576 = vpop.f32.mrf.mxu0
  %v1577 = vadd.f32 0.0, %v1576
  %v1578 = vpop.f32.mrf.mxu0
  %v1579 = vadd.f32 0.0, %v1578
  %1580 = vmatprep.mubr.bf16.mxu0 0
  %1581 = vmatmul.mubr.bf16.gmra.mxu0 %v798
  %v1582 = vpop.f32.mrf.mxu0
  %v1583 = vadd.f32 0.0, %v1582
  %v1584 = vpop.f32.mrf.mxu0
  %v1585 = vadd.f32 0.0, %v1584
  %v1586 = vpop.f32.mrf.mxu0
  %v1587 = vadd.f32 0.0, %v1586
  %v1588 = vpop.f32.mrf.mxu0
  %v1589 = vadd.f32 0.0, %v1588
  %1590 = vmatprep.mubr.bf16.mxu0 0
  %1591 = vmatmul.mubr.bf16.gmra.mxu0 %v799
  %v1592 = vpop.f32.mrf.mxu0
  %v1593 = vadd.f32 0.0, %v1592
  %v1594 = vpop.f32.mrf.mxu0
  %v1595 = vadd.f32 0.0, %v1594
  %v1596 = vpop.f32.mrf.mxu0
  %v1597 = vadd.f32 0.0, %v1596
  %v1598 = vpop.f32.mrf.mxu0
  %v1599 = vadd.f32 0.0, %v1598
  %1600 = vmatprep.mubr.bf16.mxu0 0
  %1601 = vmatmul.mubr.bf16.gmra.mxu0 %v800
  %v1602 = vpop.f32.mrf.mxu0
  %v1603 = vadd.f32 0.0, %v1602
  %v1604 = vpop.f32.mrf.mxu0
  %v1605 = vadd.f32 0.0, %v1604
  %v1606 = vpop.f32.mrf.mxu0
  %v1607 = vadd.f32 0.0, %v1606
  %v1608 = vpop.f32.mrf.mxu0
  %v1609 = vadd.f32 0.0, %v1608
  %1610 = vmatprep.mubr.bf16.mxu0 0
  %1611 = vmatmul.mubr.bf16.gmra.mxu0 %v801
  %v1612 = vpop.f32.mrf.mxu0
  %v1613 = vadd.f32 0.0, %v1612
  %v1614 = vpop.f32.mrf.mxu0
  %v1615 = vadd.f32 0.0, %v1614
  %v1616 = vpop.f32.mrf.mxu0
  %v1617 = vadd.f32 0.0, %v1616
  %v1618 = vpop.f32.mrf.mxu0
  %v1619 = vadd.f32 0.0, %v1618
  %1620 = vmatprep.mubr.bf16.mxu0 0
  %1621 = vmatmul.mubr.bf16.gmra.mxu0 %v802
  %v1622 = vpop.f32.mrf.mxu0
  %v1623 = vadd.f32 0.0, %v1622
  %v1624 = vpop.f32.mrf.mxu0
  %v1625 = vadd.f32 0.0, %v1624
  %v1626 = vpop.f32.mrf.mxu0
  %v1627 = vadd.f32 0.0, %v1626
  %v1628 = vpop.f32.mrf.mxu0
  %v1629 = vadd.f32 0.0, %v1628
  %1630 = vmatprep.mubr.bf16.mxu0 0
  %1631 = vmatmul.mubr.bf16.gmra.mxu0 %v803
  %v1632 = vpop.f32.mrf.mxu0
  %v1633 = vadd.f32 0.0, %v1632
  %v1634 = vpop.f32.mrf.mxu0
  %v1635 = vadd.f32 0.0, %v1634
  %v1636 = vpop.f32.mrf.mxu0
  %v1637 = vadd.f32 0.0, %v1636
  %v1638 = vpop.f32.mrf.mxu0
  %v1639 = vadd.f32 0.0, %v1638
  %1640 = vmatprep.mubr.bf16.mxu0 0
  %1641 = vmatmul.mubr.bf16.gmra.mxu0 %v804
  %v1642 = vpop.f32.mrf.mxu0
  %v1643 = vadd.f32 0.0, %v1642
  %v1644 = vpop.f32.mrf.mxu0
  %v1645 = vadd.f32 0.0, %v1644
  %v1646 = vpop.f32.mrf.mxu0
  %v1647 = vadd.f32 0.0, %v1646
  %v1648 = vpop.f32.mrf.mxu0
  %v1649 = vadd.f32 0.0, %v1648
  %1650 = vmatprep.mubr.bf16.mxu0 0
  %1651 = vmatmul.mubr.bf16.gmra.mxu0 %v805
  %v1652 = vpop.f32.mrf.mxu0
  %v1653 = vadd.f32 0.0, %v1652
  %v1654 = vpop.f32.mrf.mxu0
  %v1655 = vadd.f32 0.0, %v1654
  %v1656 = vpop.f32.mrf.mxu0
  %v1657 = vadd.f32 0.0, %v1656
  %v1658 = vpop.f32.mrf.mxu0
  %v1659 = vadd.f32 0.0, %v1658
  %1660 = vmatprep.mubr.bf16.mxu0 0
  %1661 = vmatmul.mubr.bf16.gmra.mxu0 %v806
  %v1662 = vpop.f32.mrf.mxu0
  %v1663 = vadd.f32 0.0, %v1662
  %v1664 = vpop.f32.mrf.mxu0
  %v1665 = vadd.f32 0.0, %v1664
  %v1666 = vpop.f32.mrf.mxu0
  %v1667 = vadd.f32 0.0, %v1666
  %v1668 = vpop.f32.mrf.mxu0
  %v1669 = vadd.f32 0.0, %v1668
  %1670 = vmatprep.mubr.bf16.mxu0 0
  %1671 = vmatmul.mubr.bf16.gmra.mxu0 %v807
  %v1672 = vpop.f32.mrf.mxu0
  %v1673 = vadd.f32 0.0, %v1672
  %v1674 = vpop.f32.mrf.mxu0
  %v1675 = vadd.f32 0.0, %v1674
  %v1676 = vpop.f32.mrf.mxu0
  %v1677 = vadd.f32 0.0, %v1676
  %v1678 = vpop.f32.mrf.mxu0
  %v1679 = vadd.f32 0.0, %v1678
  %1680 = vmatprep.mubr.bf16.mxu0 0
  %1681 = vmatmul.mubr.bf16.gmra.mxu0 %v808
  %v1682 = vpop.f32.mrf.mxu0
  %v1683 = vadd.f32 0.0, %v1682
  %v1684 = vpop.f32.mrf.mxu0
  %v1685 = vadd.f32 0.0, %v1684
  %v1686 = vpop.f32.mrf.mxu0
  %v1687 = vadd.f32 0.0, %v1686
  %v1688 = vpop.f32.mrf.mxu0
  %v1689 = vadd.f32 0.0, %v1688
  %1690 = vmatprep.mubr.bf16.mxu0 0
  %1691 = vmatmul.mubr.bf16.gmra.mxu0 %v1366
  %v1692 = vpop.f32.mrf.mxu0
  %v1693 = vadd.f32 0.0, %v1692
  %v1694 = vpop.f32.mrf.mxu0
  %v1695 = vadd.f32 0.0, %v1694
  %v1696 = vpop.f32.mrf.mxu0
  %v1697 = vadd.f32 0.0, %v1696
  %v1698 = vpop.f32.mrf.mxu0
  %v1699 = vadd.f32 0.0, %v1698
  %1700 = vdwg.mxu0
  %1701 = vmatprep.subr.bf16.mxu0 %v1495
  %1702 = vmatpush1.bf16.msra.mxu0 %v1494
  %1703 = vmatprep.subr.bf16.mxu0 %v1491
  %1704 = vmatpush1.bf16.msra.mxu0 %v1490
  %1705 = vmatprep.subr.bf16.mxu0 %v1487
  %1706 = vmatpush1.bf16.msra.mxu0 %v1486
  %1707 = vmatprep.subr.bf16.mxu0 %v1483
  %1708 = vmatpush1.bf16.msra.mxu0 %v1482
  %1709 = vmatprep.subr.bf16.mxu0 %v1479
  %1710 = vmatpush1.bf16.msra.mxu0 %v1478
  %1711 = vmatprep.subr.bf16.mxu0 %v1475
  %1712 = vmatpush1.bf16.msra.mxu0 %v1474
  %1713 = vmatprep.subr.bf16.mxu0 %v1471
  %1714 = vmatpush1.bf16.msra.mxu0 %v1470
  %1715 = vmatprep.subr.bf16.mxu0 %v1467
  %1716 = vmatpush1.bf16.msra.mxu0 %v1466
  %1717 = vmatprep.subr.bf16.mxu0 0
  %1718 = vmatpush2.bf16.msra.mxu0 0
  %1719 = vmatprep.subr.bf16.mxu0 0
  %1720 = vmatpush2.bf16.msra.mxu0 0
  %1721 = vmatprep.subr.bf16.mxu0 0
  %1722 = vmatpush2.bf16.msra.mxu0 0
  %1723 = vmatprep.subr.bf16.mxu0 0
  %1724 = vmatpush2.bf16.msra.mxu0 0
  %1725 = vmatprep.subr.bf16.mxu0 0
  %1726 = vmatpush2.bf16.msra.mxu0 0
  %1727 = vmatprep.subr.bf16.mxu0 0
  %1728 = vmatpush2.bf16.msra.mxu0 0
  %1729 = vmatprep.subr.bf16.mxu0 0
  %1730 = vmatpush2.bf16.msra.mxu0 0
  %1731 = vmatprep.subr.bf16.mxu0 0
  %1732 = vmatpush2.bf16.msra.mxu0 0
  %1733 = vmatprep.mubr.bf16.mxu0 0
  %1734 = vmatmul.mubr.bf16.gmra.mxu0 %v796
  %v1735 = vpop.f32.mrf.mxu0
  %v1736 = vadd.f32 0.0, %v1735
  %v1737 = vpop.f32.mrf.mxu0
  %v1738 = vadd.f32 0.0, %v1737
  %v1739 = vpop.f32.mrf.mxu0
  %v1740 = vadd.f32 0.0, %v1739
  %v1741 = vpop.f32.mrf.mxu0
  %v1742 = vadd.f32 0.0, %v1741
  %1743 = vmatprep.mubr.bf16.mxu0 0
  %1744 = vmatmul.mubr.bf16.gmra.mxu0 %v797
  %v1745 = vpop.f32.mrf.mxu0
  %v1746 = vadd.f32 0.0, %v1745
  %v1747 = vpop.f32.mrf.mxu0
  %v1748 = vadd.f32 0.0, %v1747
  %v1749 = vpop.f32.mrf.mxu0
  %v1750 = vadd.f32 0.0, %v1749
  %v1751 = vpop.f32.mrf.mxu0
  %v1752 = vadd.f32 0.0, %v1751
  %1753 = vmatprep.mubr.bf16.mxu0 0
  %1754 = vmatmul.mubr.bf16.gmra.mxu0 %v798
  %v1755 = vpop.f32.mrf.mxu0
  %v1756 = vadd.f32 0.0, %v1755
  %v1757 = vpop.f32.mrf.mxu0
  %v1758 = vadd.f32 0.0, %v1757
  %v1759 = vpop.f32.mrf.mxu0
  %v1760 = vadd.f32 0.0, %v1759
  %v1761 = vpop.f32.mrf.mxu0
  %v1762 = vadd.f32 0.0, %v1761
  %1763 = vmatprep.mubr.bf16.mxu0 0
  %1764 = vmatmul.mubr.bf16.gmra.mxu0 %v799
  %v1765 = vpop.f32.mrf.mxu0
  %v1766 = vadd.f32 0.0, %v1765
  %v1767 = vpop.f32.mrf.mxu0
  %v1768 = vadd.f32 0.0, %v1767
  %v1769 = vpop.f32.mrf.mxu0
  %v1770 = vadd.f32 0.0, %v1769
  %v1771 = vpop.f32.mrf.mxu0
  %v1772 = vadd.f32 0.0, %v1771
  %1773 = vmatprep.mubr.bf16.mxu0 0
  %1774 = vmatmul.mubr.bf16.gmra.mxu0 %v800
  %v1775 = vpop.f32.mrf.mxu0
  %v1776 = vadd.f32 0.0, %v1775
  %v1777 = vpop.f32.mrf.mxu0
  %v1778 = vadd.f32 0.0, %v1777
  %v1779 = vpop.f32.mrf.mxu0
  %v1780 = vadd.f32 0.0, %v1779
  %v1781 = vpop.f32.mrf.mxu0
  %v1782 = vadd.f32 0.0, %v1781
  %1783 = vmatprep.mubr.bf16.mxu0 0
  %1784 = vmatmul.mubr.bf16.gmra.mxu0 %v801
  %v1785 = vpop.f32.mrf.mxu0
  %v1786 = vadd.f32 0.0, %v1785
  %v1787 = vpop.f32.mrf.mxu0
  %v1788 = vadd.f32 0.0, %v1787
  %v1789 = vpop.f32.mrf.mxu0
  %v1790 = vadd.f32 0.0, %v1789
  %v1791 = vpop.f32.mrf.mxu0
  %v1792 = vadd.f32 0.0, %v1791
  %1793 = vmatprep.mubr.bf16.mxu0 0
  %1794 = vmatmul.mubr.bf16.gmra.mxu0 %v802
  %v1795 = vpop.f32.mrf.mxu0
  %v1796 = vadd.f32 0.0, %v1795
  %v1797 = vpop.f32.mrf.mxu0
  %v1798 = vadd.f32 0.0, %v1797
  %v1799 = vpop.f32.mrf.mxu0
  %v1800 = vadd.f32 0.0, %v1799
  %v1801 = vpop.f32.mrf.mxu0
  %v1802 = vadd.f32 0.0, %v1801
  %1803 = vmatprep.mubr.bf16.mxu0 0
  %1804 = vmatmul.mubr.bf16.gmra.mxu0 %v803
  %v1805 = vpop.f32.mrf.mxu0
  %v1806 = vadd.f32 0.0, %v1805
  %v1807 = vpop.f32.mrf.mxu0
  %v1808 = vadd.f32 0.0, %v1807
  %v1809 = vpop.f32.mrf.mxu0
  %v1810 = vadd.f32 0.0, %v1809
  %v1811 = vpop.f32.mrf.mxu0
  %v1812 = vadd.f32 0.0, %v1811
  %1813 = vmatprep.mubr.bf16.mxu0 0
  %1814 = vmatmul.mubr.bf16.gmra.mxu0 %v804
  %v1815 = vpop.f32.mrf.mxu0
  %v1816 = vadd.f32 0.0, %v1815
  %v1817 = vpop.f32.mrf.mxu0
  %v1818 = vadd.f32 0.0, %v1817
  %v1819 = vpop.f32.mrf.mxu0
  %v1820 = vadd.f32 0.0, %v1819
  %v1821 = vpop.f32.mrf.mxu0
  %v1822 = vadd.f32 0.0, %v1821
  %1823 = vmatprep.mubr.bf16.mxu0 0
  %1824 = vmatmul.mubr.bf16.gmra.mxu0 %v805
  %v1825 = vpop.f32.mrf.mxu0
  %v1826 = vadd.f32 0.0, %v1825
  %v1827 = vpop.f32.mrf.mxu0
  %v1828 = vadd.f32 0.0, %v1827
  %v1829 = vpop.f32.mrf.mxu0
  %v1830 = vadd.f32 0.0, %v1829
  %v1831 = vpop.f32.mrf.mxu0
  %v1832 = vadd.f32 0.0, %v1831
  %1833 = vmatprep.mubr.bf16.mxu0 0
  %1834 = vmatmul.mubr.bf16.gmra.mxu0 %v806
  %v1835 = vpop.f32.mrf.mxu0
  %v1836 = vadd.f32 0.0, %v1835
  %v1837 = vpop.f32.mrf.mxu0
  %v1838 = vadd.f32 0.0, %v1837
  %v1839 = vpop.f32.mrf.mxu0
  %v1840 = vadd.f32 0.0, %v1839
  %v1841 = vpop.f32.mrf.mxu0
  %v1842 = vadd.f32 0.0, %v1841
  %1843 = vmatprep.mubr.bf16.mxu0 0
  %1844 = vmatmul.mubr.bf16.gmra.mxu0 %v807
  %v1845 = vpop.f32.mrf.mxu0
  %v1846 = vadd.f32 0.0, %v1845
  %v1847 = vpop.f32.mrf.mxu0
  %v1848 = vadd.f32 0.0, %v1847
  %v1849 = vpop.f32.mrf.mxu0
  %v1850 = vadd.f32 0.0, %v1849
  %v1851 = vpop.f32.mrf.mxu0
  %v1852 = vadd.f32 0.0, %v1851
  %1853 = vmatprep.mubr.bf16.mxu0 0
  %1854 = vmatmul.mubr.bf16.gmra.mxu0 %v808
  %v1855 = vpop.f32.mrf.mxu0
  %v1856 = vadd.f32 0.0, %v1855
  %v1857 = vpop.f32.mrf.mxu0
  %v1858 = vadd.f32 0.0, %v1857
  %v1859 = vpop.f32.mrf.mxu0
  %v1860 = vadd.f32 0.0, %v1859
  %v1861 = vpop.f32.mrf.mxu0
  %v1862 = vadd.f32 0.0, %v1861
  %1863 = vmatprep.mubr.bf16.mxu0 0
  %1864 = vmatmul.mubr.bf16.gmra.mxu0 %v1366
  %v1865 = vpop.f32.mrf.mxu0
  %v1866 = vadd.f32 0.0, %v1865
  %v1867 = vpop.f32.mrf.mxu0
  %v1868 = vadd.f32 0.0, %v1867
  %v1869 = vpop.f32.mrf.mxu0
  %v1870 = vadd.f32 0.0, %v1869
  %v1871 = vpop.f32.mrf.mxu0
  %v1872 = vadd.f32 0.0, %v1871
  %1873 = vdwg.mxu0
  %v1874 = vadd.f32 %v1018, %v1563
  %v1875 = vadd.f32 %v1020, %v1565
  %v1876 = vadd.f32 %v1191, %v1736
  %v1877 = vadd.f32 %v1193, %v1738
  %v1878 = vadd.f32 %v1022, %v1567
  %v1879 = vadd.f32 %v1024, %v1569
  %v1880 = vadd.f32 %v1195, %v1740
  %v1881 = vadd.f32 %v1197, %v1742
  %v1882 = vadd.f32 %v1028, %v1573
  %v1883 = vadd.f32 %v1030, %v1575
  %v1884 = vadd.f32 %v1201, %v1746
  %v1885 = vadd.f32 %v1203, %v1748
  %v1886 = vadd.f32 %v1032, %v1577
  %v1887 = vadd.f32 %v1034, %v1579
  %v1888 = vadd.f32 %v1205, %v1750
  %v1889 = vadd.f32 %v1207, %v1752
  %v1890 = vadd.f32 %v1038, %v1583
  %v1891 = vadd.f32 %v1040, %v1585
  %v1892 = vadd.f32 %v1211, %v1756
  %v1893 = vadd.f32 %v1213, %v1758
  %v1894 = vadd.f32 %v1042, %v1587
  %v1895 = vadd.f32 %v1044, %v1589
  %v1896 = vadd.f32 %v1215, %v1760
  %v1897 = vadd.f32 %v1217, %v1762
  %v1898 = vadd.f32 %v1048, %v1593
  %v1899 = vadd.f32 %v1050, %v1595
  %v1900 = vadd.f32 %v1221, %v1766
  %v1901 = vadd.f32 %v1223, %v1768
  %v1902 = vadd.f32 %v1052, %v1597
  %v1903 = vadd.f32 %v1054, %v1599
  %v1904 = vadd.f32 %v1225, %v1770
  %v1905 = vadd.f32 %v1227, %v1772
  %v1906 = vadd.f32 %v1058, %v1603
  %v1907 = vadd.f32 %v1060, %v1605
  %v1908 = vadd.f32 %v1231, %v1776
  %v1909 = vadd.f32 %v1233, %v1778
  %v1910 = vadd.f32 %v1062, %v1607
  %v1911 = vadd.f32 %v1064, %v1609
  %v1912 = vadd.f32 %v1235, %v1780
  %v1913 = vadd.f32 %v1237, %v1782
  %v1914 = vadd.f32 %v1068, %v1613
  %v1915 = vadd.f32 %v1070, %v1615
  %v1916 = vadd.f32 %v1241, %v1786
  %v1917 = vadd.f32 %v1243, %v1788
  %v1918 = vadd.f32 %v1072, %v1617
  %v1919 = vadd.f32 %v1074, %v1619
  %v1920 = vadd.f32 %v1245, %v1790
  %v1921 = vadd.f32 %v1247, %v1792
  %v1922 = vadd.f32 %v1078, %v1623
  %v1923 = vadd.f32 %v1080, %v1625
  %v1924 = vadd.f32 %v1251, %v1796
  %v1925 = vadd.f32 %v1253, %v1798
  %v1926 = vadd.f32 %v1082, %v1627
  %v1927 = vadd.f32 %v1084, %v1629
  %v1928 = vadd.f32 %v1255, %v1800
  %v1929 = vadd.f32 %v1257, %v1802
  %v1930 = vadd.f32 %v1088, %v1633
  %v1931 = vadd.f32 %v1090, %v1635
  %v1932 = vadd.f32 %v1261, %v1806
  %v1933 = vadd.f32 %v1263, %v1808
  %v1934 = vadd.f32 %v1092, %v1637
  %v1935 = vadd.f32 %v1094, %v1639
  %v1936 = vadd.f32 %v1265, %v1810
  %v1937 = vadd.f32 %v1267, %v1812
  %v1938 = vadd.f32 %v1098, %v1643
  %v1939 = vadd.f32 %v1100, %v1645
  %v1940 = vadd.f32 %v1271, %v1816
  %v1941 = vadd.f32 %v1273, %v1818
  %v1942 = vadd.f32 %v1102, %v1647
  %v1943 = vadd.f32 %v1104, %v1649
  %v1944 = vadd.f32 %v1275, %v1820
  %v1945 = vadd.f32 %v1277, %v1822
  %v1946 = vadd.f32 %v1108, %v1653
  %v1947 = vadd.f32 %v1110, %v1655
  %v1948 = vadd.f32 %v1281, %v1826
  %v1949 = vadd.f32 %v1283, %v1828
  %v1950 = vadd.f32 %v1112, %v1657
  %v1951 = vadd.f32 %v1114, %v1659
  %v1952 = vadd.f32 %v1285, %v1830
  %v1953 = vadd.f32 %v1287, %v1832
  %v1954 = vadd.f32 %v1118, %v1663
  %v1955 = vadd.f32 %v1120, %v1665
  %v1956 = vadd.f32 %v1291, %v1836
  %v1957 = vadd.f32 %v1293, %v1838
  %v1958 = vadd.f32 %v1122, %v1667
  %v1959 = vadd.f32 %v1124, %v1669
  %v1960 = vadd.f32 %v1295, %v1840
  %v1961 = vadd.f32 %v1297, %v1842
  %v1962 = vadd.f32 %v1128, %v1673
  %v1963 = vadd.f32 %v1130, %v1675
  %v1964 = vadd.f32 %v1301, %v1846
  %v1965 = vadd.f32 %v1303, %v1848
  %v1966 = vadd.f32 %v1132, %v1677
  %v1967 = vadd.f32 %v1134, %v1679
  %v1968 = vadd.f32 %v1305, %v1850
  %v1969 = vadd.f32 %v1307, %v1852
  %v1970 = vadd.f32 %v1138, %v1683
  %v1971 = vadd.f32 %v1140, %v1685
  %v1972 = vadd.f32 %v1311, %v1856
  %v1973 = vadd.f32 %v1313, %v1858
  %v1974 = vadd.f32 %v1142, %v1687
  %v1975 = vadd.f32 %v1144, %v1689
  %v1976 = vadd.f32 %v1315, %v1860
  %v1977 = vadd.f32 %v1317, %v1862
  %v1978 = vadd.f32 %v1148, %v1693
  %v1979 = vadd.f32 %v1150, %v1695
  %v1980 = vadd.f32 %v1321, %v1866
  %v1981 = vadd.f32 %v1323, %v1868
  %v1982 = vadd.f32 %v1152, %v1697
  %v1983 = vadd.f32 %v1154, %v1699
  %v1984 = vadd.f32 %v1325, %v1870
  %v1985 = vadd.f32 %v1327, %v1872
  %1986 = vmatprep.subr.bf16.mxu0 %v358
  %1987 = vmatpush1.bf16.msra.mxu0 %v357
  %1988 = vmatprep.subr.bf16.mxu0 %v354
  %1989 = vmatpush1.bf16.msra.mxu0 %v353
  %1990 = vmatprep.subr.bf16.mxu0 %v350
  %1991 = vmatpush1.bf16.msra.mxu0 %v349
  %1992 = vmatprep.subr.bf16.mxu0 %v346
  %1993 = vmatpush1.bf16.msra.mxu0 %v345
  %1994 = vmatprep.subr.bf16.mxu0 %v342
  %1995 = vmatpush1.bf16.msra.mxu0 %v341
  %1996 = vmatprep.subr.bf16.mxu0 %v338
  %1997 = vmatpush1.bf16.msra.mxu0 %v337
  %1998 = vmatprep.subr.bf16.mxu0 %v334
  %1999 = vmatpush1.bf16.msra.mxu0 %v333
  %2000 = vmatprep.subr.bf16.mxu0 %v330
  %2001 = vmatpush1.bf16.msra.mxu0 %v329
  %2002 = vmatprep.subr.bf16.mxu0 0
  %2003 = vmatpush2.bf16.msra.mxu0 0
  %2004 = vmatprep.subr.bf16.mxu0 0
  %2005 = vmatpush2.bf16.msra.mxu0 0
  %2006 = vmatprep.subr.bf16.mxu0 0
  %2007 = vmatpush2.bf16.msra.mxu0 0
  %2008 = vmatprep.subr.bf16.mxu0 0
  %2009 = vmatpush2.bf16.msra.mxu0 0
  %2010 = vmatprep.subr.bf16.mxu0 0
  %2011 = vmatpush2.bf16.msra.mxu0 0
  %2012 = vmatprep.subr.bf16.mxu0 0
  %2013 = vmatpush2.bf16.msra.mxu0 0
  %2014 = vmatprep.subr.bf16.mxu0 0
  %2015 = vmatpush2.bf16.msra.mxu0 0
  %2016 = vmatprep.subr.bf16.mxu0 0
  %2017 = vmatpush2.bf16.msra.mxu0 0
  %2018 = vmatprep.mubr.bf16.mxu0 0
  %2019 = vmatmul.mubr.bf16.gmra.mxu0 %v796
  %v2020 = vpop.f32.mrf.mxu0
  %v2021 = vadd.f32 0.0, %v2020
  %v2022 = vpop.f32.mrf.mxu0
  %v2023 = vadd.f32 0.0, %v2022
  %v2024 = vpop.f32.mrf.mxu0
  %v2025 = vadd.f32 0.0, %v2024
  %v2026 = vpop.f32.mrf.mxu0
  %v2027 = vadd.f32 0.0, %v2026
  %2028 = vmatprep.mubr.bf16.mxu0 0
  %2029 = vmatmul.mubr.bf16.gmra.mxu0 %v797
  %v2030 = vpop.f32.mrf.mxu0
  %v2031 = vadd.f32 0.0, %v2030
  %v2032 = vpop.f32.mrf.mxu0
  %v2033 = vadd.f32 0.0, %v2032
  %v2034 = vpop.f32.mrf.mxu0
  %v2035 = vadd.f32 0.0, %v2034
  %v2036 = vpop.f32.mrf.mxu0
  %v2037 = vadd.f32 0.0, %v2036
  %2038 = vmatprep.mubr.bf16.mxu0 0
  %2039 = vmatmul.mubr.bf16.gmra.mxu0 %v798
  %v2040 = vpop.f32.mrf.mxu0
  %v2041 = vadd.f32 0.0, %v2040
  %v2042 = vpop.f32.mrf.mxu0
  %v2043 = vadd.f32 0.0, %v2042
  %v2044 = vpop.f32.mrf.mxu0
  %v2045 = vadd.f32 0.0, %v2044
  %v2046 = vpop.f32.mrf.mxu0
  %v2047 = vadd.f32 0.0, %v2046
  %2048 = vmatprep.mubr.bf16.mxu0 0
  %2049 = vmatmul.mubr.bf16.gmra.mxu0 %v799
  %v2050 = vpop.f32.mrf.mxu0
  %v2051 = vadd.f32 0.0, %v2050
  %v2052 = vpop.f32.mrf.mxu0
  %v2053 = vadd.f32 0.0, %v2052
  %v2054 = vpop.f32.mrf.mxu0
  %v2055 = vadd.f32 0.0, %v2054
  %v2056 = vpop.f32.mrf.mxu0
  %v2057 = vadd.f32 0.0, %v2056
  %2058 = vmatprep.mubr.bf16.mxu0 0
  %2059 = vmatmul.mubr.bf16.gmra.mxu0 %v800
  %v2060 = vpop.f32.mrf.mxu0
  %v2061 = vadd.f32 0.0, %v2060
  %v2062 = vpop.f32.mrf.mxu0
  %v2063 = vadd.f32 0.0, %v2062
  %v2064 = vpop.f32.mrf.mxu0
  %v2065 = vadd.f32 0.0, %v2064
  %v2066 = vpop.f32.mrf.mxu0
  %v2067 = vadd.f32 0.0, %v2066
  %2068 = vmatprep.mubr.bf16.mxu0 0
  %2069 = vmatmul.mubr.bf16.gmra.mxu0 %v801
  %v2070 = vpop.f32.mrf.mxu0
  %v2071 = vadd.f32 0.0, %v2070
  %v2072 = vpop.f32.mrf.mxu0
  %v2073 = vadd.f32 0.0, %v2072
  %v2074 = vpop.f32.mrf.mxu0
  %v2075 = vadd.f32 0.0, %v2074
  %v2076 = vpop.f32.mrf.mxu0
  %v2077 = vadd.f32 0.0, %v2076
  %2078 = vmatprep.mubr.bf16.mxu0 0
  %2079 = vmatmul.mubr.bf16.gmra.mxu0 %v802
  %v2080 = vpop.f32.mrf.mxu0
  %v2081 = vadd.f32 0.0, %v2080
  %v2082 = vpop.f32.mrf.mxu0
  %v2083 = vadd.f32 0.0, %v2082
  %v2084 = vpop.f32.mrf.mxu0
  %v2085 = vadd.f32 0.0, %v2084
  %v2086 = vpop.f32.mrf.mxu0
  %v2087 = vadd.f32 0.0, %v2086
  %2088 = vmatprep.mubr.bf16.mxu0 0
  %2089 = vmatmul.mubr.bf16.gmra.mxu0 %v803
  %v2090 = vpop.f32.mrf.mxu0
  %v2091 = vadd.f32 0.0, %v2090
  %v2092 = vpop.f32.mrf.mxu0
  %v2093 = vadd.f32 0.0, %v2092
  %v2094 = vpop.f32.mrf.mxu0
  %v2095 = vadd.f32 0.0, %v2094
  %v2096 = vpop.f32.mrf.mxu0
  %v2097 = vadd.f32 0.0, %v2096
  %2098 = vmatprep.mubr.bf16.mxu0 0
  %2099 = vmatmul.mubr.bf16.gmra.mxu0 %v804
  %v2100 = vpop.f32.mrf.mxu0
  %v2101 = vadd.f32 0.0, %v2100
  %v2102 = vpop.f32.mrf.mxu0
  %v2103 = vadd.f32 0.0, %v2102
  %v2104 = vpop.f32.mrf.mxu0
  %v2105 = vadd.f32 0.0, %v2104
  %v2106 = vpop.f32.mrf.mxu0
  %v2107 = vadd.f32 0.0, %v2106
  %2108 = vmatprep.mubr.bf16.mxu0 0
  %2109 = vmatmul.mubr.bf16.gmra.mxu0 %v805
  %v2110 = vpop.f32.mrf.mxu0
  %v2111 = vadd.f32 0.0, %v2110
  %v2112 = vpop.f32.mrf.mxu0
  %v2113 = vadd.f32 0.0, %v2112
  %v2114 = vpop.f32.mrf.mxu0
  %v2115 = vadd.f32 0.0, %v2114
  %v2116 = vpop.f32.mrf.mxu0
  %v2117 = vadd.f32 0.0, %v2116
  %2118 = vmatprep.mubr.bf16.mxu0 0
  %2119 = vmatmul.mubr.bf16.gmra.mxu0 %v806
  %v2120 = vpop.f32.mrf.mxu0
  %v2121 = vadd.f32 0.0, %v2120
  %v2122 = vpop.f32.mrf.mxu0
  %v2123 = vadd.f32 0.0, %v2122
  %v2124 = vpop.f32.mrf.mxu0
  %v2125 = vadd.f32 0.0, %v2124
  %v2126 = vpop.f32.mrf.mxu0
  %v2127 = vadd.f32 0.0, %v2126
  %2128 = vmatprep.mubr.bf16.mxu0 0
  %2129 = vmatmul.mubr.bf16.gmra.mxu0 %v807
  %v2130 = vpop.f32.mrf.mxu0
  %v2131 = vadd.f32 0.0, %v2130
  %v2132 = vpop.f32.mrf.mxu0
  %v2133 = vadd.f32 0.0, %v2132
  %v2134 = vpop.f32.mrf.mxu0
  %v2135 = vadd.f32 0.0, %v2134
  %v2136 = vpop.f32.mrf.mxu0
  %v2137 = vadd.f32 0.0, %v2136
  %2138 = vmatprep.mubr.bf16.mxu0 0
  %2139 = vmatmul.mubr.bf16.gmra.mxu0 %v808
  %v2140 = vpop.f32.mrf.mxu0
  %v2141 = vadd.f32 0.0, %v2140
  %v2142 = vpop.f32.mrf.mxu0
  %v2143 = vadd.f32 0.0, %v2142
  %v2144 = vpop.f32.mrf.mxu0
  %v2145 = vadd.f32 0.0, %v2144
  %v2146 = vpop.f32.mrf.mxu0
  %v2147 = vadd.f32 0.0, %v2146
  %2148 = vmatprep.mubr.bf16.mxu0 0
  %2149 = vmatmul.mubr.bf16.gmra.mxu0 %v1366
  %v2150 = vpop.f32.mrf.mxu0
  %v2151 = vadd.f32 0.0, %v2150
  %v2152 = vpop.f32.mrf.mxu0
  %v2153 = vadd.f32 0.0, %v2152
  %v2154 = vpop.f32.mrf.mxu0
  %v2155 = vadd.f32 0.0, %v2154
  %v2156 = vpop.f32.mrf.mxu0
  %v2157 = vadd.f32 0.0, %v2156
  %2158 = vdwg.mxu0
  %2159 = vmatprep.subr.bf16.mxu0 %v360
  %2160 = vmatpush1.bf16.msra.mxu0 %v359
  %2161 = vmatprep.subr.bf16.mxu0 %v356
  %2162 = vmatpush1.bf16.msra.mxu0 %v355
  %2163 = vmatprep.subr.bf16.mxu0 %v352
  %2164 = vmatpush1.bf16.msra.mxu0 %v351
  %2165 = vmatprep.subr.bf16.mxu0 %v348
  %2166 = vmatpush1.bf16.msra.mxu0 %v347
  %2167 = vmatprep.subr.bf16.mxu0 %v344
  %2168 = vmatpush1.bf16.msra.mxu0 %v343
  %2169 = vmatprep.subr.bf16.mxu0 %v340
  %2170 = vmatpush1.bf16.msra.mxu0 %v339
  %2171 = vmatprep.subr.bf16.mxu0 %v336
  %2172 = vmatpush1.bf16.msra.mxu0 %v335
  %2173 = vmatprep.subr.bf16.mxu0 %v332
  %2174 = vmatpush1.bf16.msra.mxu0 %v331
  %2175 = vmatprep.subr.bf16.mxu0 0
  %2176 = vmatpush2.bf16.msra.mxu0 0
  %2177 = vmatprep.subr.bf16.mxu0 0
  %2178 = vmatpush2.bf16.msra.mxu0 0
  %2179 = vmatprep.subr.bf16.mxu0 0
  %2180 = vmatpush2.bf16.msra.mxu0 0
  %2181 = vmatprep.subr.bf16.mxu0 0
  %2182 = vmatpush2.bf16.msra.mxu0 0
  %2183 = vmatprep.subr.bf16.mxu0 0
  %2184 = vmatpush2.bf16.msra.mxu0 0
  %2185 = vmatprep.subr.bf16.mxu0 0
  %2186 = vmatpush2.bf16.msra.mxu0 0
  %2187 = vmatprep.subr.bf16.mxu0 0
  %2188 = vmatpush2.bf16.msra.mxu0 0
  %2189 = vmatprep.subr.bf16.mxu0 0
  %2190 = vmatpush2.bf16.msra.mxu0 0
  %2191 = vmatprep.mubr.bf16.mxu0 0
  %2192 = vmatmul.mubr.bf16.gmra.mxu0 %v796
  %v2193 = vpop.f32.mrf.mxu0
  %v2194 = vadd.f32 0.0, %v2193
  %v2195 = vpop.f32.mrf.mxu0
  %v2196 = vadd.f32 0.0, %v2195
  %v2197 = vpop.f32.mrf.mxu0
  %v2198 = vadd.f32 0.0, %v2197
  %v2199 = vpop.f32.mrf.mxu0
  %v2200 = vadd.f32 0.0, %v2199
  %2201 = vmatprep.mubr.bf16.mxu0 0
  %2202 = vmatmul.mubr.bf16.gmra.mxu0 %v797
  %v2203 = vpop.f32.mrf.mxu0
  %v2204 = vadd.f32 0.0, %v2203
  %v2205 = vpop.f32.mrf.mxu0
  %v2206 = vadd.f32 0.0, %v2205
  %v2207 = vpop.f32.mrf.mxu0
  %v2208 = vadd.f32 0.0, %v2207
  %v2209 = vpop.f32.mrf.mxu0
  %v2210 = vadd.f32 0.0, %v2209
  %2211 = vmatprep.mubr.bf16.mxu0 0
  %2212 = vmatmul.mubr.bf16.gmra.mxu0 %v798
  %v2213 = vpop.f32.mrf.mxu0
  %v2214 = vadd.f32 0.0, %v2213
  %v2215 = vpop.f32.mrf.mxu0
  %v2216 = vadd.f32 0.0, %v2215
  %v2217 = vpop.f32.mrf.mxu0
  %v2218 = vadd.f32 0.0, %v2217
  %v2219 = vpop.f32.mrf.mxu0
  %v2220 = vadd.f32 0.0, %v2219
  %2221 = vmatprep.mubr.bf16.mxu0 0
  %2222 = vmatmul.mubr.bf16.gmra.mxu0 %v799
  %v2223 = vpop.f32.mrf.mxu0
  %v2224 = vadd.f32 0.0, %v2223
  %v2225 = vpop.f32.mrf.mxu0
  %v2226 = vadd.f32 0.0, %v2225
  %v2227 = vpop.f32.mrf.mxu0
  %v2228 = vadd.f32 0.0, %v2227
  %v2229 = vpop.f32.mrf.mxu0
  %v2230 = vadd.f32 0.0, %v2229
  %2231 = vmatprep.mubr.bf16.mxu0 0
  %2232 = vmatmul.mubr.bf16.gmra.mxu0 %v800
  %v2233 = vpop.f32.mrf.mxu0
  %v2234 = vadd.f32 0.0, %v2233
  %v2235 = vpop.f32.mrf.mxu0
  %v2236 = vadd.f32 0.0, %v2235
  %v2237 = vpop.f32.mrf.mxu0
  %v2238 = vadd.f32 0.0, %v2237
  %v2239 = vpop.f32.mrf.mxu0
  %v2240 = vadd.f32 0.0, %v2239
  %2241 = vmatprep.mubr.bf16.mxu0 0
  %2242 = vmatmul.mubr.bf16.gmra.mxu0 %v801
  %v2243 = vpop.f32.mrf.mxu0
  %v2244 = vadd.f32 0.0, %v2243
  %v2245 = vpop.f32.mrf.mxu0
  %v2246 = vadd.f32 0.0, %v2245
  %v2247 = vpop.f32.mrf.mxu0
  %v2248 = vadd.f32 0.0, %v2247
  %v2249 = vpop.f32.mrf.mxu0
  %v2250 = vadd.f32 0.0, %v2249
  %2251 = vmatprep.mubr.bf16.mxu0 0
  %2252 = vmatmul.mubr.bf16.gmra.mxu0 %v802
  %v2253 = vpop.f32.mrf.mxu0
  %v2254 = vadd.f32 0.0, %v2253
  %v2255 = vpop.f32.mrf.mxu0
  %v2256 = vadd.f32 0.0, %v2255
  %v2257 = vpop.f32.mrf.mxu0
  %v2258 = vadd.f32 0.0, %v2257
  %v2259 = vpop.f32.mrf.mxu0
  %v2260 = vadd.f32 0.0, %v2259
  %2261 = vmatprep.mubr.bf16.mxu0 0
  %2262 = vmatmul.mubr.bf16.gmra.mxu0 %v803
  %v2263 = vpop.f32.mrf.mxu0
  %v2264 = vadd.f32 0.0, %v2263
  %v2265 = vpop.f32.mrf.mxu0
  %v2266 = vadd.f32 0.0, %v2265
  %v2267 = vpop.f32.mrf.mxu0
  %v2268 = vadd.f32 0.0, %v2267
  %v2269 = vpop.f32.mrf.mxu0
  %v2270 = vadd.f32 0.0, %v2269
  %2271 = vmatprep.mubr.bf16.mxu0 0
  %2272 = vmatmul.mubr.bf16.gmra.mxu0 %v804
  %v2273 = vpop.f32.mrf.mxu0
  %v2274 = vadd.f32 0.0, %v2273
  %v2275 = vpop.f32.mrf.mxu0
  %v2276 = vadd.f32 0.0, %v2275
  %v2277 = vpop.f32.mrf.mxu0
  %v2278 = vadd.f32 0.0, %v2277
  %v2279 = vpop.f32.mrf.mxu0
  %v2280 = vadd.f32 0.0, %v2279
  %2281 = vmatprep.mubr.bf16.mxu0 0
  %2282 = vmatmul.mubr.bf16.gmra.mxu0 %v805
  %v2283 = vpop.f32.mrf.mxu0
  %v2284 = vadd.f32 0.0, %v2283
  %v2285 = vpop.f32.mrf.mxu0
  %v2286 = vadd.f32 0.0, %v2285
  %v2287 = vpop.f32.mrf.mxu0
  %v2288 = vadd.f32 0.0, %v2287
  %v2289 = vpop.f32.mrf.mxu0
  %v2290 = vadd.f32 0.0, %v2289
  %2291 = vmatprep.mubr.bf16.mxu0 0
  %2292 = vmatmul.mubr.bf16.gmra.mxu0 %v806
  %v2293 = vpop.f32.mrf.mxu0
  %v2294 = vadd.f32 0.0, %v2293
  %v2295 = vpop.f32.mrf.mxu0
  %v2296 = vadd.f32 0.0, %v2295
  %v2297 = vpop.f32.mrf.mxu0
  %v2298 = vadd.f32 0.0, %v2297
  %v2299 = vpop.f32.mrf.mxu0
  %v2300 = vadd.f32 0.0, %v2299
  %2301 = vmatprep.mubr.bf16.mxu0 0
  %2302 = vmatmul.mubr.bf16.gmra.mxu0 %v807
  %v2303 = vpop.f32.mrf.mxu0
  %v2304 = vadd.f32 0.0, %v2303
  %v2305 = vpop.f32.mrf.mxu0
  %v2306 = vadd.f32 0.0, %v2305
  %v2307 = vpop.f32.mrf.mxu0
  %v2308 = vadd.f32 0.0, %v2307
  %v2309 = vpop.f32.mrf.mxu0
  %v2310 = vadd.f32 0.0, %v2309
  %2311 = vmatprep.mubr.bf16.mxu0 0
  %2312 = vmatmul.mubr.bf16.gmra.mxu0 %v808
  %v2313 = vpop.f32.mrf.mxu0
  %v2314 = vadd.f32 0.0, %v2313
  %v2315 = vpop.f32.mrf.mxu0
  %v2316 = vadd.f32 0.0, %v2315
  %v2317 = vpop.f32.mrf.mxu0
  %v2318 = vadd.f32 0.0, %v2317
  %v2319 = vpop.f32.mrf.mxu0
  %v2320 = vadd.f32 0.0, %v2319
  %2321 = vmatprep.mubr.bf16.mxu0 0
  %2322 = vmatmul.mubr.bf16.gmra.mxu0 %v1366
  %v2323 = vpop.f32.mrf.mxu0
  %v2324 = vadd.f32 0.0, %v2323
  %v2325 = vpop.f32.mrf.mxu0
  %v2326 = vadd.f32 0.0, %v2325
  %v2327 = vpop.f32.mrf.mxu0
  %v2328 = vadd.f32 0.0, %v2327
  %v2329 = vpop.f32.mrf.mxu0
  %v2330 = vadd.f32 0.0, %v2329
  %2331 = vdwg.mxu0
  %2332 = vmatprep.subr.bf16.mxu0 %v948
  %2333 = vmatpush1.bf16.msra.mxu0 %v947
  %2334 = vmatprep.subr.bf16.mxu0 %v944
  %2335 = vmatpush1.bf16.msra.mxu0 %v943
  %2336 = vmatprep.subr.bf16.mxu0 %v940
  %2337 = vmatpush1.bf16.msra.mxu0 %v939
  %2338 = vmatprep.subr.bf16.mxu0 %v936
  %2339 = vmatpush1.bf16.msra.mxu0 %v935
  %2340 = vmatprep.subr.bf16.mxu0 %v932
  %2341 = vmatpush1.bf16.msra.mxu0 %v931
  %2342 = vmatprep.subr.bf16.mxu0 %v928
  %2343 = vmatpush1.bf16.msra.mxu0 %v927
  %2344 = vmatprep.subr.bf16.mxu0 %v924
  %2345 = vmatpush1.bf16.msra.mxu0 %v923
  %2346 = vmatprep.subr.bf16.mxu0 %v920
  %2347 = vmatpush1.bf16.msra.mxu0 %v919
  %2348 = vmatprep.subr.bf16.mxu0 0
  %2349 = vmatpush2.bf16.msra.mxu0 0
  %2350 = vmatprep.subr.bf16.mxu0 0
  %2351 = vmatpush2.bf16.msra.mxu0 0
  %2352 = vmatprep.subr.bf16.mxu0 0
  %2353 = vmatpush2.bf16.msra.mxu0 0
  %2354 = vmatprep.subr.bf16.mxu0 0
  %2355 = vmatpush2.bf16.msra.mxu0 0
  %2356 = vmatprep.subr.bf16.mxu0 0
  %2357 = vmatpush2.bf16.msra.mxu0 0
  %2358 = vmatprep.subr.bf16.mxu0 0
  %2359 = vmatpush2.bf16.msra.mxu0 0
  %2360 = vmatprep.subr.bf16.mxu0 0
  %2361 = vmatpush2.bf16.msra.mxu0 0
  %2362 = vmatprep.subr.bf16.mxu0 0
  %2363 = vmatpush2.bf16.msra.mxu0 0
  %2364 = vmatprep.mubr.bf16.mxu0 0
  %2365 = vmatmul.mubr.bf16.gmra.mxu0 %v205
  %v2366 = vpop.f32.mrf.mxu0
  %v2367 = vadd.f32 %v2021, %v2366
  %v2368 = vpop.f32.mrf.mxu0
  %v2369 = vadd.f32 %v2023, %v2368
  %v2370 = vpop.f32.mrf.mxu0
  %v2371 = vadd.f32 %v2025, %v2370
  %v2372 = vpop.f32.mrf.mxu0
  %v2373 = vadd.f32 %v2027, %v2372
  %2374 = vmatprep.mubr.bf16.mxu0 0
  %2375 = vmatmul.mubr.bf16.gmra.mxu0 %v206
  %v2376 = vpop.f32.mrf.mxu0
  %v2377 = vadd.f32 %v2031, %v2376
  %v2378 = vpop.f32.mrf.mxu0
  %v2379 = vadd.f32 %v2033, %v2378
  %v2380 = vpop.f32.mrf.mxu0
  %v2381 = vadd.f32 %v2035, %v2380
  %v2382 = vpop.f32.mrf.mxu0
  %v2383 = vadd.f32 %v2037, %v2382
  %2384 = vmatprep.mubr.bf16.mxu0 0
  %2385 = vmatmul.mubr.bf16.gmra.mxu0 %v207
  %v2386 = vpop.f32.mrf.mxu0
  %v2387 = vadd.f32 %v2041, %v2386
  %v2388 = vpop.f32.mrf.mxu0
  %v2389 = vadd.f32 %v2043, %v2388
  %v2390 = vpop.f32.mrf.mxu0
  %v2391 = vadd.f32 %v2045, %v2390
  %v2392 = vpop.f32.mrf.mxu0
  %v2393 = vadd.f32 %v2047, %v2392
  %2394 = vmatprep.mubr.bf16.mxu0 0
  %2395 = vmatmul.mubr.bf16.gmra.mxu0 %v208
  %v2396 = vpop.f32.mrf.mxu0
  %v2397 = vadd.f32 %v2051, %v2396
  %v2398 = vpop.f32.mrf.mxu0
  %v2399 = vadd.f32 %v2053, %v2398
  %v2400 = vpop.f32.mrf.mxu0
  %v2401 = vadd.f32 %v2055, %v2400
  %v2402 = vpop.f32.mrf.mxu0
  %v2403 = vadd.f32 %v2057, %v2402
  %2404 = vmatprep.mubr.bf16.mxu0 0
  %2405 = vmatmul.mubr.bf16.gmra.mxu0 %v209
  %v2406 = vpop.f32.mrf.mxu0
  %v2407 = vadd.f32 %v2061, %v2406
  %v2408 = vpop.f32.mrf.mxu0
  %v2409 = vadd.f32 %v2063, %v2408
  %v2410 = vpop.f32.mrf.mxu0
  %v2411 = vadd.f32 %v2065, %v2410
  %v2412 = vpop.f32.mrf.mxu0
  %v2413 = vadd.f32 %v2067, %v2412
  %2414 = vmatprep.mubr.bf16.mxu0 0
  %2415 = vmatmul.mubr.bf16.gmra.mxu0 %v210
  %v2416 = vpop.f32.mrf.mxu0
  %v2417 = vadd.f32 %v2071, %v2416
  %v2418 = vpop.f32.mrf.mxu0
  %v2419 = vadd.f32 %v2073, %v2418
  %v2420 = vpop.f32.mrf.mxu0
  %v2421 = vadd.f32 %v2075, %v2420
  %v2422 = vpop.f32.mrf.mxu0
  %v2423 = vadd.f32 %v2077, %v2422
  %2424 = vmatprep.mubr.bf16.mxu0 0
  %2425 = vmatmul.mubr.bf16.gmra.mxu0 %v211
  %v2426 = vpop.f32.mrf.mxu0
  %v2427 = vadd.f32 %v2081, %v2426
  %v2428 = vpop.f32.mrf.mxu0
  %v2429 = vadd.f32 %v2083, %v2428
  %v2430 = vpop.f32.mrf.mxu0
  %v2431 = vadd.f32 %v2085, %v2430
  %v2432 = vpop.f32.mrf.mxu0
  %v2433 = vadd.f32 %v2087, %v2432
  %2434 = vmatprep.mubr.bf16.mxu0 0
  %2435 = vmatmul.mubr.bf16.gmra.mxu0 %v212
  %v2436 = vpop.f32.mrf.mxu0
  %v2437 = vadd.f32 %v2091, %v2436
  %v2438 = vpop.f32.mrf.mxu0
  %v2439 = vadd.f32 %v2093, %v2438
  %v2440 = vpop.f32.mrf.mxu0
  %v2441 = vadd.f32 %v2095, %v2440
  %v2442 = vpop.f32.mrf.mxu0
  %v2443 = vadd.f32 %v2097, %v2442
  %2444 = vmatprep.mubr.bf16.mxu0 0
  %2445 = vmatmul.mubr.bf16.gmra.mxu0 %v213
  %v2446 = vpop.f32.mrf.mxu0
  %v2447 = vadd.f32 %v2101, %v2446
  %v2448 = vpop.f32.mrf.mxu0
  %v2449 = vadd.f32 %v2103, %v2448
  %v2450 = vpop.f32.mrf.mxu0
  %v2451 = vadd.f32 %v2105, %v2450
  %v2452 = vpop.f32.mrf.mxu0
  %v2453 = vadd.f32 %v2107, %v2452
  %2454 = vmatprep.mubr.bf16.mxu0 0
  %2455 = vmatmul.mubr.bf16.gmra.mxu0 %v214
  %v2456 = vpop.f32.mrf.mxu0
  %v2457 = vadd.f32 %v2111, %v2456
  %v2458 = vpop.f32.mrf.mxu0
  %v2459 = vadd.f32 %v2113, %v2458
  %v2460 = vpop.f32.mrf.mxu0
  %v2461 = vadd.f32 %v2115, %v2460
  %v2462 = vpop.f32.mrf.mxu0
  %v2463 = vadd.f32 %v2117, %v2462
  %2464 = vmatprep.mubr.bf16.mxu0 0
  %2465 = vmatmul.mubr.bf16.gmra.mxu0 %v215
  %v2466 = vpop.f32.mrf.mxu0
  %v2467 = vadd.f32 %v2121, %v2466
  %v2468 = vpop.f32.mrf.mxu0
  %v2469 = vadd.f32 %v2123, %v2468
  %v2470 = vpop.f32.mrf.mxu0
  %v2471 = vadd.f32 %v2125, %v2470
  %v2472 = vpop.f32.mrf.mxu0
  %v2473 = vadd.f32 %v2127, %v2472
  %2474 = vmatprep.mubr.bf16.mxu0 0
  %2475 = vmatmul.mubr.bf16.gmra.mxu0 %v216
  %v2476 = vpop.f32.mrf.mxu0
  %v2477 = vadd.f32 %v2131, %v2476
  %v2478 = vpop.f32.mrf.mxu0
  %v2479 = vadd.f32 %v2133, %v2478
  %v2480 = vpop.f32.mrf.mxu0
  %v2481 = vadd.f32 %v2135, %v2480
  %v2482 = vpop.f32.mrf.mxu0
  %v2483 = vadd.f32 %v2137, %v2482
  %2484 = vmatprep.mubr.bf16.mxu0 0
  %2485 = vmatmul.mubr.bf16.gmra.mxu0 %v217
  %v2486 = vpop.f32.mrf.mxu0
  %v2487 = vadd.f32 %v2141, %v2486
  %v2488 = vpop.f32.mrf.mxu0
  %v2489 = vadd.f32 %v2143, %v2488
  %v2490 = vpop.f32.mrf.mxu0
  %v2491 = vadd.f32 %v2145, %v2490
  %v2492 = vpop.f32.mrf.mxu0
  %v2493 = vadd.f32 %v2147, %v2492
  %2494 = vmatprep.mubr.bf16.mxu0 0
  %2495 = vmatmul.mubr.bf16.gmra.mxu0 %v218
  %v2496 = vpop.f32.mrf.mxu0
  %v2497 = vadd.f32 %v2151, %v2496
  %v2498 = vpop.f32.mrf.mxu0
  %v2499 = vadd.f32 %v2153, %v2498
  %v2500 = vpop.f32.mrf.mxu0
  %v2501 = vadd.f32 %v2155, %v2500
  %v2502 = vpop.f32.mrf.mxu0
  %v2503 = vadd.f32 %v2157, %v2502
  %2504 = vdwg.mxu0
  %2505 = vmatprep.subr.bf16.mxu0 %v950
  %2506 = vmatpush1.bf16.msra.mxu0 %v949
  %2507 = vmatprep.subr.bf16.mxu0 %v946
  %2508 = vmatpush1.bf16.msra.mxu0 %v945
  %2509 = vmatprep.subr.bf16.mxu0 %v942
  %2510 = vmatpush1.bf16.msra.mxu0 %v941
  %2511 = vmatprep.subr.bf16.mxu0 %v938
  %2512 = vmatpush1.bf16.msra.mxu0 %v937
  %2513 = vmatprep.subr.bf16.mxu0 %v934
  %2514 = vmatpush1.bf16.msra.mxu0 %v933
  %2515 = vmatprep.subr.bf16.mxu0 %v930
  %2516 = vmatpush1.bf16.msra.mxu0 %v929
  %2517 = vmatprep.subr.bf16.mxu0 %v926
  %2518 = vmatpush1.bf16.msra.mxu0 %v925
  %2519 = vmatprep.subr.bf16.mxu0 %v922
  %2520 = vmatpush1.bf16.msra.mxu0 %v921
  %2521 = vmatprep.subr.bf16.mxu0 0
  %2522 = vmatpush2.bf16.msra.mxu0 0
  %2523 = vmatprep.subr.bf16.mxu0 0
  %2524 = vmatpush2.bf16.msra.mxu0 0
  %2525 = vmatprep.subr.bf16.mxu0 0
  %2526 = vmatpush2.bf16.msra.mxu0 0
  %2527 = vmatprep.subr.bf16.mxu0 0
  %2528 = vmatpush2.bf16.msra.mxu0 0
  %2529 = vmatprep.subr.bf16.mxu0 0
  %2530 = vmatpush2.bf16.msra.mxu0 0
  %2531 = vmatprep.subr.bf16.mxu0 0
  %2532 = vmatpush2.bf16.msra.mxu0 0
  %2533 = vmatprep.subr.bf16.mxu0 0
  %2534 = vmatpush2.bf16.msra.mxu0 0
  %2535 = vmatprep.subr.bf16.mxu0 0
  %2536 = vmatpush2.bf16.msra.mxu0 0
  %2537 = vmatprep.mubr.bf16.mxu0 0
  %2538 = vmatmul.mubr.bf16.gmra.mxu0 %v205
  %v2539 = vpop.f32.mrf.mxu0
  %v2540 = vadd.f32 %v2194, %v2539
  %v2541 = vpop.f32.mrf.mxu0
  %v2542 = vadd.f32 %v2196, %v2541
  %v2543 = vpop.f32.mrf.mxu0
  %v2544 = vadd.f32 %v2198, %v2543
  %v2545 = vpop.f32.mrf.mxu0
  %v2546 = vadd.f32 %v2200, %v2545
  %2547 = vmatprep.mubr.bf16.mxu0 0
  %2548 = vmatmul.mubr.bf16.gmra.mxu0 %v206
  %v2549 = vpop.f32.mrf.mxu0
  %v2550 = vadd.f32 %v2204, %v2549
  %v2551 = vpop.f32.mrf.mxu0
  %v2552 = vadd.f32 %v2206, %v2551
  %v2553 = vpop.f32.mrf.mxu0
  %v2554 = vadd.f32 %v2208, %v2553
  %v2555 = vpop.f32.mrf.mxu0
  %v2556 = vadd.f32 %v2210, %v2555
  %2557 = vmatprep.mubr.bf16.mxu0 0
  %2558 = vmatmul.mubr.bf16.gmra.mxu0 %v207
  %v2559 = vpop.f32.mrf.mxu0
  %v2560 = vadd.f32 %v2214, %v2559
  %v2561 = vpop.f32.mrf.mxu0
  %v2562 = vadd.f32 %v2216, %v2561
  %v2563 = vpop.f32.mrf.mxu0
  %v2564 = vadd.f32 %v2218, %v2563
  %v2565 = vpop.f32.mrf.mxu0
  %v2566 = vadd.f32 %v2220, %v2565
  %2567 = vmatprep.mubr.bf16.mxu0 0
  %2568 = vmatmul.mubr.bf16.gmra.mxu0 %v208
  %v2569 = vpop.f32.mrf.mxu0
  %v2570 = vadd.f32 %v2224, %v2569
  %v2571 = vpop.f32.mrf.mxu0
  %v2572 = vadd.f32 %v2226, %v2571
  %v2573 = vpop.f32.mrf.mxu0
  %v2574 = vadd.f32 %v2228, %v2573
  %v2575 = vpop.f32.mrf.mxu0
  %v2576 = vadd.f32 %v2230, %v2575
  %2577 = vmatprep.mubr.bf16.mxu0 0
  %2578 = vmatmul.mubr.bf16.gmra.mxu0 %v209
  %v2579 = vpop.f32.mrf.mxu0
  %v2580 = vadd.f32 %v2234, %v2579
  %v2581 = vpop.f32.mrf.mxu0
  %v2582 = vadd.f32 %v2236, %v2581
  %v2583 = vpop.f32.mrf.mxu0
  %v2584 = vadd.f32 %v2238, %v2583
  %v2585 = vpop.f32.mrf.mxu0
  %v2586 = vadd.f32 %v2240, %v2585
  %2587 = vmatprep.mubr.bf16.mxu0 0
  %2588 = vmatmul.mubr.bf16.gmra.mxu0 %v210
  %v2589 = vpop.f32.mrf.mxu0
  %v2590 = vadd.f32 %v2244, %v2589
  %v2591 = vpop.f32.mrf.mxu0
  %v2592 = vadd.f32 %v2246, %v2591
  %v2593 = vpop.f32.mrf.mxu0
  %v2594 = vadd.f32 %v2248, %v2593
  %v2595 = vpop.f32.mrf.mxu0
  %v2596 = vadd.f32 %v2250, %v2595
  %2597 = vmatprep.mubr.bf16.mxu0 0
  %2598 = vmatmul.mubr.bf16.gmra.mxu0 %v211
  %v2599 = vpop.f32.mrf.mxu0
  %v2600 = vadd.f32 %v2254, %v2599
  %v2601 = vpop.f32.mrf.mxu0
  %v2602 = vadd.f32 %v2256, %v2601
  %v2603 = vpop.f32.mrf.mxu0
  %v2604 = vadd.f32 %v2258, %v2603
  %v2605 = vpop.f32.mrf.mxu0
  %v2606 = vadd.f32 %v2260, %v2605
  %2607 = vmatprep.mubr.bf16.mxu0 0
  %2608 = vmatmul.mubr.bf16.gmra.mxu0 %v212
  %v2609 = vpop.f32.mrf.mxu0
  %v2610 = vadd.f32 %v2264, %v2609
  %v2611 = vpop.f32.mrf.mxu0
  %v2612 = vadd.f32 %v2266, %v2611
  %v2613 = vpop.f32.mrf.mxu0
  %v2614 = vadd.f32 %v2268, %v2613
  %v2615 = vpop.f32.mrf.mxu0
  %v2616 = vadd.f32 %v2270, %v2615
  %2617 = vmatprep.mubr.bf16.mxu0 0
  %2618 = vmatmul.mubr.bf16.gmra.mxu0 %v213
  %v2619 = vpop.f32.mrf.mxu0
  %v2620 = vadd.f32 %v2274, %v2619
  %v2621 = vpop.f32.mrf.mxu0
  %v2622 = vadd.f32 %v2276, %v2621
  %v2623 = vpop.f32.mrf.mxu0
  %v2624 = vadd.f32 %v2278, %v2623
  %v2625 = vpop.f32.mrf.mxu0
  %v2626 = vadd.f32 %v2280, %v2625
  %2627 = vmatprep.mubr.bf16.mxu0 0
  %2628 = vmatmul.mubr.bf16.gmra.mxu0 %v214
  %v2629 = vpop.f32.mrf.mxu0
  %v2630 = vadd.f32 %v2284, %v2629
  %v2631 = vpop.f32.mrf.mxu0
  %v2632 = vadd.f32 %v2286, %v2631
  %v2633 = vpop.f32.mrf.mxu0
  %v2634 = vadd.f32 %v2288, %v2633
  %v2635 = vpop.f32.mrf.mxu0
  %v2636 = vadd.f32 %v2290, %v2635
  %2637 = vmatprep.mubr.bf16.mxu0 0
  %2638 = vmatmul.mubr.bf16.gmra.mxu0 %v215
  %v2639 = vpop.f32.mrf.mxu0
  %v2640 = vadd.f32 %v2294, %v2639
  %v2641 = vpop.f32.mrf.mxu0
  %v2642 = vadd.f32 %v2296, %v2641
  %v2643 = vpop.f32.mrf.mxu0
  %v2644 = vadd.f32 %v2298, %v2643
  %v2645 = vpop.f32.mrf.mxu0
  %v2646 = vadd.f32 %v2300, %v2645
  %2647 = vmatprep.mubr.bf16.mxu0 0
  %2648 = vmatmul.mubr.bf16.gmra.mxu0 %v216
  %v2649 = vpop.f32.mrf.mxu0
  %v2650 = vadd.f32 %v2304, %v2649
  %v2651 = vpop.f32.mrf.mxu0
  %v2652 = vadd.f32 %v2306, %v2651
  %v2653 = vpop.f32.mrf.mxu0
  %v2654 = vadd.f32 %v2308, %v2653
  %v2655 = vpop.f32.mrf.mxu0
  %v2656 = vadd.f32 %v2310, %v2655
  %2657 = vmatprep.mubr.bf16.mxu0 0
  %2658 = vmatmul.mubr.bf16.gmra.mxu0 %v217
  %v2659 = vpop.f32.mrf.mxu0
  %v2660 = vadd.f32 %v2314, %v2659
  %v2661 = vpop.f32.mrf.mxu0
  %v2662 = vadd.f32 %v2316, %v2661
  %v2663 = vpop.f32.mrf.mxu0
  %v2664 = vadd.f32 %v2318, %v2663
  %v2665 = vpop.f32.mrf.mxu0
  %v2666 = vadd.f32 %v2320, %v2665
  %2667 = vmatprep.mubr.bf16.mxu0 0
  %2668 = vmatmul.mubr.bf16.gmra.mxu0 %v218
  %v2669 = vpop.f32.mrf.mxu0
  %v2670 = vadd.f32 %v2324, %v2669
  %v2671 = vpop.f32.mrf.mxu0
  %v2672 = vadd.f32 %v2326, %v2671
  %v2673 = vpop.f32.mrf.mxu0
  %v2674 = vadd.f32 %v2328, %v2673
  %v2675 = vpop.f32.mrf.mxu0
  %v2676 = vadd.f32 %v2330, %v2675
  %2677 = vdwg.mxu0
  %v2680 = vunpack.c.l.b16 %v82
  %v2681 = vunpack.c.l.b16 %v83
  %v2682 = vpack.c.b16 %v2681, %v2680
  %2684 = vmatprep.subr.bf16.mxu0 %v1493
  %2685 = vmatpush1.bf16.msra.mxu0 %v1492
  %2686 = vmatprep.subr.bf16.mxu0 %v1489
  %2687 = vmatpush1.bf16.msra.mxu0 %v1488
  %2688 = vmatprep.subr.bf16.mxu0 %v1485
  %2689 = vmatpush1.bf16.msra.mxu0 %v1484
  %2690 = vmatprep.subr.bf16.mxu0 %v1481
  %2691 = vmatpush1.bf16.msra.mxu0 %v1480
  %2692 = vmatprep.subr.bf16.mxu0 %v1477
  %2693 = vmatpush1.bf16.msra.mxu0 %v1476
  %2694 = vmatprep.subr.bf16.mxu0 %v1473
  %2695 = vmatpush1.bf16.msra.mxu0 %v1472
  %2696 = vmatprep.subr.bf16.mxu0 %v1469
  %2697 = vmatpush1.bf16.msra.mxu0 %v1468
  %2698 = vmatprep.subr.bf16.mxu0 %v1465
  %2699 = vmatpush1.bf16.msra.mxu0 %v1464
  %2700 = vmatprep.subr.bf16.mxu0 0
  %2701 = vmatpush2.bf16.msra.mxu0 0
  %2702 = vmatprep.subr.bf16.mxu0 0
  %2703 = vmatpush2.bf16.msra.mxu0 0
  %2704 = vmatprep.subr.bf16.mxu0 0
  %2705 = vmatpush2.bf16.msra.mxu0 0
  %2706 = vmatprep.subr.bf16.mxu0 0
  %2707 = vmatpush2.bf16.msra.mxu0 0
  %2708 = vmatprep.subr.bf16.mxu0 0
  %2709 = vmatpush2.bf16.msra.mxu0 0
  %2710 = vmatprep.subr.bf16.mxu0 0
  %2711 = vmatpush2.bf16.msra.mxu0 0
  %2712 = vmatprep.subr.bf16.mxu0 0
  %2713 = vmatpush2.bf16.msra.mxu0 0
  %2714 = vmatprep.subr.bf16.mxu0 0
  %2715 = vmatpush2.bf16.msra.mxu0 0
  %2716 = vmatprep.mubr.bf16.mxu0 0
  %2717 = vmatmul.mubr.bf16.gmra.mxu0 %v206
  %v2718 = vpop.f32.mrf.mxu0
  %v2719 = vadd.f32 0.0, %v2718
  %v2720 = vpop.f32.mrf.mxu0
  %v2721 = vadd.f32 0.0, %v2720
  %v2722 = vpop.f32.mrf.mxu0
  %v2723 = vadd.f32 0.0, %v2722
  %v2724 = vpop.f32.mrf.mxu0
  %v2725 = vadd.f32 0.0, %v2724
  %2726 = vmatprep.mubr.bf16.mxu0 0
  %2727 = vmatmul.mubr.bf16.gmra.mxu0 %v207
  %v2728 = vpop.f32.mrf.mxu0
  %v2729 = vadd.f32 0.0, %v2728
  %v2730 = vpop.f32.mrf.mxu0
  %v2731 = vadd.f32 0.0, %v2730
  %v2732 = vpop.f32.mrf.mxu0
  %v2733 = vadd.f32 0.0, %v2732
  %v2734 = vpop.f32.mrf.mxu0
  %v2735 = vadd.f32 0.0, %v2734
  %2736 = vmatprep.mubr.bf16.mxu0 0
  %2737 = vmatmul.mubr.bf16.gmra.mxu0 %v208
  %v2738 = vpop.f32.mrf.mxu0
  %v2739 = vadd.f32 0.0, %v2738
  %v2740 = vpop.f32.mrf.mxu0
  %v2741 = vadd.f32 0.0, %v2740
  %v2742 = vpop.f32.mrf.mxu0
  %v2743 = vadd.f32 0.0, %v2742
  %v2744 = vpop.f32.mrf.mxu0
  %v2745 = vadd.f32 0.0, %v2744
  %2746 = vmatprep.mubr.bf16.mxu0 0
  %2747 = vmatmul.mubr.bf16.gmra.mxu0 %v209
  %v2748 = vpop.f32.mrf.mxu0
  %v2749 = vadd.f32 0.0, %v2748
  %v2750 = vpop.f32.mrf.mxu0
  %v2751 = vadd.f32 0.0, %v2750
  %v2752 = vpop.f32.mrf.mxu0
  %v2753 = vadd.f32 0.0, %v2752
  %v2754 = vpop.f32.mrf.mxu0
  %v2755 = vadd.f32 0.0, %v2754
  %2756 = vmatprep.mubr.bf16.mxu0 0
  %2757 = vmatmul.mubr.bf16.gmra.mxu0 %v210
  %v2758 = vpop.f32.mrf.mxu0
  %v2759 = vadd.f32 0.0, %v2758
  %v2760 = vpop.f32.mrf.mxu0
  %v2761 = vadd.f32 0.0, %v2760
  %v2762 = vpop.f32.mrf.mxu0
  %v2763 = vadd.f32 0.0, %v2762
  %v2764 = vpop.f32.mrf.mxu0
  %v2765 = vadd.f32 0.0, %v2764
  %2766 = vmatprep.mubr.bf16.mxu0 0
  %2767 = vmatmul.mubr.bf16.gmra.mxu0 %v211
  %v2768 = vpop.f32.mrf.mxu0
  %v2769 = vadd.f32 0.0, %v2768
  %v2770 = vpop.f32.mrf.mxu0
  %v2771 = vadd.f32 0.0, %v2770
  %v2772 = vpop.f32.mrf.mxu0
  %v2773 = vadd.f32 0.0, %v2772
  %v2774 = vpop.f32.mrf.mxu0
  %v2775 = vadd.f32 0.0, %v2774
  %2776 = vmatprep.mubr.bf16.mxu0 0
  %2777 = vmatmul.mubr.bf16.gmra.mxu0 %v212
  %v2778 = vpop.f32.mrf.mxu0
  %v2779 = vadd.f32 0.0, %v2778
  %v2780 = vpop.f32.mrf.mxu0
  %v2781 = vadd.f32 0.0, %v2780
  %v2782 = vpop.f32.mrf.mxu0
  %v2783 = vadd.f32 0.0, %v2782
  %v2784 = vpop.f32.mrf.mxu0
  %v2785 = vadd.f32 0.0, %v2784
  %2786 = vmatprep.mubr.bf16.mxu0 0
  %2787 = vmatmul.mubr.bf16.gmra.mxu0 %v213
  %v2788 = vpop.f32.mrf.mxu0
  %v2789 = vadd.f32 0.0, %v2788
  %v2790 = vpop.f32.mrf.mxu0
  %v2791 = vadd.f32 0.0, %v2790
  %v2792 = vpop.f32.mrf.mxu0
  %v2793 = vadd.f32 0.0, %v2792
  %v2794 = vpop.f32.mrf.mxu0
  %v2795 = vadd.f32 0.0, %v2794
  %2796 = vmatprep.mubr.bf16.mxu0 0
  %2797 = vmatmul.mubr.bf16.gmra.mxu0 %v214
  %v2798 = vpop.f32.mrf.mxu0
  %v2799 = vadd.f32 0.0, %v2798
  %v2800 = vpop.f32.mrf.mxu0
  %v2801 = vadd.f32 0.0, %v2800
  %v2802 = vpop.f32.mrf.mxu0
  %v2803 = vadd.f32 0.0, %v2802
  %v2804 = vpop.f32.mrf.mxu0
  %v2805 = vadd.f32 0.0, %v2804
  %2806 = vmatprep.mubr.bf16.mxu0 0
  %2807 = vmatmul.mubr.bf16.gmra.mxu0 %v215
  %v2808 = vpop.f32.mrf.mxu0
  %v2809 = vadd.f32 0.0, %v2808
  %v2810 = vpop.f32.mrf.mxu0
  %v2811 = vadd.f32 0.0, %v2810
  %v2812 = vpop.f32.mrf.mxu0
  %v2813 = vadd.f32 0.0, %v2812
  %v2814 = vpop.f32.mrf.mxu0
  %v2815 = vadd.f32 0.0, %v2814
  %2816 = vmatprep.mubr.bf16.mxu0 0
  %2817 = vmatmul.mubr.bf16.gmra.mxu0 %v216
  %v2818 = vpop.f32.mrf.mxu0
  %v2819 = vadd.f32 0.0, %v2818
  %v2820 = vpop.f32.mrf.mxu0
  %v2821 = vadd.f32 0.0, %v2820
  %v2822 = vpop.f32.mrf.mxu0
  %v2823 = vadd.f32 0.0, %v2822
  %v2824 = vpop.f32.mrf.mxu0
  %v2825 = vadd.f32 0.0, %v2824
  %2826 = vmatprep.mubr.bf16.mxu0 0
  %2827 = vmatmul.mubr.bf16.gmra.mxu0 %v217
  %v2828 = vpop.f32.mrf.mxu0
  %v2829 = vadd.f32 0.0, %v2828
  %v2830 = vpop.f32.mrf.mxu0
  %v2831 = vadd.f32 0.0, %v2830
  %v2832 = vpop.f32.mrf.mxu0
  %v2833 = vadd.f32 0.0, %v2832
  %v2834 = vpop.f32.mrf.mxu0
  %v2835 = vadd.f32 0.0, %v2834
  %2836 = vmatprep.mubr.bf16.mxu0 0
  %2837 = vmatmul.mubr.bf16.gmra.mxu0 %v218
  %v2838 = vpop.f32.mrf.mxu0
  %v2839 = vadd.f32 0.0, %v2838
  %v2840 = vpop.f32.mrf.mxu0
  %v2841 = vadd.f32 0.0, %v2840
  %v2842 = vpop.f32.mrf.mxu0
  %v2843 = vadd.f32 0.0, %v2842
  %v2844 = vpop.f32.mrf.mxu0
  %v2845 = vadd.f32 0.0, %v2844
  %2846 = vmatprep.mubr.bf16.mxu0 0
  %2847 = vmatmul.mubr.bf16.gmra.mxu0 %v2682
  %v2848 = vpop.f32.mrf.mxu0
  %v2849 = vadd.f32 0.0, %v2848
  %v2850 = vpop.f32.mrf.mxu0
  %v2851 = vadd.f32 0.0, %v2850
  %v2852 = vpop.f32.mrf.mxu0
  %v2853 = vadd.f32 0.0, %v2852
  %v2854 = vpop.f32.mrf.mxu0
  %v2855 = vadd.f32 0.0, %v2854
  %2856 = vdwg.mxu0
  %2857 = vmatprep.subr.bf16.mxu0 %v1495
  %2858 = vmatpush1.bf16.msra.mxu0 %v1494
  %2859 = vmatprep.subr.bf16.mxu0 %v1491
  %2860 = vmatpush1.bf16.msra.mxu0 %v1490
  %2861 = vmatprep.subr.bf16.mxu0 %v1487
  %2862 = vmatpush1.bf16.msra.mxu0 %v1486
  %2863 = vmatprep.subr.bf16.mxu0 %v1483
  %2864 = vmatpush1.bf16.msra.mxu0 %v1482
  %2865 = vmatprep.subr.bf16.mxu0 %v1479
  %2866 = vmatpush1.bf16.msra.mxu0 %v1478
  %2867 = vmatprep.subr.bf16.mxu0 %v1475
  %2868 = vmatpush1.bf16.msra.mxu0 %v1474
  %2869 = vmatprep.subr.bf16.mxu0 %v1471
  %2870 = vmatpush1.bf16.msra.mxu0 %v1470
  %2871 = vmatprep.subr.bf16.mxu0 %v1467
  %2872 = vmatpush1.bf16.msra.mxu0 %v1466
  %2873 = vmatprep.subr.bf16.mxu0 0
  %2874 = vmatpush2.bf16.msra.mxu0 0
  %2875 = vmatprep.subr.bf16.mxu0 0
  %2876 = vmatpush2.bf16.msra.mxu0 0
  %2877 = vmatprep.subr.bf16.mxu0 0
  %2878 = vmatpush2.bf16.msra.mxu0 0
  %2879 = vmatprep.subr.bf16.mxu0 0
  %2880 = vmatpush2.bf16.msra.mxu0 0
  %2881 = vmatprep.subr.bf16.mxu0 0
  %2882 = vmatpush2.bf16.msra.mxu0 0
  %2883 = vmatprep.subr.bf16.mxu0 0
  %2884 = vmatpush2.bf16.msra.mxu0 0
  %2885 = vmatprep.subr.bf16.mxu0 0
  %2886 = vmatpush2.bf16.msra.mxu0 0
  %2887 = vmatprep.subr.bf16.mxu0 0
  %2888 = vmatpush2.bf16.msra.mxu0 0
  %2889 = vmatprep.mubr.bf16.mxu0 0
  %2890 = vmatmul.mubr.bf16.gmra.mxu0 %v206
  %v2891 = vpop.f32.mrf.mxu0
  %v2892 = vadd.f32 0.0, %v2891
  %v2893 = vpop.f32.mrf.mxu0
  %v2894 = vadd.f32 0.0, %v2893
  %v2895 = vpop.f32.mrf.mxu0
  %v2896 = vadd.f32 0.0, %v2895
  %v2897 = vpop.f32.mrf.mxu0
  %v2898 = vadd.f32 0.0, %v2897
  %2899 = vmatprep.mubr.bf16.mxu0 0
  %2900 = vmatmul.mubr.bf16.gmra.mxu0 %v207
  %v2901 = vpop.f32.mrf.mxu0
  %v2902 = vadd.f32 0.0, %v2901
  %v2903 = vpop.f32.mrf.mxu0
  %v2904 = vadd.f32 0.0, %v2903
  %v2905 = vpop.f32.mrf.mxu0
  %v2906 = vadd.f32 0.0, %v2905
  %v2907 = vpop.f32.mrf.mxu0
  %v2908 = vadd.f32 0.0, %v2907
  %2909 = vmatprep.mubr.bf16.mxu0 0
  %2910 = vmatmul.mubr.bf16.gmra.mxu0 %v208
  %v2911 = vpop.f32.mrf.mxu0
  %v2912 = vadd.f32 0.0, %v2911
  %v2913 = vpop.f32.mrf.mxu0
  %v2914 = vadd.f32 0.0, %v2913
  %v2915 = vpop.f32.mrf.mxu0
  %v2916 = vadd.f32 0.0, %v2915
  %v2917 = vpop.f32.mrf.mxu0
  %v2918 = vadd.f32 0.0, %v2917
  %2919 = vmatprep.mubr.bf16.mxu0 0
  %2920 = vmatmul.mubr.bf16.gmra.mxu0 %v209
  %v2921 = vpop.f32.mrf.mxu0
  %v2922 = vadd.f32 0.0, %v2921
  %v2923 = vpop.f32.mrf.mxu0
  %v2924 = vadd.f32 0.0, %v2923
  %v2925 = vpop.f32.mrf.mxu0
  %v2926 = vadd.f32 0.0, %v2925
  %v2927 = vpop.f32.mrf.mxu0
  %v2928 = vadd.f32 0.0, %v2927
  %2929 = vmatprep.mubr.bf16.mxu0 0
  %2930 = vmatmul.mubr.bf16.gmra.mxu0 %v210
  %v2931 = vpop.f32.mrf.mxu0
  %v2932 = vadd.f32 0.0, %v2931
  %v2933 = vpop.f32.mrf.mxu0
  %v2934 = vadd.f32 0.0, %v2933
  %v2935 = vpop.f32.mrf.mxu0
  %v2936 = vadd.f32 0.0, %v2935
  %v2937 = vpop.f32.mrf.mxu0
  %v2938 = vadd.f32 0.0, %v2937
  %2939 = vmatprep.mubr.bf16.mxu0 0
  %2940 = vmatmul.mubr.bf16.gmra.mxu0 %v211
  %v2941 = vpop.f32.mrf.mxu0
  %v2942 = vadd.f32 0.0, %v2941
  %v2943 = vpop.f32.mrf.mxu0
  %v2944 = vadd.f32 0.0, %v2943
  %v2945 = vpop.f32.mrf.mxu0
  %v2946 = vadd.f32 0.0, %v2945
  %v2947 = vpop.f32.mrf.mxu0
  %v2948 = vadd.f32 0.0, %v2947
  %2949 = vmatprep.mubr.bf16.mxu0 0
  %2950 = vmatmul.mubr.bf16.gmra.mxu0 %v212
  %v2951 = vpop.f32.mrf.mxu0
  %v2952 = vadd.f32 0.0, %v2951
  %v2953 = vpop.f32.mrf.mxu0
  %v2954 = vadd.f32 0.0, %v2953
  %v2955 = vpop.f32.mrf.mxu0
  %v2956 = vadd.f32 0.0, %v2955
  %v2957 = vpop.f32.mrf.mxu0
  %v2958 = vadd.f32 0.0, %v2957
  %2959 = vmatprep.mubr.bf16.mxu0 0
  %2960 = vmatmul.mubr.bf16.gmra.mxu0 %v213
  %v2961 = vpop.f32.mrf.mxu0
  %v2962 = vadd.f32 0.0, %v2961
  %v2963 = vpop.f32.mrf.mxu0
  %v2964 = vadd.f32 0.0, %v2963
  %v2965 = vpop.f32.mrf.mxu0
  %v2966 = vadd.f32 0.0, %v2965
  %v2967 = vpop.f32.mrf.mxu0
  %v2968 = vadd.f32 0.0, %v2967
  %2969 = vmatprep.mubr.bf16.mxu0 0
  %2970 = vmatmul.mubr.bf16.gmra.mxu0 %v214
  %v2971 = vpop.f32.mrf.mxu0
  %v2972 = vadd.f32 0.0, %v2971
  %v2973 = vpop.f32.mrf.mxu0
  %v2974 = vadd.f32 0.0, %v2973
  %v2975 = vpop.f32.mrf.mxu0
  %v2976 = vadd.f32 0.0, %v2975
  %v2977 = vpop.f32.mrf.mxu0
  %v2978 = vadd.f32 0.0, %v2977
  %2979 = vmatprep.mubr.bf16.mxu0 0
  %2980 = vmatmul.mubr.bf16.gmra.mxu0 %v215
  %v2981 = vpop.f32.mrf.mxu0
  %v2982 = vadd.f32 0.0, %v2981
  %v2983 = vpop.f32.mrf.mxu0
  %v2984 = vadd.f32 0.0, %v2983
  %v2985 = vpop.f32.mrf.mxu0
  %v2986 = vadd.f32 0.0, %v2985
  %v2987 = vpop.f32.mrf.mxu0
  %v2988 = vadd.f32 0.0, %v2987
  %2989 = vmatprep.mubr.bf16.mxu0 0
  %2990 = vmatmul.mubr.bf16.gmra.mxu0 %v216
  %v2991 = vpop.f32.mrf.mxu0
  %v2992 = vadd.f32 0.0, %v2991
  %v2993 = vpop.f32.mrf.mxu0
  %v2994 = vadd.f32 0.0, %v2993
  %v2995 = vpop.f32.mrf.mxu0
  %v2996 = vadd.f32 0.0, %v2995
  %v2997 = vpop.f32.mrf.mxu0
  %v2998 = vadd.f32 0.0, %v2997
  %2999 = vmatprep.mubr.bf16.mxu0 0
  %3000 = vmatmul.mubr.bf16.gmra.mxu0 %v217
  %v3001 = vpop.f32.mrf.mxu0
  %v3002 = vadd.f32 0.0, %v3001
  %v3003 = vpop.f32.mrf.mxu0
  %v3004 = vadd.f32 0.0, %v3003
  %v3005 = vpop.f32.mrf.mxu0
  %v3006 = vadd.f32 0.0, %v3005
  %v3007 = vpop.f32.mrf.mxu0
  %v3008 = vadd.f32 0.0, %v3007
  %3009 = vmatprep.mubr.bf16.mxu0 0
  %3010 = vmatmul.mubr.bf16.gmra.mxu0 %v218
  %v3011 = vpop.f32.mrf.mxu0
  %v3012 = vadd.f32 0.0, %v3011
  %v3013 = vpop.f32.mrf.mxu0
  %v3014 = vadd.f32 0.0, %v3013
  %v3015 = vpop.f32.mrf.mxu0
  %v3016 = vadd.f32 0.0, %v3015
  %v3017 = vpop.f32.mrf.mxu0
  %v3018 = vadd.f32 0.0, %v3017
  %3019 = vmatprep.mubr.bf16.mxu0 0
  %3020 = vmatmul.mubr.bf16.gmra.mxu0 %v2682
  %v3021 = vpop.f32.mrf.mxu0
  %v3022 = vadd.f32 0.0, %v3021
  %v3023 = vpop.f32.mrf.mxu0
  %v3024 = vadd.f32 0.0, %v3023
  %v3025 = vpop.f32.mrf.mxu0
  %v3026 = vadd.f32 0.0, %v3025
  %v3027 = vpop.f32.mrf.mxu0
  %v3028 = vadd.f32 0.0, %v3027
  %3029 = vdwg.mxu0
  %v3030 = vadd.f32 %v2367, %v2719
  %v3031 = vadd.f32 %v2369, %v2721
  %v3032 = vadd.f32 %v2540, %v2892
  %v3033 = vadd.f32 %v2542, %v2894
  %v3034 = vadd.f32 %v2371, %v2723
  %v3035 = vadd.f32 %v2373, %v2725
  %v3036 = vadd.f32 %v2544, %v2896
  %v3037 = vadd.f32 %v2546, %v2898
  %v3038 = vadd.f32 %v2377, %v2729
  %v3039 = vadd.f32 %v2379, %v2731
  %v3040 = vadd.f32 %v2550, %v2902
  %v3041 = vadd.f32 %v2552, %v2904
  %v3042 = vadd.f32 %v2381, %v2733
  %v3043 = vadd.f32 %v2383, %v2735
  %v3044 = vadd.f32 %v2554, %v2906
  %v3045 = vadd.f32 %v2556, %v2908
  %v3046 = vadd.f32 %v2387, %v2739
  %v3047 = vadd.f32 %v2389, %v2741
  %v3048 = vadd.f32 %v2560, %v2912
  %v3049 = vadd.f32 %v2562, %v2914
  %v3050 = vadd.f32 %v2391, %v2743
  %v3051 = vadd.f32 %v2393, %v2745
  %v3052 = vadd.f32 %v2564, %v2916
  %v3053 = vadd.f32 %v2566, %v2918
  %v3054 = vadd.f32 %v2397, %v2749
  %v3055 = vadd.f32 %v2399, %v2751
  %v3056 = vadd.f32 %v2570, %v2922
  %v3057 = vadd.f32 %v2572, %v2924
  %v3058 = vadd.f32 %v2401, %v2753
  %v3059 = vadd.f32 %v2403, %v2755
  %v3060 = vadd.f32 %v2574, %v2926
  %v3061 = vadd.f32 %v2576, %v2928
  %v3062 = vadd.f32 %v2407, %v2759
  %v3063 = vadd.f32 %v2409, %v2761
  %v3064 = vadd.f32 %v2580, %v2932
  %v3065 = vadd.f32 %v2582, %v2934
  %v3066 = vadd.f32 %v2411, %v2763
  %v3067 = vadd.f32 %v2413, %v2765
  %v3068 = vadd.f32 %v2584, %v2936
  %v3069 = vadd.f32 %v2586, %v2938
  %v3070 = vadd.f32 %v2417, %v2769
  %v3071 = vadd.f32 %v2419, %v2771
  %v3072 = vadd.f32 %v2590, %v2942
  %v3073 = vadd.f32 %v2592, %v2944
  %v3074 = vadd.f32 %v2421, %v2773
  %v3075 = vadd.f32 %v2423, %v2775
  %v3076 = vadd.f32 %v2594, %v2946
  %v3077 = vadd.f32 %v2596, %v2948
  %v3078 = vadd.f32 %v2427, %v2779
  %v3079 = vadd.f32 %v2429, %v2781
  %v3080 = vadd.f32 %v2600, %v2952
  %v3081 = vadd.f32 %v2602, %v2954
  %v3082 = vadd.f32 %v2431, %v2783
  %v3083 = vadd.f32 %v2433, %v2785
  %v3084 = vadd.f32 %v2604, %v2956
  %v3085 = vadd.f32 %v2606, %v2958
  %v3086 = vadd.f32 %v2437, %v2789
  %v3087 = vadd.f32 %v2439, %v2791
  %v3088 = vadd.f32 %v2610, %v2962
  %v3089 = vadd.f32 %v2612, %v2964
  %v3090 = vadd.f32 %v2441, %v2793
  %v3091 = vadd.f32 %v2443, %v2795
  %v3092 = vadd.f32 %v2614, %v2966
  %v3093 = vadd.f32 %v2616, %v2968
  %v3094 = vadd.f32 %v2447, %v2799
  %v3095 = vadd.f32 %v2449, %v2801
  %v3096 = vadd.f32 %v2620, %v2972
  %v3097 = vadd.f32 %v2622, %v2974
  %v3098 = vadd.f32 %v2451, %v2803
  %v3099 = vadd.f32 %v2453, %v2805
  %v3100 = vadd.f32 %v2624, %v2976
  %v3101 = vadd.f32 %v2626, %v2978
  %v3102 = vadd.f32 %v2457, %v2809
  %v3103 = vadd.f32 %v2459, %v2811
  %v3104 = vadd.f32 %v2630, %v2982
  %v3105 = vadd.f32 %v2632, %v2984
  %v3106 = vadd.f32 %v2461, %v2813
  %v3107 = vadd.f32 %v2463, %v2815
  %v3108 = vadd.f32 %v2634, %v2986
  %v3109 = vadd.f32 %v2636, %v2988
  %v3110 = vadd.f32 %v2467, %v2819
  %v3111 = vadd.f32 %v2469, %v2821
  %v3112 = vadd.f32 %v2640, %v2992
  %v3113 = vadd.f32 %v2642, %v2994
  %v3114 = vadd.f32 %v2471, %v2823
  %v3115 = vadd.f32 %v2473, %v2825
  %v3116 = vadd.f32 %v2644, %v2996
  %v3117 = vadd.f32 %v2646, %v2998
  %v3118 = vadd.f32 %v2477, %v2829
  %v3119 = vadd.f32 %v2479, %v2831
  %v3120 = vadd.f32 %v2650, %v3002
  %v3121 = vadd.f32 %v2652, %v3004
  %v3122 = vadd.f32 %v2481, %v2833
  %v3123 = vadd.f32 %v2483, %v2835
  %v3124 = vadd.f32 %v2654, %v3006
  %v3125 = vadd.f32 %v2656, %v3008
  %v3126 = vadd.f32 %v2487, %v2839
  %v3127 = vadd.f32 %v2489, %v2841
  %v3128 = vadd.f32 %v2660, %v3012
  %v3129 = vadd.f32 %v2662, %v3014
  %v3130 = vadd.f32 %v2491, %v2843
  %v3131 = vadd.f32 %v2493, %v2845
  %v3132 = vadd.f32 %v2664, %v3016
  %v3133 = vadd.f32 %v2666, %v3018
  %v3134 = vadd.f32 %v2497, %v2849
  %v3135 = vadd.f32 %v2499, %v2851
  %v3136 = vadd.f32 %v2670, %v3022
  %v3137 = vadd.f32 %v2672, %v3024
  %v3138 = vadd.f32 %v2501, %v2853
  %v3139 = vadd.f32 %v2503, %v2855
  %v3140 = vadd.f32 %v2674, %v3026
  %v3141 = vadd.f32 %v2676, %v3028
  %v3142 = vmax.f32 %v1874, %v3030
  %v3143 = vmax.f32 %v1875, %v3031
  %v3144 = vmax.f32 %v1876, %v3032
  %v3145 = vmax.f32 %v1877, %v3033
  %v3146 = vmax.f32 %v1878, %v3034
  %v3147 = vmax.f32 %v1879, %v3035
  %v3148 = vmax.f32 %v1880, %v3036
  %v3149 = vmax.f32 %v1881, %v3037
  %v3150 = vmax.f32 %v1882, %v3038
  %v3151 = vmax.f32 %v1883, %v3039
  %v3152 = vmax.f32 %v1884, %v3040
  %v3153 = vmax.f32 %v1885, %v3041
  %v3154 = vmax.f32 %v1886, %v3042
  %v3155 = vmax.f32 %v1887, %v3043
  %v3156 = vmax.f32 %v1888, %v3044
  %v3157 = vmax.f32 %v1889, %v3045
  %v3158 = vmax.f32 %v1890, %v3046
  %v3159 = vmax.f32 %v1891, %v3047
  %v3160 = vmax.f32 %v1892, %v3048
  %v3161 = vmax.f32 %v1893, %v3049
  %v3162 = vmax.f32 %v1894, %v3050
  %v3163 = vmax.f32 %v1895, %v3051
  %v3164 = vmax.f32 %v1896, %v3052
  %v3165 = vmax.f32 %v1897, %v3053
  %v3166 = vmax.f32 %v1898, %v3054
  %v3167 = vmax.f32 %v1899, %v3055
  %v3168 = vmax.f32 %v1900, %v3056
  %v3169 = vmax.f32 %v1901, %v3057
  %v3170 = vmax.f32 %v1902, %v3058
  %v3171 = vmax.f32 %v1903, %v3059
  %v3172 = vmax.f32 %v1904, %v3060
  %v3173 = vmax.f32 %v1905, %v3061
  %v3174 = vmax.f32 %v1906, %v3062
  %v3175 = vmax.f32 %v1907, %v3063
  %v3176 = vmax.f32 %v1908, %v3064
  %v3177 = vmax.f32 %v1909, %v3065
  %v3178 = vmax.f32 %v1910, %v3066
  %v3179 = vmax.f32 %v1911, %v3067
  %v3180 = vmax.f32 %v1912, %v3068
  %v3181 = vmax.f32 %v1913, %v3069
  %v3182 = vmax.f32 %v1914, %v3070
  %v3183 = vmax.f32 %v1915, %v3071
  %v3184 = vmax.f32 %v1916, %v3072
  %v3185 = vmax.f32 %v1917, %v3073
  %v3186 = vmax.f32 %v1918, %v3074
  %v3187 = vmax.f32 %v1919, %v3075
  %v3188 = vmax.f32 %v1920, %v3076
  %v3189 = vmax.f32 %v1921, %v3077
  %v3190 = vmax.f32 %v1922, %v3078
  %v3191 = vmax.f32 %v1923, %v3079
  %v3192 = vmax.f32 %v1924, %v3080
  %v3193 = vmax.f32 %v1925, %v3081
  %v3194 = vmax.f32 %v1926, %v3082
  %v3195 = vmax.f32 %v1927, %v3083
  %v3196 = vmax.f32 %v1928, %v3084
  %v3197 = vmax.f32 %v1929, %v3085
  %v3198 = vmax.f32 %v1930, %v3086
  %v3199 = vmax.f32 %v1931, %v3087
  %v3200 = vmax.f32 %v1932, %v3088
  %v3201 = vmax.f32 %v1933, %v3089
  %v3202 = vmax.f32 %v1934, %v3090
  %v3203 = vmax.f32 %v1935, %v3091
  %v3204 = vmax.f32 %v1936, %v3092
  %v3205 = vmax.f32 %v1937, %v3093
  %v3206 = vmax.f32 %v1938, %v3094
  %v3207 = vmax.f32 %v1939, %v3095
  %v3208 = vmax.f32 %v1940, %v3096
  %v3209 = vmax.f32 %v1941, %v3097
  %v3210 = vmax.f32 %v1942, %v3098
  %v3211 = vmax.f32 %v1943, %v3099
  %v3212 = vmax.f32 %v1944, %v3100
  %v3213 = vmax.f32 %v1945, %v3101
  %v3214 = vmax.f32 %v1946, %v3102
  %v3215 = vmax.f32 %v1947, %v3103
  %v3216 = vmax.f32 %v1948, %v3104
  %v3217 = vmax.f32 %v1949, %v3105
  %v3218 = vmax.f32 %v1950, %v3106
  %v3219 = vmax.f32 %v1951, %v3107
  %v3220 = vmax.f32 %v1952, %v3108
  %v3221 = vmax.f32 %v1953, %v3109
  %v3222 = vmax.f32 %v1954, %v3110
  %v3223 = vmax.f32 %v1955, %v3111
  %v3224 = vmax.f32 %v1956, %v3112
  %v3225 = vmax.f32 %v1957, %v3113
  %v3226 = vmax.f32 %v1958, %v3114
  %v3227 = vmax.f32 %v1959, %v3115
  %v3228 = vmax.f32 %v1960, %v3116
  %v3229 = vmax.f32 %v1961, %v3117
  %v3230 = vmax.f32 %v1962, %v3118
  %v3231 = vmax.f32 %v1963, %v3119
  %v3232 = vmax.f32 %v1964, %v3120
  %v3233 = vmax.f32 %v1965, %v3121
  %v3234 = vmax.f32 %v1966, %v3122
  %v3235 = vmax.f32 %v1967, %v3123
  %v3236 = vmax.f32 %v1968, %v3124
  %v3237 = vmax.f32 %v1969, %v3125
  %v3238 = vmax.f32 %v1970, %v3126
  %v3239 = vmax.f32 %v1971, %v3127
  %v3240 = vmax.f32 %v1972, %v3128
  %v3241 = vmax.f32 %v1973, %v3129
  %v3242 = vmax.f32 %v1974, %v3130
  %v3243 = vmax.f32 %v1975, %v3131
  %v3244 = vmax.f32 %v1976, %v3132
  %v3245 = vmax.f32 %v1977, %v3133
  %v3246 = vmax.f32 %v1978, %v3134
  %v3247 = vmax.f32 %v1979, %v3135
  %v3248 = vmax.f32 %v1980, %v3136
  %v3249 = vmax.f32 %v1981, %v3137
  %v3250 = vmax.f32 %v1982, %v3138
  %v3251 = vmax.f32 %v1983, %v3139
  %v3252 = vmax.f32 %v1984, %v3140
  %v3253 = vmax.f32 %v1985, %v3141
  %v3254 = vmax.f32 %v3142, 0.0
  %v3255 = vmax.f32 %v3143, 0.0
  %v3256 = vmax.f32 %v3144, 0.0
  %v3257 = vmax.f32 %v3145, 0.0
  %v3258 = vmax.f32 %v3146, 0.0
  %v3259 = vmax.f32 %v3147, 0.0
  %v3260 = vmax.f32 %v3148, 0.0
  %v3261 = vmax.f32 %v3149, 0.0
  %v3262 = vmax.f32 %v3150, 0.0
  %v3263 = vmax.f32 %v3151, 0.0
  %v3264 = vmax.f32 %v3152, 0.0
  %v3265 = vmax.f32 %v3153, 0.0
  %v3266 = vmax.f32 %v3154, 0.0
  %v3267 = vmax.f32 %v3155, 0.0
  %v3268 = vmax.f32 %v3156, 0.0
  %v3269 = vmax.f32 %v3157, 0.0
  %v3270 = vmax.f32 %v3158, 0.0
  %v3271 = vmax.f32 %v3159, 0.0
  %v3272 = vmax.f32 %v3160, 0.0
  %v3273 = vmax.f32 %v3161, 0.0
  %v3274 = vmax.f32 %v3162, 0.0
  %v3275 = vmax.f32 %v3163, 0.0
  %v3276 = vmax.f32 %v3164, 0.0
  %v3277 = vmax.f32 %v3165, 0.0
  %v3278 = vmax.f32 %v3166, 0.0
  %v3279 = vmax.f32 %v3167, 0.0
  %v3280 = vmax.f32 %v3168, 0.0
  %v3281 = vmax.f32 %v3169, 0.0
  %v3282 = vmax.f32 %v3170, 0.0
  %v3283 = vmax.f32 %v3171, 0.0
  %v3284 = vmax.f32 %v3172, 0.0
  %v3285 = vmax.f32 %v3173, 0.0
  %v3286 = vmax.f32 %v3174, 0.0
  %v3287 = vmax.f32 %v3175, 0.0
  %v3288 = vmax.f32 %v3176, 0.0
  %v3289 = vmax.f32 %v3177, 0.0
  %v3290 = vmax.f32 %v3178, 0.0
  %v3291 = vmax.f32 %v3179, 0.0
  %v3292 = vmax.f32 %v3180, 0.0
  %v3293 = vmax.f32 %v3181, 0.0
  %v3294 = vmax.f32 %v3182, 0.0
  %v3295 = vmax.f32 %v3183, 0.0
  %v3296 = vmax.f32 %v3184, 0.0
  %v3297 = vmax.f32 %v3185, 0.0
  %v3298 = vmax.f32 %v3186, 0.0
  %v3299 = vmax.f32 %v3187, 0.0
  %v3300 = vmax.f32 %v3188, 0.0
  %v3301 = vmax.f32 %v3189, 0.0
  %v3302 = vmax.f32 %v3190, 0.0
  %v3303 = vmax.f32 %v3191, 0.0
  %v3304 = vmax.f32 %v3192, 0.0
  %v3305 = vmax.f32 %v3193, 0.0
  %v3306 = vmax.f32 %v3194, 0.0
  %v3307 = vmax.f32 %v3195, 0.0
  %v3308 = vmax.f32 %v3196, 0.0
  %v3309 = vmax.f32 %v3197, 0.0
  %v3310 = vmax.f32 %v3198, 0.0
  %v3311 = vmax.f32 %v3199, 0.0
  %v3312 = vmax.f32 %v3200, 0.0
  %v3313 = vmax.f32 %v3201, 0.0
  %v3314 = vmax.f32 %v3202, 0.0
  %v3315 = vmax.f32 %v3203, 0.0
  %v3316 = vmax.f32 %v3204, 0.0
  %v3317 = vmax.f32 %v3205, 0.0
  %v3318 = vmax.f32 %v3206, 0.0
  %v3319 = vmax.f32 %v3207, 0.0
  %v3320 = vmax.f32 %v3208, 0.0
  %v3321 = vmax.f32 %v3209, 0.0
  %v3322 = vmax.f32 %v3210, 0.0
  %v3323 = vmax.f32 %v3211, 0.0
  %v3324 = vmax.f32 %v3212, 0.0
  %v3325 = vmax.f32 %v3213, 0.0
  %v3326 = vmax.f32 %v3214, 0.0
  %v3327 = vmax.f32 %v3215, 0.0
  %v3328 = vmax.f32 %v3216, 0.0
  %v3329 = vmax.f32 %v3217, 0.0
  %v3330 = vmax.f32 %v3218, 0.0
  %v3331 = vmax.f32 %v3219, 0.0
  %v3332 = vmax.f32 %v3220, 0.0
  %v3333 = vmax.f32 %v3221, 0.0
  %v3334 = vmax.f32 %v3222, 0.0
  %v3335 = vmax.f32 %v3223, 0.0
  %v3336 = vmax.f32 %v3224, 0.0
  %v3337 = vmax.f32 %v3225, 0.0
  %v3338 = vmax.f32 %v3226, 0.0
  %v3339 = vmax.f32 %v3227, 0.0
  %v3340 = vmax.f32 %v3228, 0.0
  %v3341 = vmax.f32 %v3229, 0.0
  %v3342 = vmax.f32 %v3230, 0.0
  %v3343 = vmax.f32 %v3231, 0.0
  %v3344 = vmax.f32 %v3232, 0.0
  %v3345 = vmax.f32 %v3233, 0.0
  %v3346 = vmax.f32 %v3234, 0.0
  %v3347 = vmax.f32 %v3235, 0.0
  %v3348 = vmax.f32 %v3236, 0.0
  %v3349 = vmax.f32 %v3237, 0.0
  %v3350 = vmax.f32 %v3238, 0.0
  %v3351 = vmax.f32 %v3239, 0.0
  %v3352 = vmax.f32 %v3240, 0.0
  %v3353 = vmax.f32 %v3241, 0.0
  %v3354 = vmax.f32 %v3242, 0.0
  %v3355 = vmax.f32 %v3243, 0.0
  %v3356 = vmax.f32 %v3244, 0.0
  %v3357 = vmax.f32 %v3245, 0.0
  %v3358 = vmax.f32 %v3246, 0.0
  %v3359 = vmax.f32 %v3247, 0.0
  %v3360 = vmax.f32 %v3248, 0.0
  %v3361 = vmax.f32 %v3249, 0.0
  %v3362 = vmax.f32 %v3250, 0.0
  %v3363 = vmax.f32 %v3251, 0.0
  %v3364 = vmax.f32 %v3252, 0.0
  %v3365 = vmax.f32 %v3253, 0.0
  %v3366 = vmax.f32 %v3254, %v3256
  %v3367 = vmax.f32 %v3255, %v3257
  %v3368 = vmax.f32 %v3258, %v3260
  %v3369 = vmax.f32 %v3259, %v3261
  %v3370 = vmax.f32 %v3262, %v3264
  %v3371 = vmax.f32 %v3263, %v3265
  %v3372 = vmax.f32 %v3266, %v3268
  %v3373 = vmax.f32 %v3267, %v3269
  %v3374 = vmax.f32 %v3270, %v3272
  %v3375 = vmax.f32 %v3271, %v3273
  %v3376 = vmax.f32 %v3274, %v3276
  %v3377 = vmax.f32 %v3275, %v3277
  %v3378 = vmax.f32 %v3278, %v3280
  %v3379 = vmax.f32 %v3279, %v3281
  %v3380 = vmax.f32 %v3282, %v3284
  %v3381 = vmax.f32 %v3283, %v3285
  %v3382 = vmax.f32 %v3286, %v3288
  %v3383 = vmax.f32 %v3287, %v3289
  %v3384 = vmax.f32 %v3290, %v3292
  %v3385 = vmax.f32 %v3291, %v3293
  %v3386 = vmax.f32 %v3294, %v3296
  %v3387 = vmax.f32 %v3295, %v3297
  %v3388 = vmax.f32 %v3298, %v3300
  %v3389 = vmax.f32 %v3299, %v3301
  %v3390 = vmax.f32 %v3302, %v3304
  %v3391 = vmax.f32 %v3303, %v3305
  %v3392 = vmax.f32 %v3306, %v3308
  %v3393 = vmax.f32 %v3307, %v3309
  %v3394 = vmax.f32 %v3310, %v3312
  %v3395 = vmax.f32 %v3311, %v3313
  %v3396 = vmax.f32 %v3314, %v3316
  %v3397 = vmax.f32 %v3315, %v3317
  %v3398 = vmax.f32 %v3318, %v3320
  %v3399 = vmax.f32 %v3319, %v3321
  %v3400 = vmax.f32 %v3322, %v3324
  %v3401 = vmax.f32 %v3323, %v3325
  %v3402 = vmax.f32 %v3326, %v3328
  %v3403 = vmax.f32 %v3327, %v3329
  %v3404 = vmax.f32 %v3330, %v3332
  %v3405 = vmax.f32 %v3331, %v3333
  %v3406 = vmax.f32 %v3334, %v3336
  %v3407 = vmax.f32 %v3335, %v3337
  %v3408 = vmax.f32 %v3338, %v3340
  %v3409 = vmax.f32 %v3339, %v3341
  %v3410 = vmax.f32 %v3342, %v3344
  %v3411 = vmax.f32 %v3343, %v3345
  %v3412 = vmax.f32 %v3346, %v3348
  %v3413 = vmax.f32 %v3347, %v3349
  %v3414 = vmax.f32 %v3350, %v3352
  %v3415 = vmax.f32 %v3351, %v3353
  %v3416 = vmax.f32 %v3354, %v3356
  %v3417 = vmax.f32 %v3355, %v3357
  %v3418 = vmax.f32 %v3358, %v3360
  %v3419 = vmax.f32 %v3359, %v3361
  %v3420 = vmax.f32 %v3362, %v3364
  %v3421 = vmax.f32 %v3363, %v3365
  %v3422 = vpack.c.bf16 %v3368, %v3366
  %v3423 = vpack.c.bf16 %v3369, %v3367
  %v3424 = vpack.c.bf16 %v3372, %v3370
  %v3425 = vpack.c.bf16 %v3373, %v3371
  %v3426 = vpack.c.bf16 %v3376, %v3374
  %v3427 = vpack.c.bf16 %v3377, %v3375
  %v3428 = vpack.c.bf16 %v3380, %v3378
  %v3429 = vpack.c.bf16 %v3381, %v3379
  %v3430 = vpack.c.bf16 %v3384, %v3382
  %v3431 = vpack.c.bf16 %v3385, %v3383
  %v3432 = vpack.c.bf16 %v3388, %v3386
  %v3433 = vpack.c.bf16 %v3389, %v3387
  %v3434 = vpack.c.bf16 %v3392, %v3390
  %v3435 = vpack.c.bf16 %v3393, %v3391
  %v3436 = vpack.c.bf16 %v3396, %v3394
  %v3437 = vpack.c.bf16 %v3397, %v3395
  %v3438 = vpack.c.bf16 %v3400, %v3398
  %v3439 = vpack.c.bf16 %v3401, %v3399
  %v3440 = vpack.c.bf16 %v3404, %v3402
  %v3441 = vpack.c.bf16 %v3405, %v3403
  %v3442 = vpack.c.bf16 %v3408, %v3406
  %v3443 = vpack.c.bf16 %v3409, %v3407
  %v3444 = vpack.c.bf16 %v3412, %v3410
  %v3445 = vpack.c.bf16 %v3413, %v3411
  %v3446 = vpack.c.bf16 %v3416, %v3414
  %v3447 = vpack.c.bf16 %v3417, %v3415
  %v3448 = vpack.c.bf16 %v3420, %v3418
  %v3449 = vpack.c.bf16 %v3421, %v3419
  %v3450 = vld [vmem:[%s3] sm:$0xff]
  %v3451 = vld [vmem:[%s3 + $0x8] sm:$0xff]
  %v3452 = vld [vmem:[%s3 + $0x10] sm:$0xff]
  %v3453 = vld [vmem:[%s3 + $0x18] sm:$0xff]
  %v3454 = vld [vmem:[%s3 + $0x20] sm:$0xff]
  %v3455 = vld [vmem:[%s3 + $0x28] sm:$0xff]
  %v3456 = vld [vmem:[%s3 + $0x30] sm:$0xff]
  %v3457 = vld [vmem:[%s3 + $0x38] sm:$0xff]
  %v3458 = vld [vmem:[%s3 + $0x40] sm:$0xff]
  %v3459 = vld [vmem:[%s3 + $0x48] sm:$0xff]
  %v3460 = vld [vmem:[%s3 + $0x50] sm:$0xff]
  %v3461 = vld [vmem:[%s3 + $0x58] sm:$0xff]
  %v3462 = vld [vmem:[%s3 + $0x60] sm:$0xff]
  %v3463 = vld [vmem:[%s3 + $0x68] sm:$0xff]
  %v3464 = vld [vmem:[%s3 + $0x70] sm:$0xff]
  %v3465 = vld [vmem:[%s3 + $0x78] sm:$0xff]
  %v3466 = vld [vmem:[%s3 + $0x80] sm:$0xff]
  %v3467 = vld [vmem:[%s3 + $0x88] sm:$0xff]
  %v3468 = vld [vmem:[%s3 + $0x90] sm:$0xff]
  %v3469 = vld [vmem:[%s3 + $0x98] sm:$0xff]
  %v3470 = vld [vmem:[%s3 + $0xa0] sm:$0xff]
  %v3471 = vld [vmem:[%s3 + $0xa8] sm:$0xff]
  %v3472 = vld [vmem:[%s3 + $0xb0] sm:$0xff]
  %v3473 = vld [vmem:[%s3 + $0xb8] sm:$0xff]
  %v3474 = vld [vmem:[%s3 + $0xc0] sm:$0xff]
  %v3475 = vld [vmem:[%s3 + $0xc8] sm:$0xff]
  %v3476 = vld [vmem:[%s3 + $0xd0] sm:$0xff]
  %v3477 = vld [vmem:[%s3 + $0xd8] sm:$0xff]
  %v3478 = vld [vmem:[%s3 + $0xe0] sm:$0xff]
  %v3479 = vld [vmem:[%s3 + $0xe8] sm:$0xff]
  %v3480 = vld [vmem:[%s3 + $0xf0] sm:$0xff]
  %v3481 = vld [vmem:[%s3 + $0xf8] sm:$0xff]
  %s3482 = scalar_lea.vmem %s3, 256
  %v3483 = vld [vmem:[%s3482] sm:$0xff]
  %v3484 = vld [vmem:[%s3482 + $0x8] sm:$0xff]
  %v3485 = vld [vmem:[%s3482 + $0x10] sm:$0xff]
  %v3486 = vld [vmem:[%s3482 + $0x18] sm:$0xff]
  %v3487 = vld [vmem:[%s3482 + $0x20] sm:$0xff]
  %v3488 = vld [vmem:[%s3482 + $0x28] sm:$0xff]
  %v3489 = vld [vmem:[%s3482 + $0x30] sm:$0xff]
  %v3490 = vld [vmem:[%s3482 + $0x38] sm:$0xff]
  %v3491 = vld [vmem:[%s3482 + $0x40] sm:$0xff]
  %v3492 = vld [vmem:[%s3482 + $0x48] sm:$0xff]
  %v3493 = vld [vmem:[%s3482 + $0x50] sm:$0xff]
  %v3494 = vld [vmem:[%s3482 + $0x58] sm:$0xff]
  %v3495 = vld [vmem:[%s3482 + $0x60] sm:$0xff]
  %v3496 = vld [vmem:[%s3482 + $0x68] sm:$0xff]
  %v3497 = vld [vmem:[%s3482 + $0x70] sm:$0xff]
  %v3498 = vld [vmem:[%s3482 + $0x78] sm:$0xff]
  %v3499 = vld [vmem:[%s3482 + $0x80] sm:$0xff]
  %v3500 = vld [vmem:[%s3482 + $0x88] sm:$0xff]
  %v3501 = vld [vmem:[%s3482 + $0x90] sm:$0xff]
  %v3502 = vld [vmem:[%s3482 + $0x98] sm:$0xff]
  %v3503 = vld [vmem:[%s3482 + $0xa0] sm:$0xff]
  %v3504 = vld [vmem:[%s3482 + $0xa8] sm:$0xff]
  %v3505 = vld [vmem:[%s3482 + $0xb0] sm:$0xff]
  %v3506 = vld [vmem:[%s3482 + $0xb8] sm:$0xff]
  %v3507 = vld [vmem:[%s3482 + $0xc0] sm:$0xff]
  %v3508 = vld [vmem:[%s3482 + $0xc8] sm:$0xff]
  %v3509 = vld [vmem:[%s3482 + $0xd0] sm:$0xff]
  %v3510 = vld [vmem:[%s3482 + $0xd8] sm:$0xff]
  %v3511 = vld [vmem:[%s3482 + $0xe0] sm:$0xff]
  %v3512 = vld [vmem:[%s3482 + $0xe8] sm:$0xff]
  %v3513 = vld [vmem:[%s3482 + $0xf0] sm:$0xff]
  %v3514 = vld [vmem:[%s3482 + $0xf8] sm:$0xff]
  %v3547 = vunpack.c.l.b16 %v3483
  %v3548 = vunpack.c.h.b16 %v3483
  %v3549 = vunpack.c.l.b16 %v3484
  %v3550 = vunpack.c.h.b16 %v3484
  %v3551 = vunpack.c.l.b16 %v3485
  %v3552 = vunpack.c.h.b16 %v3485
  %v3553 = vunpack.c.l.b16 %v3486
  %v3554 = vunpack.c.h.b16 %v3486
  %v3555 = vunpack.c.l.b16 %v3487
  %v3556 = vunpack.c.h.b16 %v3487
  %v3557 = vunpack.c.l.b16 %v3488
  %v3558 = vunpack.c.h.b16 %v3488
  %v3559 = vunpack.c.l.b16 %v3489
  %v3560 = vunpack.c.h.b16 %v3489
  %v3561 = vunpack.c.l.b16 %v3490
  %v3562 = vunpack.c.h.b16 %v3490
  %v3563 = vunpack.c.l.b16 %v3491
  %v3564 = vunpack.c.h.b16 %v3491
  %v3565 = vunpack.c.l.b16 %v3492
  %v3566 = vunpack.c.h.b16 %v3492
  %v3567 = vunpack.c.l.b16 %v3493
  %v3568 = vunpack.c.h.b16 %v3493
  %v3569 = vunpack.c.l.b16 %v3494
  %v3570 = vunpack.c.h.b16 %v3494
  %v3571 = vunpack.c.l.b16 %v3495
  %v3572 = vunpack.c.h.b16 %v3495
  %v3573 = vunpack.c.l.b16 %v3496
  %v3574 = vunpack.c.h.b16 %v3496
  %v3575 = vunpack.c.l.b16 %v3497
  %v3576 = vunpack.c.h.b16 %v3497
  %v3577 = vunpack.c.l.b16 %v3498
  %v3578 = vunpack.c.h.b16 %v3498
  %v3579 = vunpack.c.l.b16 %v3499
  %v3580 = vunpack.c.h.b16 %v3499
  %v3581 = vunpack.c.l.b16 %v3500
  %v3582 = vunpack.c.h.b16 %v3500
  %v3583 = vunpack.c.l.b16 %v3501
  %v3584 = vunpack.c.h.b16 %v3501
  %v3585 = vunpack.c.l.b16 %v3502
  %v3586 = vunpack.c.h.b16 %v3502
  %v3587 = vunpack.c.l.b16 %v3503
  %v3588 = vunpack.c.h.b16 %v3503
  %v3589 = vunpack.c.l.b16 %v3504
  %v3590 = vunpack.c.h.b16 %v3504
  %v3591 = vunpack.c.l.b16 %v3505
  %v3592 = vunpack.c.h.b16 %v3505
  %v3593 = vunpack.c.l.b16 %v3506
  %v3594 = vunpack.c.h.b16 %v3506
  %v3595 = vunpack.c.l.b16 %v3507
  %v3596 = vunpack.c.h.b16 %v3507
  %v3597 = vunpack.c.l.b16 %v3508
  %v3598 = vunpack.c.h.b16 %v3508
  %v3599 = vunpack.c.l.b16 %v3509
  %v3600 = vunpack.c.h.b16 %v3509
  %v3601 = vunpack.c.l.b16 %v3510
  %v3602 = vunpack.c.h.b16 %v3510
  %v3603 = vunpack.c.l.b16 %v3511
  %v3604 = vunpack.c.h.b16 %v3511
  %v3605 = vunpack.c.l.b16 %v3512
  %v3606 = vunpack.c.h.b16 %v3512
  %v3607 = vunpack.c.l.b16 %v3513
  %v3608 = vunpack.c.h.b16 %v3513
  %v3609 = vunpack.c.l.b16 %v3514
  %v3610 = vunpack.c.h.b16 %v3514
  %v3611 = vpack.c.b16 %v3549, %v3547
  %v3612 = vpack.c.b16 %v3550, %v3548
  %v3613 = vpack.c.b16 %v3553, %v3551
  %v3614 = vpack.c.b16 %v3554, %v3552
  %v3615 = vpack.c.b16 %v3557, %v3555
  %v3616 = vpack.c.b16 %v3558, %v3556
  %v3617 = vpack.c.b16 %v3561, %v3559
  %v3618 = vpack.c.b16 %v3562, %v3560
  %v3619 = vpack.c.b16 %v3565, %v3563
  %v3620 = vpack.c.b16 %v3566, %v3564
  %v3621 = vpack.c.b16 %v3569, %v3567
  %v3622 = vpack.c.b16 %v3570, %v3568
  %v3623 = vpack.c.b16 %v3573, %v3571
  %v3624 = vpack.c.b16 %v3574, %v3572
  %v3625 = vpack.c.b16 %v3577, %v3575
  %v3626 = vpack.c.b16 %v3578, %v3576
  %v3627 = vpack.c.b16 %v3581, %v3579
  %v3628 = vpack.c.b16 %v3582, %v3580
  %v3629 = vpack.c.b16 %v3585, %v3583
  %v3630 = vpack.c.b16 %v3586, %v3584
  %v3631 = vpack.c.b16 %v3589, %v3587
  %v3632 = vpack.c.b16 %v3590, %v3588
  %v3633 = vpack.c.b16 %v3593, %v3591
  %v3634 = vpack.c.b16 %v3594, %v3592
  %v3635 = vpack.c.b16 %v3597, %v3595
  %v3636 = vpack.c.b16 %v3598, %v3596
  %v3637 = vpack.c.b16 %v3601, %v3599
  %v3638 = vpack.c.b16 %v3602, %v3600
  %v3639 = vpack.c.b16 %v3605, %v3603
  %v3640 = vpack.c.b16 %v3606, %v3604
  %v3641 = vpack.c.b16 %v3609, %v3607
  %v3642 = vpack.c.b16 %v3610, %v3608
  %3675 = vmatprep.subr.bf16.mxu0 %v3626
  %3676 = vmatpush1.bf16.msra.mxu0 %v3625
  %3677 = vmatprep.subr.bf16.mxu0 %v3624
  %3678 = vmatpush1.bf16.msra.mxu0 %v3623
  %3679 = vmatprep.subr.bf16.mxu0 %v3622
  %3680 = vmatpush1.bf16.msra.mxu0 %v3621
  %3681 = vmatprep.subr.bf16.mxu0 %v3620
  %3682 = vmatpush1.bf16.msra.mxu0 %v3619
  %3683 = vmatprep.subr.bf16.mxu0 %v3618
  %3684 = vmatpush1.bf16.msra.mxu0 %v3617
  %3685 = vmatprep.subr.bf16.mxu0 %v3616
  %3686 = vmatpush1.bf16.msra.mxu0 %v3615
  %3687 = vmatprep.subr.bf16.mxu0 %v3614
  %3688 = vmatpush1.bf16.msra.mxu0 %v3613
  %3689 = vmatprep.subr.bf16.mxu0 %v3612
  %3690 = vmatpush1.bf16.msra.mxu0 %v3611
  %3691 = vmatprep.subr.bf16.mxu0 %v3642
  %3692 = vmatpush2.bf16.msra.mxu0 %v3641
  %3693 = vmatprep.subr.bf16.mxu0 %v3640
  %3694 = vmatpush2.bf16.msra.mxu0 %v3639
  %3695 = vmatprep.subr.bf16.mxu0 %v3638
  %3696 = vmatpush2.bf16.msra.mxu0 %v3637
  %3697 = vmatprep.subr.bf16.mxu0 %v3636
  %3698 = vmatpush2.bf16.msra.mxu0 %v3635
  %3699 = vmatprep.subr.bf16.mxu0 %v3634
  %3700 = vmatpush2.bf16.msra.mxu0 %v3633
  %3701 = vmatprep.subr.bf16.mxu0 %v3632
  %3702 = vmatpush2.bf16.msra.mxu0 %v3631
  %3703 = vmatprep.subr.bf16.mxu0 %v3630
  %3704 = vmatpush2.bf16.msra.mxu0 %v3629
  %3705 = vmatprep.subr.bf16.mxu0 %v3628
  %3706 = vmatpush2.bf16.msra.mxu0 %v3627
  %3707 = vmatprep.mubr.bf16.mxu0 %v3423
  %3708 = vmatmul.mubr.bf16.gmra.mxu0 %v3422
  %v3709 = vpop.f32.mrf.mxu0
  %v3710 = vadd.f32 0.0, %v3709
  %v3711 = vpop.f32.mrf.mxu0
  %v3712 = vadd.f32 0.0, %v3711
  %v3713 = vpop.f32.mrf.mxu0
  %v3714 = vadd.f32 0.0, %v3713
  %v3715 = vpop.f32.mrf.mxu0
  %v3716 = vadd.f32 0.0, %v3715
  %3717 = vmatprep.mubr.bf16.mxu0 %v3425
  %3718 = vmatmul.mubr.bf16.gmra.mxu0 %v3424
  %v3719 = vpop.f32.mrf.mxu0
  %v3720 = vadd.f32 0.0, %v3719
  %v3721 = vpop.f32.mrf.mxu0
  %v3722 = vadd.f32 0.0, %v3721
  %v3723 = vpop.f32.mrf.mxu0
  %v3724 = vadd.f32 0.0, %v3723
  %v3725 = vpop.f32.mrf.mxu0
  %v3726 = vadd.f32 0.0, %v3725
  %3727 = vmatprep.mubr.bf16.mxu0 %v3427
  %3728 = vmatmul.mubr.bf16.gmra.mxu0 %v3426
  %v3729 = vpop.f32.mrf.mxu0
  %v3730 = vadd.f32 0.0, %v3729
  %v3731 = vpop.f32.mrf.mxu0
  %v3732 = vadd.f32 0.0, %v3731
  %v3733 = vpop.f32.mrf.mxu0
  %v3734 = vadd.f32 0.0, %v3733
  %v3735 = vpop.f32.mrf.mxu0
  %v3736 = vadd.f32 0.0, %v3735
  %3737 = vmatprep.mubr.bf16.mxu0 %v3429
  %3738 = vmatmul.mubr.bf16.gmra.mxu0 %v3428
  %v3739 = vpop.f32.mrf.mxu0
  %v3740 = vadd.f32 0.0, %v3739
  %v3741 = vpop.f32.mrf.mxu0
  %v3742 = vadd.f32 0.0, %v3741
  %v3743 = vpop.f32.mrf.mxu0
  %v3744 = vadd.f32 0.0, %v3743
  %v3745 = vpop.f32.mrf.mxu0
  %v3746 = vadd.f32 0.0, %v3745
  %3747 = vmatprep.mubr.bf16.mxu0 %v3431
  %3748 = vmatmul.mubr.bf16.gmra.mxu0 %v3430
  %v3749 = vpop.f32.mrf.mxu0
  %v3750 = vadd.f32 0.0, %v3749
  %v3751 = vpop.f32.mrf.mxu0
  %v3752 = vadd.f32 0.0, %v3751
  %v3753 = vpop.f32.mrf.mxu0
  %v3754 = vadd.f32 0.0, %v3753
  %v3755 = vpop.f32.mrf.mxu0
  %v3756 = vadd.f32 0.0, %v3755
  %3757 = vmatprep.mubr.bf16.mxu0 %v3433
  %3758 = vmatmul.mubr.bf16.gmra.mxu0 %v3432
  %v3759 = vpop.f32.mrf.mxu0
  %v3760 = vadd.f32 0.0, %v3759
  %v3761 = vpop.f32.mrf.mxu0
  %v3762 = vadd.f32 0.0, %v3761
  %v3763 = vpop.f32.mrf.mxu0
  %v3764 = vadd.f32 0.0, %v3763
  %v3765 = vpop.f32.mrf.mxu0
  %v3766 = vadd.f32 0.0, %v3765
  %3767 = vmatprep.mubr.bf16.mxu0 %v3435
  %3768 = vmatmul.mubr.bf16.gmra.mxu0 %v3434
  %v3769 = vpop.f32.mrf.mxu0
  %v3770 = vadd.f32 0.0, %v3769
  %v3771 = vpop.f32.mrf.mxu0
  %v3772 = vadd.f32 0.0, %v3771
  %v3773 = vpop.f32.mrf.mxu0
  %v3774 = vadd.f32 0.0, %v3773
  %v3775 = vpop.f32.mrf.mxu0
  %v3776 = vadd.f32 0.0, %v3775
  %3777 = vmatprep.mubr.bf16.mxu0 %v3437
  %3778 = vmatmul.mubr.bf16.gmra.mxu0 %v3436
  %v3779 = vpop.f32.mrf.mxu0
  %v3780 = vadd.f32 0.0, %v3779
  %v3781 = vpop.f32.mrf.mxu0
  %v3782 = vadd.f32 0.0, %v3781
  %v3783 = vpop.f32.mrf.mxu0
  %v3784 = vadd.f32 0.0, %v3783
  %v3785 = vpop.f32.mrf.mxu0
  %v3786 = vadd.f32 0.0, %v3785
  %3787 = vmatprep.mubr.bf16.mxu0 %v3439
  %3788 = vmatmul.mubr.bf16.gmra.mxu0 %v3438
  %v3789 = vpop.f32.mrf.mxu0
  %v3790 = vadd.f32 0.0, %v3789
  %v3791 = vpop.f32.mrf.mxu0
  %v3792 = vadd.f32 0.0, %v3791
  %v3793 = vpop.f32.mrf.mxu0
  %v3794 = vadd.f32 0.0, %v3793
  %v3795 = vpop.f32.mrf.mxu0
  %v3796 = vadd.f32 0.0, %v3795
  %3797 = vmatprep.mubr.bf16.mxu0 %v3441
  %3798 = vmatmul.mubr.bf16.gmra.mxu0 %v3440
  %v3799 = vpop.f32.mrf.mxu0
  %v3800 = vadd.f32 0.0, %v3799
  %v3801 = vpop.f32.mrf.mxu0
  %v3802 = vadd.f32 0.0, %v3801
  %v3803 = vpop.f32.mrf.mxu0
  %v3804 = vadd.f32 0.0, %v3803
  %v3805 = vpop.f32.mrf.mxu0
  %v3806 = vadd.f32 0.0, %v3805
  %3807 = vmatprep.mubr.bf16.mxu0 %v3443
  %3808 = vmatmul.mubr.bf16.gmra.mxu0 %v3442
  %v3809 = vpop.f32.mrf.mxu0
  %v3810 = vadd.f32 0.0, %v3809
  %v3811 = vpop.f32.mrf.mxu0
  %v3812 = vadd.f32 0.0, %v3811
  %v3813 = vpop.f32.mrf.mxu0
  %v3814 = vadd.f32 0.0, %v3813
  %v3815 = vpop.f32.mrf.mxu0
  %v3816 = vadd.f32 0.0, %v3815
  %3817 = vmatprep.mubr.bf16.mxu0 %v3445
  %3818 = vmatmul.mubr.bf16.gmra.mxu0 %v3444
  %v3819 = vpop.f32.mrf.mxu0
  %v3820 = vadd.f32 0.0, %v3819
  %v3821 = vpop.f32.mrf.mxu0
  %v3822 = vadd.f32 0.0, %v3821
  %v3823 = vpop.f32.mrf.mxu0
  %v3824 = vadd.f32 0.0, %v3823
  %v3825 = vpop.f32.mrf.mxu0
  %v3826 = vadd.f32 0.0, %v3825
  %3827 = vmatprep.mubr.bf16.mxu0 %v3447
  %3828 = vmatmul.mubr.bf16.gmra.mxu0 %v3446
  %v3829 = vpop.f32.mrf.mxu0
  %v3830 = vadd.f32 0.0, %v3829
  %v3831 = vpop.f32.mrf.mxu0
  %v3832 = vadd.f32 0.0, %v3831
  %v3833 = vpop.f32.mrf.mxu0
  %v3834 = vadd.f32 0.0, %v3833
  %v3835 = vpop.f32.mrf.mxu0
  %v3836 = vadd.f32 0.0, %v3835
  %3837 = vmatprep.mubr.bf16.mxu0 %v3449
  %3838 = vmatmul.mubr.bf16.gmra.mxu0 %v3448
  %v3839 = vpop.f32.mrf.mxu0
  %v3840 = vadd.f32 0.0, %v3839
  %v3841 = vpop.f32.mrf.mxu0
  %v3842 = vadd.f32 0.0, %v3841
  %v3843 = vpop.f32.mrf.mxu0
  %v3844 = vadd.f32 0.0, %v3843
  %v3845 = vpop.f32.mrf.mxu0
  %v3846 = vadd.f32 0.0, %v3845
  %3847 = vdwg.mxu0
  %v3880 = vunpack.c.l.b16 %v3450
  %v3881 = vunpack.c.h.b16 %v3450
  %v3882 = vunpack.c.l.b16 %v3451
  %v3883 = vunpack.c.h.b16 %v3451
  %v3884 = vunpack.c.l.b16 %v3452
  %v3885 = vunpack.c.h.b16 %v3452
  %v3886 = vunpack.c.l.b16 %v3453
  %v3887 = vunpack.c.h.b16 %v3453
  %v3888 = vunpack.c.l.b16 %v3454
  %v3889 = vunpack.c.h.b16 %v3454
  %v3890 = vunpack.c.l.b16 %v3455
  %v3891 = vunpack.c.h.b16 %v3455
  %v3892 = vunpack.c.l.b16 %v3456
  %v3893 = vunpack.c.h.b16 %v3456
  %v3894 = vunpack.c.l.b16 %v3457
  %v3895 = vunpack.c.h.b16 %v3457
  %v3896 = vunpack.c.l.b16 %v3458
  %v3897 = vunpack.c.h.b16 %v3458
  %v3898 = vunpack.c.l.b16 %v3459
  %v3899 = vunpack.c.h.b16 %v3459
  %v3900 = vunpack.c.l.b16 %v3460
  %v3901 = vunpack.c.h.b16 %v3460
  %v3902 = vunpack.c.l.b16 %v3461
  %v3903 = vunpack.c.h.b16 %v3461
  %v3904 = vunpack.c.l.b16 %v3462
  %v3905 = vunpack.c.h.b16 %v3462
  %v3906 = vunpack.c.l.b16 %v3463
  %v3907 = vunpack.c.h.b16 %v3463
  %v3908 = vunpack.c.l.b16 %v3464
  %v3909 = vunpack.c.h.b16 %v3464
  %v3910 = vunpack.c.l.b16 %v3465
  %v3911 = vunpack.c.h.b16 %v3465
  %v3912 = vunpack.c.l.b16 %v3466
  %v3913 = vunpack.c.h.b16 %v3466
  %v3914 = vunpack.c.l.b16 %v3467
  %v3915 = vunpack.c.h.b16 %v3467
  %v3916 = vunpack.c.l.b16 %v3468
  %v3917 = vunpack.c.h.b16 %v3468
  %v3918 = vunpack.c.l.b16 %v3469
  %v3919 = vunpack.c.h.b16 %v3469
  %v3920 = vunpack.c.l.b16 %v3470
  %v3921 = vunpack.c.h.b16 %v3470
  %v3922 = vunpack.c.l.b16 %v3471
  %v3923 = vunpack.c.h.b16 %v3471
  %v3924 = vunpack.c.l.b16 %v3472
  %v3925 = vunpack.c.h.b16 %v3472
  %v3926 = vunpack.c.l.b16 %v3473
  %v3927 = vunpack.c.h.b16 %v3473
  %v3928 = vunpack.c.l.b16 %v3474
  %v3929 = vunpack.c.h.b16 %v3474
  %v3930 = vunpack.c.l.b16 %v3475
  %v3931 = vunpack.c.h.b16 %v3475
  %v3932 = vunpack.c.l.b16 %v3476
  %v3933 = vunpack.c.h.b16 %v3476
  %v3934 = vunpack.c.l.b16 %v3477
  %v3935 = vunpack.c.h.b16 %v3477
  %v3936 = vunpack.c.l.b16 %v3478
  %v3937 = vunpack.c.h.b16 %v3478
  %v3938 = vunpack.c.l.b16 %v3479
  %v3939 = vunpack.c.h.b16 %v3479
  %v3940 = vunpack.c.l.b16 %v3480
  %v3941 = vunpack.c.h.b16 %v3480
  %v3942 = vunpack.c.l.b16 %v3481
  %v3943 = vunpack.c.h.b16 %v3481
  %v3944 = vpack.c.b16 %v3882, %v3880
  %v3945 = vpack.c.b16 %v3883, %v3881
  %v3946 = vpack.c.b16 %v3886, %v3884
  %v3947 = vpack.c.b16 %v3887, %v3885
  %v3948 = vpack.c.b16 %v3890, %v3888
  %v3949 = vpack.c.b16 %v3891, %v3889
  %v3950 = vpack.c.b16 %v3894, %v3892
  %v3951 = vpack.c.b16 %v3895, %v3893
  %v3952 = vpack.c.b16 %v3898, %v3896
  %v3953 = vpack.c.b16 %v3899, %v3897
  %v3954 = vpack.c.b16 %v3902, %v3900
  %v3955 = vpack.c.b16 %v3903, %v3901
  %v3956 = vpack.c.b16 %v3906, %v3904
  %v3957 = vpack.c.b16 %v3907, %v3905
  %v3958 = vpack.c.b16 %v3910, %v3908
  %v3959 = vpack.c.b16 %v3911, %v3909
  %v3960 = vpack.c.b16 %v3914, %v3912
  %v3961 = vpack.c.b16 %v3915, %v3913
  %v3962 = vpack.c.b16 %v3918, %v3916
  %v3963 = vpack.c.b16 %v3919, %v3917
  %v3964 = vpack.c.b16 %v3922, %v3920
  %v3965 = vpack.c.b16 %v3923, %v3921
  %v3966 = vpack.c.b16 %v3926, %v3924
  %v3967 = vpack.c.b16 %v3927, %v3925
  %v3968 = vpack.c.b16 %v3930, %v3928
  %v3969 = vpack.c.b16 %v3931, %v3929
  %v3970 = vpack.c.b16 %v3934, %v3932
  %v3971 = vpack.c.b16 %v3935, %v3933
  %v3972 = vpack.c.b16 %v3938, %v3936
  %v3973 = vpack.c.b16 %v3939, %v3937
  %v3974 = vpack.c.b16 %v3942, %v3940
  %v3975 = vpack.c.b16 %v3943, %v3941
  %4008 = vmatprep.subr.bf16.mxu0 %v3959
  %4009 = vmatpush1.bf16.msra.mxu0 %v3958
  %4010 = vmatprep.subr.bf16.mxu0 %v3957
  %4011 = vmatpush1.bf16.msra.mxu0 %v3956
  %4012 = vmatprep.subr.bf16.mxu0 %v3955
  %4013 = vmatpush1.bf16.msra.mxu0 %v3954
  %4014 = vmatprep.subr.bf16.mxu0 %v3953
  %4015 = vmatpush1.bf16.msra.mxu0 %v3952
  %4016 = vmatprep.subr.bf16.mxu0 %v3951
  %4017 = vmatpush1.bf16.msra.mxu0 %v3950
  %4018 = vmatprep.subr.bf16.mxu0 %v3949
  %4019 = vmatpush1.bf16.msra.mxu0 %v3948
  %4020 = vmatprep.subr.bf16.mxu0 %v3947
  %4021 = vmatpush1.bf16.msra.mxu0 %v3946
  %4022 = vmatprep.subr.bf16.mxu0 %v3945
  %4023 = vmatpush1.bf16.msra.mxu0 %v3944
  %4024 = vmatprep.subr.bf16.mxu0 %v3975
  %4025 = vmatpush2.bf16.msra.mxu0 %v3974
  %4026 = vmatprep.subr.bf16.mxu0 %v3973
  %4027 = vmatpush2.bf16.msra.mxu0 %v3972
  %4028 = vmatprep.subr.bf16.mxu0 %v3971
  %4029 = vmatpush2.bf16.msra.mxu0 %v3970
  %4030 = vmatprep.subr.bf16.mxu0 %v3969
  %4031 = vmatpush2.bf16.msra.mxu0 %v3968
  %4032 = vmatprep.subr.bf16.mxu0 %v3967
  %4033 = vmatpush2.bf16.msra.mxu0 %v3966
  %4034 = vmatprep.subr.bf16.mxu0 %v3965
  %4035 = vmatpush2.bf16.msra.mxu0 %v3964
  %4036 = vmatprep.subr.bf16.mxu0 %v3963
  %4037 = vmatpush2.bf16.msra.mxu0 %v3962
  %4038 = vmatprep.subr.bf16.mxu0 %v3961
  %4039 = vmatpush2.bf16.msra.mxu0 %v3960
  %4040 = vmatprep.mubr.bf16.mxu0 0
  %4041 = vmatmul.mubr.bf16.gmra.mxu0 0
  %v4042 = vpop.f32.mrf.mxu0
  %v4043 = vadd.f32 %v3710, %v4042
  %v4044 = vpop.f32.mrf.mxu0
  %v4045 = vadd.f32 %v3712, %v4044
  %v4046 = vpop.f32.mrf.mxu0
  %v4047 = vadd.f32 %v3714, %v4046
  %v4048 = vpop.f32.mrf.mxu0
  %v4049 = vadd.f32 %v3716, %v4048
  %4050 = vmatprep.mubr.bf16.mxu0 %v3423
  %4051 = vmatmul.mubr.bf16.gmra.mxu0 %v3422
  %v4052 = vpop.f32.mrf.mxu0
  %v4053 = vadd.f32 %v3720, %v4052
  %v4054 = vpop.f32.mrf.mxu0
  %v4055 = vadd.f32 %v3722, %v4054
  %v4056 = vpop.f32.mrf.mxu0
  %v4057 = vadd.f32 %v3724, %v4056
  %v4058 = vpop.f32.mrf.mxu0
  %v4059 = vadd.f32 %v3726, %v4058
  %4060 = vmatprep.mubr.bf16.mxu0 %v3425
  %4061 = vmatmul.mubr.bf16.gmra.mxu0 %v3424
  %v4062 = vpop.f32.mrf.mxu0
  %v4063 = vadd.f32 %v3730, %v4062
  %v4064 = vpop.f32.mrf.mxu0
  %v4065 = vadd.f32 %v3732, %v4064
  %v4066 = vpop.f32.mrf.mxu0
  %v4067 = vadd.f32 %v3734, %v4066
  %v4068 = vpop.f32.mrf.mxu0
  %v4069 = vadd.f32 %v3736, %v4068
  %4070 = vmatprep.mubr.bf16.mxu0 %v3427
  %4071 = vmatmul.mubr.bf16.gmra.mxu0 %v3426
  %v4072 = vpop.f32.mrf.mxu0
  %v4073 = vadd.f32 %v3740, %v4072
  %v4074 = vpop.f32.mrf.mxu0
  %v4075 = vadd.f32 %v3742, %v4074
  %v4076 = vpop.f32.mrf.mxu0
  %v4077 = vadd.f32 %v3744, %v4076
  %v4078 = vpop.f32.mrf.mxu0
  %v4079 = vadd.f32 %v3746, %v4078
  %4080 = vmatprep.mubr.bf16.mxu0 %v3429
  %4081 = vmatmul.mubr.bf16.gmra.mxu0 %v3428
  %v4082 = vpop.f32.mrf.mxu0
  %v4083 = vadd.f32 %v3750, %v4082
  %v4084 = vpop.f32.mrf.mxu0
  %v4085 = vadd.f32 %v3752, %v4084
  %v4086 = vpop.f32.mrf.mxu0
  %v4087 = vadd.f32 %v3754, %v4086
  %v4088 = vpop.f32.mrf.mxu0
  %v4089 = vadd.f32 %v3756, %v4088
  %4090 = vmatprep.mubr.bf16.mxu0 %v3431
  %4091 = vmatmul.mubr.bf16.gmra.mxu0 %v3430
  %v4092 = vpop.f32.mrf.mxu0
  %v4093 = vadd.f32 %v3760, %v4092
  %v4094 = vpop.f32.mrf.mxu0
  %v4095 = vadd.f32 %v3762, %v4094
  %v4096 = vpop.f32.mrf.mxu0
  %v4097 = vadd.f32 %v3764, %v4096
  %v4098 = vpop.f32.mrf.mxu0
  %v4099 = vadd.f32 %v3766, %v4098
  %4100 = vmatprep.mubr.bf16.mxu0 %v3433
  %4101 = vmatmul.mubr.bf16.gmra.mxu0 %v3432
  %v4102 = vpop.f32.mrf.mxu0
  %v4103 = vadd.f32 %v3770, %v4102
  %v4104 = vpop.f32.mrf.mxu0
  %v4105 = vadd.f32 %v3772, %v4104
  %v4106 = vpop.f32.mrf.mxu0
  %v4107 = vadd.f32 %v3774, %v4106
  %v4108 = vpop.f32.mrf.mxu0
  %v4109 = vadd.f32 %v3776, %v4108
  %4110 = vmatprep.mubr.bf16.mxu0 %v3435
  %4111 = vmatmul.mubr.bf16.gmra.mxu0 %v3434
  %v4112 = vpop.f32.mrf.mxu0
  %v4113 = vadd.f32 %v3780, %v4112
  %v4114 = vpop.f32.mrf.mxu0
  %v4115 = vadd.f32 %v3782, %v4114
  %v4116 = vpop.f32.mrf.mxu0
  %v4117 = vadd.f32 %v3784, %v4116
  %v4118 = vpop.f32.mrf.mxu0
  %v4119 = vadd.f32 %v3786, %v4118
  %4120 = vmatprep.mubr.bf16.mxu0 %v3437
  %4121 = vmatmul.mubr.bf16.gmra.mxu0 %v3436
  %v4122 = vpop.f32.mrf.mxu0
  %v4123 = vadd.f32 %v3790, %v4122
  %v4124 = vpop.f32.mrf.mxu0
  %v4125 = vadd.f32 %v3792, %v4124
  %v4126 = vpop.f32.mrf.mxu0
  %v4127 = vadd.f32 %v3794, %v4126
  %v4128 = vpop.f32.mrf.mxu0
  %v4129 = vadd.f32 %v3796, %v4128
  %4130 = vmatprep.mubr.bf16.mxu0 %v3439
  %4131 = vmatmul.mubr.bf16.gmra.mxu0 %v3438
  %v4132 = vpop.f32.mrf.mxu0
  %v4133 = vadd.f32 %v3800, %v4132
  %v4134 = vpop.f32.mrf.mxu0
  %v4135 = vadd.f32 %v3802, %v4134
  %v4136 = vpop.f32.mrf.mxu0
  %v4137 = vadd.f32 %v3804, %v4136
  %v4138 = vpop.f32.mrf.mxu0
  %v4139 = vadd.f32 %v3806, %v4138
  %4140 = vmatprep.mubr.bf16.mxu0 %v3441
  %4141 = vmatmul.mubr.bf16.gmra.mxu0 %v3440
  %v4142 = vpop.f32.mrf.mxu0
  %v4143 = vadd.f32 %v3810, %v4142
  %v4144 = vpop.f32.mrf.mxu0
  %v4145 = vadd.f32 %v3812, %v4144
  %v4146 = vpop.f32.mrf.mxu0
  %v4147 = vadd.f32 %v3814, %v4146
  %v4148 = vpop.f32.mrf.mxu0
  %v4149 = vadd.f32 %v3816, %v4148
  %4150 = vmatprep.mubr.bf16.mxu0 %v3443
  %4151 = vmatmul.mubr.bf16.gmra.mxu0 %v3442
  %v4152 = vpop.f32.mrf.mxu0
  %v4153 = vadd.f32 %v3820, %v4152
  %v4154 = vpop.f32.mrf.mxu0
  %v4155 = vadd.f32 %v3822, %v4154
  %v4156 = vpop.f32.mrf.mxu0
  %v4157 = vadd.f32 %v3824, %v4156
  %v4158 = vpop.f32.mrf.mxu0
  %v4159 = vadd.f32 %v3826, %v4158
  %4160 = vmatprep.mubr.bf16.mxu0 %v3445
  %4161 = vmatmul.mubr.bf16.gmra.mxu0 %v3444
  %v4162 = vpop.f32.mrf.mxu0
  %v4163 = vadd.f32 %v3830, %v4162
  %v4164 = vpop.f32.mrf.mxu0
  %v4165 = vadd.f32 %v3832, %v4164
  %v4166 = vpop.f32.mrf.mxu0
  %v4167 = vadd.f32 %v3834, %v4166
  %v4168 = vpop.f32.mrf.mxu0
  %v4169 = vadd.f32 %v3836, %v4168
  %4170 = vmatprep.mubr.bf16.mxu0 %v3447
  %4171 = vmatmul.mubr.bf16.gmra.mxu0 %v3446
  %v4172 = vpop.f32.mrf.mxu0
  %v4173 = vadd.f32 %v3840, %v4172
  %v4174 = vpop.f32.mrf.mxu0
  %v4175 = vadd.f32 %v3842, %v4174
  %v4176 = vpop.f32.mrf.mxu0
  %v4177 = vadd.f32 %v3844, %v4176
  %v4178 = vpop.f32.mrf.mxu0
  %v4179 = vadd.f32 %v3846, %v4178
  %4180 = vdwg.mxu0
  %s4181 = scalar_lea.vmem %s3, 512
  %v4182 = vld [vmem:[%s4181] sm:$0xff]
  %v4183 = vld [vmem:[%s4181 + $0x8] sm:$0xff]
  %v4184 = vld [vmem:[%s4181 + $0x10] sm:$0xff]
  %v4185 = vld [vmem:[%s4181 + $0x18] sm:$0xff]
  %v4186 = vld [vmem:[%s4181 + $0x20] sm:$0xff]
  %v4187 = vld [vmem:[%s4181 + $0x28] sm:$0xff]
  %v4188 = vld [vmem:[%s4181 + $0x30] sm:$0xff]
  %v4189 = vld [vmem:[%s4181 + $0x38] sm:$0xff]
  %v4190 = vld [vmem:[%s4181 + $0x40] sm:$0xff]
  %v4191 = vld [vmem:[%s4181 + $0x48] sm:$0xff]
  %v4192 = vld [vmem:[%s4181 + $0x50] sm:$0xff]
  %v4193 = vld [vmem:[%s4181 + $0x58] sm:$0xff]
  %v4194 = vld [vmem:[%s4181 + $0x60] sm:$0xff]
  %v4195 = vld [vmem:[%s4181 + $0x68] sm:$0xff]
  %v4196 = vld [vmem:[%s4181 + $0x70] sm:$0xff]
  %v4197 = vld [vmem:[%s4181 + $0x78] sm:$0xff]
  %v4198 = vld [vmem:[%s4181 + $0x80] sm:$0xff]
  %v4199 = vld [vmem:[%s4181 + $0x88] sm:$0xff]
  %v4200 = vld [vmem:[%s4181 + $0x90] sm:$0xff]
  %v4201 = vld [vmem:[%s4181 + $0x98] sm:$0xff]
  %v4202 = vld [vmem:[%s4181 + $0xa0] sm:$0xff]
  %v4203 = vld [vmem:[%s4181 + $0xa8] sm:$0xff]
  %v4204 = vld [vmem:[%s4181 + $0xb0] sm:$0xff]
  %v4205 = vld [vmem:[%s4181 + $0xb8] sm:$0xff]
  %v4206 = vld [vmem:[%s4181 + $0xc0] sm:$0xff]
  %v4207 = vld [vmem:[%s4181 + $0xc8] sm:$0xff]
  %v4208 = vld [vmem:[%s4181 + $0xd0] sm:$0xff]
  %v4209 = vld [vmem:[%s4181 + $0xd8] sm:$0xff]
  %v4210 = vld [vmem:[%s4181 + $0xe0] sm:$0xff]
  %v4211 = vld [vmem:[%s4181 + $0xe8] sm:$0xff]
  %v4212 = vld [vmem:[%s4181 + $0xf0] sm:$0xff]
  %v4213 = vld [vmem:[%s4181 + $0xf8] sm:$0xff]
  %v4246 = vunpack.c.l.b16 %v4182
  %v4247 = vunpack.c.h.b16 %v4182
  %v4248 = vunpack.c.l.b16 %v4183
  %v4249 = vunpack.c.h.b16 %v4183
  %v4250 = vunpack.c.l.b16 %v4184
  %v4251 = vunpack.c.h.b16 %v4184
  %v4252 = vunpack.c.l.b16 %v4185
  %v4253 = vunpack.c.h.b16 %v4185
  %v4254 = vunpack.c.l.b16 %v4186
  %v4255 = vunpack.c.h.b16 %v4186
  %v4256 = vunpack.c.l.b16 %v4187
  %v4257 = vunpack.c.h.b16 %v4187
  %v4258 = vunpack.c.l.b16 %v4188
  %v4259 = vunpack.c.h.b16 %v4188
  %v4260 = vunpack.c.l.b16 %v4189
  %v4261 = vunpack.c.h.b16 %v4189
  %v4262 = vunpack.c.l.b16 %v4190
  %v4263 = vunpack.c.h.b16 %v4190
  %v4264 = vunpack.c.l.b16 %v4191
  %v4265 = vunpack.c.h.b16 %v4191
  %v4266 = vunpack.c.l.b16 %v4192
  %v4267 = vunpack.c.h.b16 %v4192
  %v4268 = vunpack.c.l.b16 %v4193
  %v4269 = vunpack.c.h.b16 %v4193
  %v4270 = vunpack.c.l.b16 %v4194
  %v4271 = vunpack.c.h.b16 %v4194
  %v4272 = vunpack.c.l.b16 %v4195
  %v4273 = vunpack.c.h.b16 %v4195
  %v4274 = vunpack.c.l.b16 %v4196
  %v4275 = vunpack.c.h.b16 %v4196
  %v4276 = vunpack.c.l.b16 %v4197
  %v4277 = vunpack.c.h.b16 %v4197
  %v4278 = vunpack.c.l.b16 %v4198
  %v4279 = vunpack.c.h.b16 %v4198
  %v4280 = vunpack.c.l.b16 %v4199
  %v4281 = vunpack.c.h.b16 %v4199
  %v4282 = vunpack.c.l.b16 %v4200
  %v4283 = vunpack.c.h.b16 %v4200
  %v4284 = vunpack.c.l.b16 %v4201
  %v4285 = vunpack.c.h.b16 %v4201
  %v4286 = vunpack.c.l.b16 %v4202
  %v4287 = vunpack.c.h.b16 %v4202
  %v4288 = vunpack.c.l.b16 %v4203
  %v4289 = vunpack.c.h.b16 %v4203
  %v4290 = vunpack.c.l.b16 %v4204
  %v4291 = vunpack.c.h.b16 %v4204
  %v4292 = vunpack.c.l.b16 %v4205
  %v4293 = vunpack.c.h.b16 %v4205
  %v4294 = vunpack.c.l.b16 %v4206
  %v4295 = vunpack.c.h.b16 %v4206
  %v4296 = vunpack.c.l.b16 %v4207
  %v4297 = vunpack.c.h.b16 %v4207
  %v4298 = vunpack.c.l.b16 %v4208
  %v4299 = vunpack.c.h.b16 %v4208
  %v4300 = vunpack.c.l.b16 %v4209
  %v4301 = vunpack.c.h.b16 %v4209
  %v4302 = vunpack.c.l.b16 %v4210
  %v4303 = vunpack.c.h.b16 %v4210
  %v4304 = vunpack.c.l.b16 %v4211
  %v4305 = vunpack.c.h.b16 %v4211
  %v4306 = vunpack.c.l.b16 %v4212
  %v4307 = vunpack.c.h.b16 %v4212
  %v4308 = vunpack.c.l.b16 %v4213
  %v4309 = vunpack.c.h.b16 %v4213
  %v4310 = vpack.c.b16 %v4248, %v4246
  %v4311 = vpack.c.b16 %v4249, %v4247
  %v4312 = vpack.c.b16 %v4252, %v4250
  %v4313 = vpack.c.b16 %v4253, %v4251
  %v4314 = vpack.c.b16 %v4256, %v4254
  %v4315 = vpack.c.b16 %v4257, %v4255
  %v4316 = vpack.c.b16 %v4260, %v4258
  %v4317 = vpack.c.b16 %v4261, %v4259
  %v4318 = vpack.c.b16 %v4264, %v4262
  %v4319 = vpack.c.b16 %v4265, %v4263
  %v4320 = vpack.c.b16 %v4268, %v4266
  %v4321 = vpack.c.b16 %v4269, %v4267
  %v4322 = vpack.c.b16 %v4272, %v4270
  %v4323 = vpack.c.b16 %v4273, %v4271
  %v4324 = vpack.c.b16 %v4276, %v4274
  %v4325 = vpack.c.b16 %v4277, %v4275
  %v4326 = vpack.c.b16 %v4280, %v4278
  %v4327 = vpack.c.b16 %v4281, %v4279
  %v4328 = vpack.c.b16 %v4284, %v4282
  %v4329 = vpack.c.b16 %v4285, %v4283
  %v4330 = vpack.c.b16 %v4288, %v4286
  %v4331 = vpack.c.b16 %v4289, %v4287
  %v4332 = vpack.c.b16 %v4292, %v4290
  %v4333 = vpack.c.b16 %v4293, %v4291
  %v4334 = vpack.c.b16 %v4296, %v4294
  %v4335 = vpack.c.b16 %v4297, %v4295
  %v4336 = vpack.c.b16 %v4300, %v4298
  %v4337 = vpack.c.b16 %v4301, %v4299
  %v4338 = vpack.c.b16 %v4304, %v4302
  %v4339 = vpack.c.b16 %v4305, %v4303
  %v4340 = vpack.c.b16 %v4308, %v4306
  %v4341 = vpack.c.b16 %v4309, %v4307
  %4374 = vmatprep.subr.bf16.mxu0 %v4325
  %4375 = vmatpush1.bf16.msra.mxu0 %v4324
  %4376 = vmatprep.subr.bf16.mxu0 %v4323
  %4377 = vmatpush1.bf16.msra.mxu0 %v4322
  %4378 = vmatprep.subr.bf16.mxu0 %v4321
  %4379 = vmatpush1.bf16.msra.mxu0 %v4320
  %4380 = vmatprep.subr.bf16.mxu0 %v4319
  %4381 = vmatpush1.bf16.msra.mxu0 %v4318
  %4382 = vmatprep.subr.bf16.mxu0 %v4317
  %4383 = vmatpush1.bf16.msra.mxu0 %v4316
  %4384 = vmatprep.subr.bf16.mxu0 %v4315
  %4385 = vmatpush1.bf16.msra.mxu0 %v4314
  %4386 = vmatprep.subr.bf16.mxu0 %v4313
  %4387 = vmatpush1.bf16.msra.mxu0 %v4312
  %4388 = vmatprep.subr.bf16.mxu0 %v4311
  %4389 = vmatpush1.bf16.msra.mxu0 %v4310
  %4390 = vmatprep.subr.bf16.mxu0 %v4341
  %4391 = vmatpush2.bf16.msra.mxu0 %v4340
  %4392 = vmatprep.subr.bf16.mxu0 %v4339
  %4393 = vmatpush2.bf16.msra.mxu0 %v4338
  %4394 = vmatprep.subr.bf16.mxu0 %v4337
  %4395 = vmatpush2.bf16.msra.mxu0 %v4336
  %4396 = vmatprep.subr.bf16.mxu0 %v4335
  %4397 = vmatpush2.bf16.msra.mxu0 %v4334
  %4398 = vmatprep.subr.bf16.mxu0 %v4333
  %4399 = vmatpush2.bf16.msra.mxu0 %v4332
  %4400 = vmatprep.subr.bf16.mxu0 %v4331
  %4401 = vmatpush2.bf16.msra.mxu0 %v4330
  %4402 = vmatprep.subr.bf16.mxu0 %v4329
  %4403 = vmatpush2.bf16.msra.mxu0 %v4328
  %4404 = vmatprep.subr.bf16.mxu0 %v4327
  %4405 = vmatpush2.bf16.msra.mxu0 %v4326
  %4406 = vmatprep.mubr.bf16.mxu0 %v3425
  %4407 = vmatmul.mubr.bf16.gmra.mxu0 %v3424
  %v4408 = vpop.f32.mrf.mxu0
  %v4409 = vadd.f32 0.0, %v4408
  %v4410 = vpop.f32.mrf.mxu0
  %v4411 = vadd.f32 0.0, %v4410
  %v4412 = vpop.f32.mrf.mxu0
  %v4413 = vadd.f32 0.0, %v4412
  %v4414 = vpop.f32.mrf.mxu0
  %v4415 = vadd.f32 0.0, %v4414
  %4416 = vmatprep.mubr.bf16.mxu0 %v3427
  %4417 = vmatmul.mubr.bf16.gmra.mxu0 %v3426
  %v4418 = vpop.f32.mrf.mxu0
  %v4419 = vadd.f32 0.0, %v4418
  %v4420 = vpop.f32.mrf.mxu0
  %v4421 = vadd.f32 0.0, %v4420
  %v4422 = vpop.f32.mrf.mxu0
  %v4423 = vadd.f32 0.0, %v4422
  %v4424 = vpop.f32.mrf.mxu0
  %v4425 = vadd.f32 0.0, %v4424
  %4426 = vmatprep.mubr.bf16.mxu0 %v3429
  %4427 = vmatmul.mubr.bf16.gmra.mxu0 %v3428
  %v4428 = vpop.f32.mrf.mxu0
  %v4429 = vadd.f32 0.0, %v4428
  %v4430 = vpop.f32.mrf.mxu0
  %v4431 = vadd.f32 0.0, %v4430
  %v4432 = vpop.f32.mrf.mxu0
  %v4433 = vadd.f32 0.0, %v4432
  %v4434 = vpop.f32.mrf.mxu0
  %v4435 = vadd.f32 0.0, %v4434
  %4436 = vmatprep.mubr.bf16.mxu0 %v3431
  %4437 = vmatmul.mubr.bf16.gmra.mxu0 %v3430
  %v4438 = vpop.f32.mrf.mxu0
  %v4439 = vadd.f32 0.0, %v4438
  %v4440 = vpop.f32.mrf.mxu0
  %v4441 = vadd.f32 0.0, %v4440
  %v4442 = vpop.f32.mrf.mxu0
  %v4443 = vadd.f32 0.0, %v4442
  %v4444 = vpop.f32.mrf.mxu0
  %v4445 = vadd.f32 0.0, %v4444
  %4446 = vmatprep.mubr.bf16.mxu0 %v3433
  %4447 = vmatmul.mubr.bf16.gmra.mxu0 %v3432
  %v4448 = vpop.f32.mrf.mxu0
  %v4449 = vadd.f32 0.0, %v4448
  %v4450 = vpop.f32.mrf.mxu0
  %v4451 = vadd.f32 0.0, %v4450
  %v4452 = vpop.f32.mrf.mxu0
  %v4453 = vadd.f32 0.0, %v4452
  %v4454 = vpop.f32.mrf.mxu0
  %v4455 = vadd.f32 0.0, %v4454
  %4456 = vmatprep.mubr.bf16.mxu0 %v3435
  %4457 = vmatmul.mubr.bf16.gmra.mxu0 %v3434
  %v4458 = vpop.f32.mrf.mxu0
  %v4459 = vadd.f32 0.0, %v4458
  %v4460 = vpop.f32.mrf.mxu0
  %v4461 = vadd.f32 0.0, %v4460
  %v4462 = vpop.f32.mrf.mxu0
  %v4463 = vadd.f32 0.0, %v4462
  %v4464 = vpop.f32.mrf.mxu0
  %v4465 = vadd.f32 0.0, %v4464
  %4466 = vmatprep.mubr.bf16.mxu0 %v3437
  %4467 = vmatmul.mubr.bf16.gmra.mxu0 %v3436
  %v4468 = vpop.f32.mrf.mxu0
  %v4469 = vadd.f32 0.0, %v4468
  %v4470 = vpop.f32.mrf.mxu0
  %v4471 = vadd.f32 0.0, %v4470
  %v4472 = vpop.f32.mrf.mxu0
  %v4473 = vadd.f32 0.0, %v4472
  %v4474 = vpop.f32.mrf.mxu0
  %v4475 = vadd.f32 0.0, %v4474
  %4476 = vmatprep.mubr.bf16.mxu0 %v3439
  %4477 = vmatmul.mubr.bf16.gmra.mxu0 %v3438
  %v4478 = vpop.f32.mrf.mxu0
  %v4479 = vadd.f32 0.0, %v4478
  %v4480 = vpop.f32.mrf.mxu0
  %v4481 = vadd.f32 0.0, %v4480
  %v4482 = vpop.f32.mrf.mxu0
  %v4483 = vadd.f32 0.0, %v4482
  %v4484 = vpop.f32.mrf.mxu0
  %v4485 = vadd.f32 0.0, %v4484
  %4486 = vmatprep.mubr.bf16.mxu0 %v3441
  %4487 = vmatmul.mubr.bf16.gmra.mxu0 %v3440
  %v4488 = vpop.f32.mrf.mxu0
  %v4489 = vadd.f32 0.0, %v4488
  %v4490 = vpop.f32.mrf.mxu0
  %v4491 = vadd.f32 0.0, %v4490
  %v4492 = vpop.f32.mrf.mxu0
  %v4493 = vadd.f32 0.0, %v4492
  %v4494 = vpop.f32.mrf.mxu0
  %v4495 = vadd.f32 0.0, %v4494
  %4496 = vmatprep.mubr.bf16.mxu0 %v3443
  %4497 = vmatmul.mubr.bf16.gmra.mxu0 %v3442
  %v4498 = vpop.f32.mrf.mxu0
  %v4499 = vadd.f32 0.0, %v4498
  %v4500 = vpop.f32.mrf.mxu0
  %v4501 = vadd.f32 0.0, %v4500
  %v4502 = vpop.f32.mrf.mxu0
  %v4503 = vadd.f32 0.0, %v4502
  %v4504 = vpop.f32.mrf.mxu0
  %v4505 = vadd.f32 0.0, %v4504
  %4506 = vmatprep.mubr.bf16.mxu0 %v3445
  %4507 = vmatmul.mubr.bf16.gmra.mxu0 %v3444
  %v4508 = vpop.f32.mrf.mxu0
  %v4509 = vadd.f32 0.0, %v4508
  %v4510 = vpop.f32.mrf.mxu0
  %v4511 = vadd.f32 0.0, %v4510
  %v4512 = vpop.f32.mrf.mxu0
  %v4513 = vadd.f32 0.0, %v4512
  %v4514 = vpop.f32.mrf.mxu0
  %v4515 = vadd.f32 0.0, %v4514
  %4516 = vmatprep.mubr.bf16.mxu0 %v3447
  %4517 = vmatmul.mubr.bf16.gmra.mxu0 %v3446
  %v4518 = vpop.f32.mrf.mxu0
  %v4519 = vadd.f32 0.0, %v4518
  %v4520 = vpop.f32.mrf.mxu0
  %v4521 = vadd.f32 0.0, %v4520
  %v4522 = vpop.f32.mrf.mxu0
  %v4523 = vadd.f32 0.0, %v4522
  %v4524 = vpop.f32.mrf.mxu0
  %v4525 = vadd.f32 0.0, %v4524
  %4526 = vmatprep.mubr.bf16.mxu0 %v3449
  %4527 = vmatmul.mubr.bf16.gmra.mxu0 %v3448
  %v4528 = vpop.f32.mrf.mxu0
  %v4529 = vadd.f32 0.0, %v4528
  %v4530 = vpop.f32.mrf.mxu0
  %v4531 = vadd.f32 0.0, %v4530
  %v4532 = vpop.f32.mrf.mxu0
  %v4533 = vadd.f32 0.0, %v4532
  %v4534 = vpop.f32.mrf.mxu0
  %v4535 = vadd.f32 0.0, %v4534
  %4536 = vmatprep.mubr.bf16.mxu0 0
  %4537 = vmatmul.mubr.bf16.gmra.mxu0 0
  %v4538 = vpop.f32.mrf.mxu0
  %v4539 = vadd.f32 0.0, %v4538
  %v4540 = vpop.f32.mrf.mxu0
  %v4541 = vadd.f32 0.0, %v4540
  %v4542 = vpop.f32.mrf.mxu0
  %v4543 = vadd.f32 0.0, %v4542
  %v4544 = vpop.f32.mrf.mxu0
  %v4545 = vadd.f32 0.0, %v4544
  %4546 = vdwg.mxu0
  %v4547 = vadd.f32 %v4043, %v4409
  %v4548 = vadd.f32 %v4045, %v4411
  %v4549 = vadd.f32 %v4047, %v4413
  %v4550 = vadd.f32 %v4049, %v4415
  %v4551 = vadd.f32 %v4053, %v4419
  %v4552 = vadd.f32 %v4055, %v4421
  %v4553 = vadd.f32 %v4057, %v4423
  %v4554 = vadd.f32 %v4059, %v4425
  %v4555 = vadd.f32 %v4063, %v4429
  %v4556 = vadd.f32 %v4065, %v4431
  %v4557 = vadd.f32 %v4067, %v4433
  %v4558 = vadd.f32 %v4069, %v4435
  %v4559 = vadd.f32 %v4073, %v4439
  %v4560 = vadd.f32 %v4075, %v4441
  %v4561 = vadd.f32 %v4077, %v4443
  %v4562 = vadd.f32 %v4079, %v4445
  %v4563 = vadd.f32 %v4083, %v4449
  %v4564 = vadd.f32 %v4085, %v4451
  %v4565 = vadd.f32 %v4087, %v4453
  %v4566 = vadd.f32 %v4089, %v4455
  %v4567 = vadd.f32 %v4093, %v4459
  %v4568 = vadd.f32 %v4095, %v4461
  %v4569 = vadd.f32 %v4097, %v4463
  %v4570 = vadd.f32 %v4099, %v4465
  %v4571 = vadd.f32 %v4103, %v4469
  %v4572 = vadd.f32 %v4105, %v4471
  %v4573 = vadd.f32 %v4107, %v4473
  %v4574 = vadd.f32 %v4109, %v4475
  %v4575 = vadd.f32 %v4113, %v4479
  %v4576 = vadd.f32 %v4115, %v4481
  %v4577 = vadd.f32 %v4117, %v4483
  %v4578 = vadd.f32 %v4119, %v4485
  %v4579 = vadd.f32 %v4123, %v4489
  %v4580 = vadd.f32 %v4125, %v4491
  %v4581 = vadd.f32 %v4127, %v4493
  %v4582 = vadd.f32 %v4129, %v4495
  %v4583 = vadd.f32 %v4133, %v4499
  %v4584 = vadd.f32 %v4135, %v4501
  %v4585 = vadd.f32 %v4137, %v4503
  %v4586 = vadd.f32 %v4139, %v4505
  %v4587 = vadd.f32 %v4143, %v4509
  %v4588 = vadd.f32 %v4145, %v4511
  %v4589 = vadd.f32 %v4147, %v4513
  %v4590 = vadd.f32 %v4149, %v4515
  %v4591 = vadd.f32 %v4153, %v4519
  %v4592 = vadd.f32 %v4155, %v4521
  %v4593 = vadd.f32 %v4157, %v4523
  %v4594 = vadd.f32 %v4159, %v4525
  %v4595 = vadd.f32 %v4163, %v4529
  %v4596 = vadd.f32 %v4165, %v4531
  %v4597 = vadd.f32 %v4167, %v4533
  %v4598 = vadd.f32 %v4169, %v4535
  %v4599 = vadd.f32 %v4173, %v4539
  %v4600 = vadd.f32 %v4175, %v4541
  %v4601 = vadd.f32 %v4177, %v4543
  %v4602 = vadd.f32 %v4179, %v4545
  %v4603 = vmax.f32 %v4547, 0.0
  %v4604 = vmax.f32 %v4548, 0.0
  %v4605 = vmax.f32 %v4549, 0.0
  %v4606 = vmax.f32 %v4550, 0.0
  %v4607 = vmax.f32 %v4551, 0.0
  %v4608 = vmax.f32 %v4552, 0.0
  %v4609 = vmax.f32 %v4553, 0.0
  %v4610 = vmax.f32 %v4554, 0.0
  %v4611 = vmax.f32 %v4555, 0.0
  %v4612 = vmax.f32 %v4556, 0.0
  %v4613 = vmax.f32 %v4557, 0.0
  %v4614 = vmax.f32 %v4558, 0.0
  %v4615 = vmax.f32 %v4559, 0.0
  %v4616 = vmax.f32 %v4560, 0.0
  %v4617 = vmax.f32 %v4561, 0.0
  %v4618 = vmax.f32 %v4562, 0.0
  %v4619 = vmax.f32 %v4563, 0.0
  %v4620 = vmax.f32 %v4564, 0.0
  %v4621 = vmax.f32 %v4565, 0.0
  %v4622 = vmax.f32 %v4566, 0.0
  %v4623 = vmax.f32 %v4567, 0.0
  %v4624 = vmax.f32 %v4568, 0.0
  %v4625 = vmax.f32 %v4569, 0.0
  %v4626 = vmax.f32 %v4570, 0.0
  %v4627 = vmax.f32 %v4571, 0.0
  %v4628 = vmax.f32 %v4572, 0.0
  %v4629 = vmax.f32 %v4573, 0.0
  %v4630 = vmax.f32 %v4574, 0.0
  %v4631 = vmax.f32 %v4575, 0.0
  %v4632 = vmax.f32 %v4576, 0.0
  %v4633 = vmax.f32 %v4577, 0.0
  %v4634 = vmax.f32 %v4578, 0.0
  %v4635 = vmax.f32 %v4579, 0.0
  %v4636 = vmax.f32 %v4580, 0.0
  %v4637 = vmax.f32 %v4581, 0.0
  %v4638 = vmax.f32 %v4582, 0.0
  %v4639 = vmax.f32 %v4583, 0.0
  %v4640 = vmax.f32 %v4584, 0.0
  %v4641 = vmax.f32 %v4585, 0.0
  %v4642 = vmax.f32 %v4586, 0.0
  %v4643 = vmax.f32 %v4587, 0.0
  %v4644 = vmax.f32 %v4588, 0.0
  %v4645 = vmax.f32 %v4589, 0.0
  %v4646 = vmax.f32 %v4590, 0.0
  %v4647 = vmax.f32 %v4591, 0.0
  %v4648 = vmax.f32 %v4592, 0.0
  %v4649 = vmax.f32 %v4593, 0.0
  %v4650 = vmax.f32 %v4594, 0.0
  %v4651 = vmax.f32 %v4595, 0.0
  %v4652 = vmax.f32 %v4596, 0.0
  %v4653 = vmax.f32 %v4597, 0.0
  %v4654 = vmax.f32 %v4598, 0.0
  %v4655 = vmax.f32 %v4599, 0.0
  %v4656 = vmax.f32 %v4600, 0.0
  %v4657 = vmax.f32 %v4601, 0.0
  %v4658 = vmax.f32 %v4602, 0.0
  %v4659 = vpack.c.bf16 %v4605, %v4603
  %v4660 = vpack.c.bf16 %v4606, %v4604
  %v4661 = vpack.c.bf16 %v4609, %v4607
  %v4662 = vpack.c.bf16 %v4610, %v4608
  %v4663 = vpack.c.bf16 %v4613, %v4611
  %v4664 = vpack.c.bf16 %v4614, %v4612
  %v4665 = vpack.c.bf16 %v4617, %v4615
  %v4666 = vpack.c.bf16 %v4618, %v4616
  %v4667 = vpack.c.bf16 %v4621, %v4619
  %v4668 = vpack.c.bf16 %v4622, %v4620
  %v4669 = vpack.c.bf16 %v4625, %v4623
  %v4670 = vpack.c.bf16 %v4626, %v4624
  %v4671 = vpack.c.bf16 %v4629, %v4627
  %v4672 = vpack.c.bf16 %v4630, %v4628
  %v4673 = vpack.c.bf16 %v4633, %v4631
  %v4674 = vpack.c.bf16 %v4634, %v4632
  %v4675 = vpack.c.bf16 %v4637, %v4635
  %v4676 = vpack.c.bf16 %v4638, %v4636
  %v4677 = vpack.c.bf16 %v4641, %v4639
  %v4678 = vpack.c.bf16 %v4642, %v4640
  %v4679 = vpack.c.bf16 %v4645, %v4643
  %v4680 = vpack.c.bf16 %v4646, %v4644
  %v4681 = vpack.c.bf16 %v4649, %v4647
  %v4682 = vpack.c.bf16 %v4650, %v4648
  %v4683 = vpack.c.bf16 %v4653, %v4651
  %v4684 = vpack.c.bf16 %v4654, %v4652
  %v4685 = vpack.c.bf16 %v4657, %v4655
  %v4686 = vpack.c.bf16 %v4658, %v4656
  %v4687 = vld [vmem:[%s4] sm:$0xf]
  %v4688 = vld [vmem:[%s4 + $0x4] sm:$0xf]
  %v4689 = vld [vmem:[%s4 + $0x8] sm:$0xf]
  %v4690 = vld [vmem:[%s4 + $0xc] sm:$0xf]
  %v4691 = vld [vmem:[%s4 + $0x10] sm:$0xf]
  %v4692 = vld [vmem:[%s4 + $0x14] sm:$0xf]
  %v4693 = vld [vmem:[%s4 + $0x18] sm:$0xf]
  %v4694 = vld [vmem:[%s4 + $0x1c] sm:$0xf]
  %v4695 = vld [vmem:[%s4 + $0x20] sm:$0xf]
  %v4696 = vld [vmem:[%s4 + $0x24] sm:$0xf]
  %v4697 = vld [vmem:[%s4 + $0x28] sm:$0xf]
  %v4698 = vld [vmem:[%s4 + $0x2c] sm:$0xf]
  %v4699 = vld [vmem:[%s4 + $0x30] sm:$0xf]
  %v4700 = vld [vmem:[%s4 + $0x34] sm:$0xf]
  %v4701 = vld [vmem:[%s4 + $0x38] sm:$0xf]
  %v4702 = vld [vmem:[%s4 + $0x3c] sm:$0xf]
  %v4703 = vld [vmem:[%s4 + $0x40] sm:$0xf]
  %v4704 = vld [vmem:[%s4 + $0x44] sm:$0xf]
  %v4705 = vld [vmem:[%s4 + $0x48] sm:$0xf]
  %v4706 = vld [vmem:[%s4 + $0x4c] sm:$0xf]
  %v4707 = vld [vmem:[%s4 + $0x50] sm:$0xf]
  %v4708 = vld [vmem:[%s4 + $0x54] sm:$0xf]
  %v4709 = vld [vmem:[%s4 + $0x58] sm:$0xf]
  %v4710 = vld [vmem:[%s4 + $0x5c] sm:$0xf]
  %v4711 = vld [vmem:[%s4 + $0x60] sm:$0xf]
  %v4712 = vld [vmem:[%s4 + $0x64] sm:$0xf]
  %v4713 = vld [vmem:[%s4 + $0x68] sm:$0xf]
  %v4714 = vld [vmem:[%s4 + $0x6c] sm:$0xf]
  %v4715 = vld [vmem:[%s4 + $0x70] sm:$0xf]
  %v4716 = vld [vmem:[%s4 + $0x74] sm:$0xf]
  %v4717 = vld [vmem:[%s4 + $0x78] sm:$0xf]
  %v4718 = vld [vmem:[%s4 + $0x7c] sm:$0xf]
  %v4719 = vld [vmem:[%s4 + $0x80] sm:$0xf]
  %v4720 = vld [vmem:[%s4 + $0x84] sm:$0xf]
  %v4721 = vld [vmem:[%s4 + $0x88] sm:$0xf]
  %v4722 = vld [vmem:[%s4 + $0x8c] sm:$0xf]
  %v4723 = vld [vmem:[%s4 + $0x90] sm:$0xf]
  %v4724 = vld [vmem:[%s4 + $0x94] sm:$0xf]
  %v4725 = vld [vmem:[%s4 + $0x98] sm:$0xf]
  %v4726 = vld [vmem:[%s4 + $0x9c] sm:$0xf]
  %v4727 = vld [vmem:[%s4 + $0xa0] sm:$0xf]
  %v4728 = vld [vmem:[%s4 + $0xa4] sm:$0xf]
  %v4729 = vld [vmem:[%s4 + $0xa8] sm:$0xf]
  %v4730 = vld [vmem:[%s4 + $0xac] sm:$0xf]
  %v4731 = vld [vmem:[%s4 + $0xb0] sm:$0xf]
  %v4732 = vld [vmem:[%s4 + $0xb4] sm:$0xf]
  %v4733 = vld [vmem:[%s4 + $0xb8] sm:$0xf]
  %v4734 = vld [vmem:[%s4 + $0xbc] sm:$0xf]
  %v4735 = vld [vmem:[%s4 + $0xc0] sm:$0xf]
  %v4736 = vld [vmem:[%s4 + $0xc4] sm:$0xf]
  %v4737 = vld [vmem:[%s4 + $0xc8] sm:$0xf]
  %v4738 = vld [vmem:[%s4 + $0xcc] sm:$0xf]
  %v4739 = vld [vmem:[%s4 + $0xd0] sm:$0xf]
  %v4740 = vld [vmem:[%s4 + $0xd4] sm:$0xf]
  %v4741 = vld [vmem:[%s4 + $0xd8] sm:$0xf]
  %v4742 = vld [vmem:[%s4 + $0xdc] sm:$0xf]
  %v4743 = vld [vmem:[%s4 + $0xe0] sm:$0xf]
  %v4744 = vld [vmem:[%s4 + $0xe4] sm:$0xf]
  %v4745 = vld [vmem:[%s4 + $0xe8] sm:$0xf]
  %v4746 = vld [vmem:[%s4 + $0xec] sm:$0xf]
  %v4747 = vld [vmem:[%s4 + $0xf0] sm:$0xf]
  %v4748 = vld [vmem:[%s4 + $0xf4] sm:$0xf]
  %v4749 = vld [vmem:[%s4 + $0xf8] sm:$0xf]
  %v4750 = vld [vmem:[%s4 + $0xfc] sm:$0xf]
  %v4751 = vld [vmem:[%s4 + $0x100] sm:$0xf]
  %v4752 = vld [vmem:[%s4 + $0x104] sm:$0xf]
  %v4753 = vld [vmem:[%s4 + $0x108] sm:$0xf]
  %v4754 = vld [vmem:[%s4 + $0x10c] sm:$0xf]
  %v4755 = vld [vmem:[%s4 + $0x110] sm:$0xf]
  %v4756 = vld [vmem:[%s4 + $0x114] sm:$0xf]
  %v4757 = vld [vmem:[%s4 + $0x118] sm:$0xf]
  %v4758 = vld [vmem:[%s4 + $0x11c] sm:$0xf]
  %v4759 = vld [vmem:[%s4 + $0x120] sm:$0xf]
  %v4760 = vld [vmem:[%s4 + $0x124] sm:$0xf]
  %v4761 = vld [vmem:[%s4 + $0x128] sm:$0xf]
  %v4762 = vld [vmem:[%s4 + $0x12c] sm:$0xf]
  %v4763 = vld [vmem:[%s4 + $0x130] sm:$0xf]
  %v4764 = vld [vmem:[%s4 + $0x134] sm:$0xf]
  %v4765 = vld [vmem:[%s4 + $0x138] sm:$0xf]
  %v4766 = vld [vmem:[%s4 + $0x13c] sm:$0xf]
  %v4767 = vld [vmem:[%s4 + $0x140] sm:$0xf]
  %v4768 = vld [vmem:[%s4 + $0x144] sm:$0xf]
  %v4769 = vld [vmem:[%s4 + $0x148] sm:$0xf]
  %v4770 = vld [vmem:[%s4 + $0x14c] sm:$0xf]
  %v4771 = vld [vmem:[%s4 + $0x150] sm:$0xf]
  %v4772 = vld [vmem:[%s4 + $0x154] sm:$0xf]
  %v4773 = vld [vmem:[%s4 + $0x158] sm:$0xf]
  %v4774 = vld [vmem:[%s4 + $0x15c] sm:$0xf]
  %v4775 = vld [vmem:[%s4 + $0x160] sm:$0xf]
  %v4776 = vld [vmem:[%s4 + $0x164] sm:$0xf]
  %v4777 = vld [vmem:[%s4 + $0x168] sm:$0xf]
  %v4778 = vld [vmem:[%s4 + $0x16c] sm:$0xf]
  %v4779 = vld [vmem:[%s4 + $0x170] sm:$0xf]
  %v4780 = vld [vmem:[%s4 + $0x174] sm:$0xf]
  %v4781 = vld [vmem:[%s4 + $0x178] sm:$0xf]
  %v4782 = vld [vmem:[%s4 + $0x17c] sm:$0xf]
  %v4783 = vld [vmem:[%s4 + $0x180] sm:$0xf]
  %v4784 = vld [vmem:[%s4 + $0x184] sm:$0xf]
  %v4785 = vld [vmem:[%s4 + $0x188] sm:$0xf]
  %v4786 = vld [vmem:[%s4 + $0x18c] sm:$0xf]
  %v4787 = vld [vmem:[%s4 + $0x190] sm:$0xf]
  %v4788 = vld [vmem:[%s4 + $0x194] sm:$0xf]
  %v4789 = vld [vmem:[%s4 + $0x198] sm:$0xf]
  %v4790 = vld [vmem:[%s4 + $0x19c] sm:$0xf]
  %v4791 = vld [vmem:[%s4 + $0x1a0] sm:$0xf]
  %v4792 = vld [vmem:[%s4 + $0x1a4] sm:$0xf]
  %v4793 = vld [vmem:[%s4 + $0x1a8] sm:$0xf]
  %v4794 = vld [vmem:[%s4 + $0x1ac] sm:$0xf]
  %v4795 = vld [vmem:[%s4 + $0x1b0] sm:$0xf]
  %v4796 = vld [vmem:[%s4 + $0x1b4] sm:$0xf]
  %v4797 = vld [vmem:[%s4 + $0x1b8] sm:$0xf]
  %v4798 = vld [vmem:[%s4 + $0x1bc] sm:$0xf]
  %v4799 = vld [vmem:[%s4 + $0x1c0] sm:$0xf]
  %v4800 = vld [vmem:[%s4 + $0x1c4] sm:$0xf]
  %v4801 = vld [vmem:[%s4 + $0x1c8] sm:$0xf]
  %v4802 = vld [vmem:[%s4 + $0x1cc] sm:$0xf]
  %v4803 = vld [vmem:[%s4 + $0x1d0] sm:$0xf]
  %v4804 = vld [vmem:[%s4 + $0x1d4] sm:$0xf]
  %v4805 = vld [vmem:[%s4 + $0x1d8] sm:$0xf]
  %v4806 = vld [vmem:[%s4 + $0x1dc] sm:$0xf]
  %v4807 = vld [vmem:[%s4 + $0x1e0] sm:$0xf]
  %v4808 = vld [vmem:[%s4 + $0x1e4] sm:$0xf]
  %v4809 = vld [vmem:[%s4 + $0x1e8] sm:$0xf]
  %v4810 = vld [vmem:[%s4 + $0x1ec] sm:$0xf]
  %v4811 = vld [vmem:[%s4 + $0x1f0] sm:$0xf]
  %v4812 = vld [vmem:[%s4 + $0x1f4] sm:$0xf]
  %v4813 = vld [vmem:[%s4 + $0x1f8] sm:$0xf]
  %v4814 = vld [vmem:[%s4 + $0x1fc] sm:$0xf]
  %v4815 = vld [vmem:[%s4 + $0x200] sm:$0xf]
  %v4816 = vld [vmem:[%s4 + $0x204] sm:$0xf]
  %v4817 = vld [vmem:[%s4 + $0x208] sm:$0xf]
  %v4818 = vld [vmem:[%s4 + $0x20c] sm:$0xf]
  %v4819 = vld [vmem:[%s4 + $0x210] sm:$0xf]
  %v4820 = vld [vmem:[%s4 + $0x214] sm:$0xf]
  %v4821 = vld [vmem:[%s4 + $0x218] sm:$0xf]
  %v4822 = vld [vmem:[%s4 + $0x21c] sm:$0xf]
  %v4823 = vld [vmem:[%s4 + $0x220] sm:$0xf]
  %v4824 = vld [vmem:[%s4 + $0x224] sm:$0xf]
  %v4825 = vld [vmem:[%s4 + $0x228] sm:$0xf]
  %v4826 = vld [vmem:[%s4 + $0x22c] sm:$0xf]
  %v4827 = vld [vmem:[%s4 + $0x230] sm:$0xf]
  %v4828 = vld [vmem:[%s4 + $0x234] sm:$0xf]
  %v4829 = vld [vmem:[%s4 + $0x238] sm:$0xf]
  %v4830 = vld [vmem:[%s4 + $0x23c] sm:$0xf]
  %v4831 = vld [vmem:[%s4 + $0x240] sm:$0xf]
  %v4832 = vld [vmem:[%s4 + $0x244] sm:$0xf]
  %v4833 = vld [vmem:[%s4 + $0x248] sm:$0xf]
  %v4834 = vld [vmem:[%s4 + $0x24c] sm:$0xf]
  %v4835 = vld [vmem:[%s4 + $0x250] sm:$0xf]
  %v4836 = vld [vmem:[%s4 + $0x254] sm:$0xf]
  %v4837 = vld [vmem:[%s4 + $0x258] sm:$0xf]
  %v4838 = vld [vmem:[%s4 + $0x25c] sm:$0xf]
  %v4839 = vld [vmem:[%s4 + $0x260] sm:$0xf]
  %v4840 = vld [vmem:[%s4 + $0x264] sm:$0xf]
  %v4841 = vld [vmem:[%s4 + $0x268] sm:$0xf]
  %v4842 = vld [vmem:[%s4 + $0x26c] sm:$0xf]
  %v4843 = vld [vmem:[%s4 + $0x270] sm:$0xf]
  %v4844 = vld [vmem:[%s4 + $0x274] sm:$0xf]
  %v4845 = vld [vmem:[%s4 + $0x278] sm:$0xf]
  %v4846 = vld [vmem:[%s4 + $0x27c] sm:$0xf]
  %v4847 = vld [vmem:[%s4 + $0x280] sm:$0xf]
  %v4848 = vld [vmem:[%s4 + $0x284] sm:$0xf]
  %v4849 = vld [vmem:[%s4 + $0x288] sm:$0xf]
  %v4850 = vld [vmem:[%s4 + $0x28c] sm:$0xf]
  %v4851 = vld [vmem:[%s4 + $0x290] sm:$0xf]
  %v4852 = vld [vmem:[%s4 + $0x294] sm:$0xf]
  %v4853 = vld [vmem:[%s4 + $0x298] sm:$0xf]
  %v4854 = vld [vmem:[%s4 + $0x29c] sm:$0xf]
  %v4855 = vld [vmem:[%s4 + $0x2a0] sm:$0xf]
  %v4856 = vld [vmem:[%s4 + $0x2a4] sm:$0xf]
  %v4857 = vld [vmem:[%s4 + $0x2a8] sm:$0xf]
  %v4858 = vld [vmem:[%s4 + $0x2ac] sm:$0xf]
  %v4859 = vld [vmem:[%s4 + $0x2b0] sm:$0xf]
  %v4860 = vld [vmem:[%s4 + $0x2b4] sm:$0xf]
  %v4861 = vld [vmem:[%s4 + $0x2b8] sm:$0xf]
  %v4862 = vld [vmem:[%s4 + $0x2bc] sm:$0xf]
  %v4863 = vld [vmem:[%s4 + $0x2c0] sm:$0xf]
  %v4864 = vld [vmem:[%s4 + $0x2c4] sm:$0xf]
  %v4865 = vld [vmem:[%s4 + $0x2c8] sm:$0xf]
  %v4866 = vld [vmem:[%s4 + $0x2cc] sm:$0xf]
  %v4867 = vld [vmem:[%s4 + $0x2d0] sm:$0xf]
  %v4868 = vld [vmem:[%s4 + $0x2d4] sm:$0xf]
  %v4869 = vld [vmem:[%s4 + $0x2d8] sm:$0xf]
  %v4870 = vld [vmem:[%s4 + $0x2dc] sm:$0xf]
  %v4871 = vld [vmem:[%s4 + $0x2e0] sm:$0xf]
  %v4872 = vld [vmem:[%s4 + $0x2e4] sm:$0xf]
  %v4873 = vld [vmem:[%s4 + $0x2e8] sm:$0xf]
  %v4874 = vld [vmem:[%s4 + $0x2ec] sm:$0xf]
  %v4875 = vld [vmem:[%s4 + $0x2f0] sm:$0xf]
  %v4876 = vld [vmem:[%s4 + $0x2f4] sm:$0xf]
  %v4877 = vld [vmem:[%s4 + $0x2f8] sm:$0xf]
  %v4878 = vld [vmem:[%s4 + $0x2fc] sm:$0xf]
  %v4879 = vld [vmem:[%s4 + $0x300] sm:$0xf]
  %v4880 = vld [vmem:[%s4 + $0x304] sm:$0xf]
  %v4881 = vld [vmem:[%s4 + $0x308] sm:$0xf]
  %v4882 = vld [vmem:[%s4 + $0x30c] sm:$0xf]
  %v4883 = vld [vmem:[%s4 + $0x310] sm:$0xf]
  %v4884 = vld [vmem:[%s4 + $0x314] sm:$0xf]
  %v4885 = vld [vmem:[%s4 + $0x318] sm:$0xf]
  %v4886 = vld [vmem:[%s4 + $0x31c] sm:$0xf]
  %v4887 = vld [vmem:[%s4 + $0x320] sm:$0xf]
  %v4888 = vld [vmem:[%s4 + $0x324] sm:$0xf]
  %v4889 = vld [vmem:[%s4 + $0x328] sm:$0xf]
  %v4890 = vld [vmem:[%s4 + $0x32c] sm:$0xf]
  %v4891 = vld [vmem:[%s4 + $0x330] sm:$0xf]
  %v4892 = vld [vmem:[%s4 + $0x334] sm:$0xf]
  %v4893 = vld [vmem:[%s4 + $0x338] sm:$0xf]
  %v4894 = vld [vmem:[%s4 + $0x33c] sm:$0xf]
  %v4895 = vld [vmem:[%s4 + $0x340] sm:$0xf]
  %v4896 = vld [vmem:[%s4 + $0x344] sm:$0xf]
  %v4897 = vld [vmem:[%s4 + $0x348] sm:$0xf]
  %v4898 = vld [vmem:[%s4 + $0x34c] sm:$0xf]
  %v4899 = vld [vmem:[%s4 + $0x350] sm:$0xf]
  %v4900 = vld [vmem:[%s4 + $0x354] sm:$0xf]
  %v4901 = vld [vmem:[%s4 + $0x358] sm:$0xf]
  %v4902 = vld [vmem:[%s4 + $0x35c] sm:$0xf]
  %v4903 = vld [vmem:[%s4 + $0x360] sm:$0xf]
  %v4904 = vld [vmem:[%s4 + $0x364] sm:$0xf]
  %v4905 = vld [vmem:[%s4 + $0x368] sm:$0xf]
  %v4906 = vld [vmem:[%s4 + $0x36c] sm:$0xf]
  %v4907 = vld [vmem:[%s4 + $0x370] sm:$0xf]
  %v4908 = vld [vmem:[%s4 + $0x374] sm:$0xf]
  %v4909 = vld [vmem:[%s4 + $0x378] sm:$0xf]
  %v4910 = vld [vmem:[%s4 + $0x37c] sm:$0xf]
  %v4911 = vld [vmem:[%s4 + $0x380] sm:$0xf]
  %v4912 = vld [vmem:[%s4 + $0x384] sm:$0xf]
  %v4913 = vld [vmem:[%s4 + $0x388] sm:$0xf]
  %v4914 = vld [vmem:[%s4 + $0x38c] sm:$0xf]
  %v4915 = vld [vmem:[%s4 + $0x390] sm:$0xf]
  %v4916 = vld [vmem:[%s4 + $0x394] sm:$0xf]
  %v4917 = vld [vmem:[%s4 + $0x398] sm:$0xf]
  %v4918 = vld [vmem:[%s4 + $0x39c] sm:$0xf]
  %v4919 = vld [vmem:[%s4 + $0x3a0] sm:$0xf]
  %v4920 = vld [vmem:[%s4 + $0x3a4] sm:$0xf]
  %v4921 = vld [vmem:[%s4 + $0x3a8] sm:$0xf]
  %v4922 = vld [vmem:[%s4 + $0x3ac] sm:$0xf]
  %v4923 = vld [vmem:[%s4 + $0x3b0] sm:$0xf]
  %v4924 = vld [vmem:[%s4 + $0x3b4] sm:$0xf]
  %v4925 = vld [vmem:[%s4 + $0x3b8] sm:$0xf]
  %v4926 = vld [vmem:[%s4 + $0x3bc] sm:$0xf]
  %v4927 = vld [vmem:[%s4 + $0x3c0] sm:$0xf]
  %v4928 = vld [vmem:[%s4 + $0x3c4] sm:$0xf]
  %v4929 = vld [vmem:[%s4 + $0x3c8] sm:$0xf]
  %v4930 = vld [vmem:[%s4 + $0x3cc] sm:$0xf]
  %v4931 = vld [vmem:[%s4 + $0x3d0] sm:$0xf]
  %v4932 = vld [vmem:[%s4 + $0x3d4] sm:$0xf]
  %v4933 = vld [vmem:[%s4 + $0x3d8] sm:$0xf]
  %v4934 = vld [vmem:[%s4 + $0x3dc] sm:$0xf]
  %v4935 = vld [vmem:[%s4 + $0x3e0] sm:$0xf]
  %v4936 = vld [vmem:[%s4 + $0x3e4] sm:$0xf]
  %v4937 = vld [vmem:[%s4 + $0x3e8] sm:$0xf]
  %v4938 = vld [vmem:[%s4 + $0x3ec] sm:$0xf]
  %v4939 = vld [vmem:[%s4 + $0x3f0] sm:$0xf]
  %v4940 = vld [vmem:[%s4 + $0x3f4] sm:$0xf]
  %v4941 = vld [vmem:[%s4 + $0x3f8] sm:$0xf]
  %v4942 = vld [vmem:[%s4 + $0x3fc] sm:$0xf]
  %v4943 = vld [vmem:[%s4 + $0x400] sm:$0xf]
  %v4944 = vld [vmem:[%s4 + $0x404] sm:$0xf]
  %v4945 = vld [vmem:[%s4 + $0x408] sm:$0xf]
  %v4946 = vld [vmem:[%s4 + $0x40c] sm:$0xf]
  %v4947 = vld [vmem:[%s4 + $0x410] sm:$0xf]
  %v4948 = vld [vmem:[%s4 + $0x414] sm:$0xf]
  %v4949 = vld [vmem:[%s4 + $0x418] sm:$0xf]
  %v4950 = vld [vmem:[%s4 + $0x41c] sm:$0xf]
  %v4951 = vld [vmem:[%s4 + $0x420] sm:$0xf]
  %v4952 = vld [vmem:[%s4 + $0x424] sm:$0xf]
  %v4953 = vld [vmem:[%s4 + $0x428] sm:$0xf]
  %v4954 = vld [vmem:[%s4 + $0x42c] sm:$0xf]
  %v4955 = vld [vmem:[%s4 + $0x430] sm:$0xf]
  %v4956 = vld [vmem:[%s4 + $0x434] sm:$0xf]
  %v4957 = vld [vmem:[%s4 + $0x438] sm:$0xf]
  %v4958 = vld [vmem:[%s4 + $0x43c] sm:$0xf]
  %v4959 = vld [vmem:[%s4 + $0x440] sm:$0xf]
  %v4960 = vld [vmem:[%s4 + $0x444] sm:$0xf]
  %v4961 = vld [vmem:[%s4 + $0x448] sm:$0xf]
  %v4962 = vld [vmem:[%s4 + $0x44c] sm:$0xf]
  %v4963 = vld [vmem:[%s4 + $0x450] sm:$0xf]
  %v4964 = vld [vmem:[%s4 + $0x454] sm:$0xf]
  %v4965 = vld [vmem:[%s4 + $0x458] sm:$0xf]
  %v4966 = vld [vmem:[%s4 + $0x45c] sm:$0xf]
  %v4967 = vld [vmem:[%s4 + $0x460] sm:$0xf]
  %v4968 = vld [vmem:[%s4 + $0x464] sm:$0xf]
  %v4969 = vld [vmem:[%s4 + $0x468] sm:$0xf]
  %v4970 = vld [vmem:[%s4 + $0x46c] sm:$0xf]
  %v4971 = vld [vmem:[%s4 + $0x470] sm:$0xf]
  %v4972 = vld [vmem:[%s4 + $0x474] sm:$0xf]
  %v4973 = vld [vmem:[%s4 + $0x478] sm:$0xf]
  %v4974 = vld [vmem:[%s4 + $0x47c] sm:$0xf]
  %v4975 = vld [vmem:[%s4 + $0x480] sm:$0xf]
  %v4976 = vld [vmem:[%s4 + $0x484] sm:$0xf]
  %v4977 = vld [vmem:[%s4 + $0x488] sm:$0xf]
  %v4978 = vld [vmem:[%s4 + $0x48c] sm:$0xf]
  %v4979 = vld [vmem:[%s4 + $0x490] sm:$0xf]
  %v4980 = vld [vmem:[%s4 + $0x494] sm:$0xf]
  %v4981 = vld [vmem:[%s4 + $0x498] sm:$0xf]
  %v4982 = vld [vmem:[%s4 + $0x49c] sm:$0xf]
  %v4983 = vld [vmem:[%s4 + $0x4a0] sm:$0xf]
  %v4984 = vld [vmem:[%s4 + $0x4a4] sm:$0xf]
  %v4985 = vld [vmem:[%s4 + $0x4a8] sm:$0xf]
  %v4986 = vld [vmem:[%s4 + $0x4ac] sm:$0xf]
  %v4987 = vld [vmem:[%s4 + $0x4b0] sm:$0xf]
  %v4988 = vld [vmem:[%s4 + $0x4b4] sm:$0xf]
  %v4989 = vld [vmem:[%s4 + $0x4b8] sm:$0xf]
  %v4990 = vld [vmem:[%s4 + $0x4bc] sm:$0xf]
  %v4991 = vld [vmem:[%s4 + $0x4c0] sm:$0xf]
  %v4992 = vld [vmem:[%s4 + $0x4c4] sm:$0xf]
  %v4993 = vld [vmem:[%s4 + $0x4c8] sm:$0xf]
  %v4994 = vld [vmem:[%s4 + $0x4cc] sm:$0xf]
  %v4995 = vld [vmem:[%s4 + $0x4d0] sm:$0xf]
  %v4996 = vld [vmem:[%s4 + $0x4d4] sm:$0xf]
  %v4997 = vld [vmem:[%s4 + $0x4d8] sm:$0xf]
  %v4998 = vld [vmem:[%s4 + $0x4dc] sm:$0xf]
  %v4999 = vld [vmem:[%s4 + $0x4e0] sm:$0xf]
  %v5000 = vld [vmem:[%s4 + $0x4e4] sm:$0xf]
  %v5001 = vld [vmem:[%s4 + $0x4e8] sm:$0xf]
  %v5002 = vld [vmem:[%s4 + $0x4ec] sm:$0xf]
  %v5003 = vld [vmem:[%s4 + $0x4f0] sm:$0xf]
  %v5004 = vld [vmem:[%s4 + $0x4f4] sm:$0xf]
  %v5005 = vld [vmem:[%s4 + $0x4f8] sm:$0xf]
  %v5006 = vld [vmem:[%s4 + $0x4fc] sm:$0xf]
  %v5007 = vld [vmem:[%s4 + $0x500] sm:$0xf]
  %v5008 = vld [vmem:[%s4 + $0x504] sm:$0xf]
  %v5009 = vld [vmem:[%s4 + $0x508] sm:$0xf]
  %v5010 = vld [vmem:[%s4 + $0x50c] sm:$0xf]
  %v5011 = vld [vmem:[%s4 + $0x510] sm:$0xf]
  %v5012 = vld [vmem:[%s4 + $0x514] sm:$0xf]
  %v5013 = vld [vmem:[%s4 + $0x518] sm:$0xf]
  %v5014 = vld [vmem:[%s4 + $0x51c] sm:$0xf]
  %v5015 = vld [vmem:[%s4 + $0x520] sm:$0xf]
  %v5016 = vld [vmem:[%s4 + $0x524] sm:$0xf]
  %v5017 = vld [vmem:[%s4 + $0x528] sm:$0xf]
  %v5018 = vld [vmem:[%s4 + $0x52c] sm:$0xf]
  %v5019 = vld [vmem:[%s4 + $0x530] sm:$0xf]
  %v5020 = vld [vmem:[%s4 + $0x534] sm:$0xf]
  %v5021 = vld [vmem:[%s4 + $0x538] sm:$0xf]
  %v5022 = vld [vmem:[%s4 + $0x53c] sm:$0xf]
  %v5023 = vld [vmem:[%s4 + $0x540] sm:$0xf]
  %v5024 = vld [vmem:[%s4 + $0x544] sm:$0xf]
  %v5025 = vld [vmem:[%s4 + $0x548] sm:$0xf]
  %v5026 = vld [vmem:[%s4 + $0x54c] sm:$0xf]
  %v5027 = vld [vmem:[%s4 + $0x550] sm:$0xf]
  %v5028 = vld [vmem:[%s4 + $0x554] sm:$0xf]
  %v5029 = vld [vmem:[%s4 + $0x558] sm:$0xf]
  %v5030 = vld [vmem:[%s4 + $0x55c] sm:$0xf]
  %v5031 = vld [vmem:[%s4 + $0x560] sm:$0xf]
  %v5032 = vld [vmem:[%s4 + $0x564] sm:$0xf]
  %v5033 = vld [vmem:[%s4 + $0x568] sm:$0xf]
  %v5034 = vld [vmem:[%s4 + $0x56c] sm:$0xf]
  %v5035 = vld [vmem:[%s4 + $0x570] sm:$0xf]
  %v5036 = vld [vmem:[%s4 + $0x574] sm:$0xf]
  %v5037 = vld [vmem:[%s4 + $0x578] sm:$0xf]
  %v5038 = vld [vmem:[%s4 + $0x57c] sm:$0xf]
  %v5039 = vld [vmem:[%s4 + $0x580] sm:$0xf]
  %v5040 = vld [vmem:[%s4 + $0x584] sm:$0xf]
  %v5041 = vld [vmem:[%s4 + $0x588] sm:$0xf]
  %v5042 = vld [vmem:[%s4 + $0x58c] sm:$0xf]
  %v5043 = vld [vmem:[%s4 + $0x590] sm:$0xf]
  %v5044 = vld [vmem:[%s4 + $0x594] sm:$0xf]
  %v5045 = vld [vmem:[%s4 + $0x598] sm:$0xf]
  %v5046 = vld [vmem:[%s4 + $0x59c] sm:$0xf]
  %v5047 = vld [vmem:[%s4 + $0x5a0] sm:$0xf]
  %v5048 = vld [vmem:[%s4 + $0x5a4] sm:$0xf]
  %v5049 = vld [vmem:[%s4 + $0x5a8] sm:$0xf]
  %v5050 = vld [vmem:[%s4 + $0x5ac] sm:$0xf]
  %v5051 = vld [vmem:[%s4 + $0x5b0] sm:$0xf]
  %v5052 = vld [vmem:[%s4 + $0x5b4] sm:$0xf]
  %v5053 = vld [vmem:[%s4 + $0x5b8] sm:$0xf]
  %v5054 = vld [vmem:[%s4 + $0x5bc] sm:$0xf]
  %v5055 = vld [vmem:[%s4 + $0x5c0] sm:$0xf]
  %v5056 = vld [vmem:[%s4 + $0x5c4] sm:$0xf]
  %v5057 = vld [vmem:[%s4 + $0x5c8] sm:$0xf]
  %v5058 = vld [vmem:[%s4 + $0x5cc] sm:$0xf]
  %v5059 = vld [vmem:[%s4 + $0x5d0] sm:$0xf]
  %v5060 = vld [vmem:[%s4 + $0x5d4] sm:$0xf]
  %v5061 = vld [vmem:[%s4 + $0x5d8] sm:$0xf]
  %v5062 = vld [vmem:[%s4 + $0x5dc] sm:$0xf]
  %v5063 = vld [vmem:[%s4 + $0x5e0] sm:$0xf]
  %v5064 = vld [vmem:[%s4 + $0x5e4] sm:$0xf]
  %v5065 = vld [vmem:[%s4 + $0x5e8] sm:$0xf]
  %v5066 = vld [vmem:[%s4 + $0x5ec] sm:$0xf]
  %v5067 = vld [vmem:[%s4 + $0x5f0] sm:$0xf]
  %v5068 = vld [vmem:[%s4 + $0x5f4] sm:$0xf]
  %v5069 = vld [vmem:[%s4 + $0x5f8] sm:$0xf]
  %v5070 = vld [vmem:[%s4 + $0x5fc] sm:$0xf]
  %v5071 = vld [vmem:[%s4 + $0x600] sm:$0xf]
  %v5072 = vld [vmem:[%s4 + $0x604] sm:$0xf]
  %v5073 = vld [vmem:[%s4 + $0x608] sm:$0xf]
  %v5074 = vld [vmem:[%s4 + $0x60c] sm:$0xf]
  %v5075 = vld [vmem:[%s4 + $0x610] sm:$0xf]
  %v5076 = vld [vmem:[%s4 + $0x614] sm:$0xf]
  %v5077 = vld [vmem:[%s4 + $0x618] sm:$0xf]
  %v5078 = vld [vmem:[%s4 + $0x61c] sm:$0xf]
  %v5079 = vld [vmem:[%s4 + $0x620] sm:$0xf]
  %v5080 = vld [vmem:[%s4 + $0x624] sm:$0xf]
  %v5081 = vld [vmem:[%s4 + $0x628] sm:$0xf]
  %v5082 = vld [vmem:[%s4 + $0x62c] sm:$0xf]
  %v5083 = vld [vmem:[%s4 + $0x630] sm:$0xf]
  %v5084 = vld [vmem:[%s4 + $0x634] sm:$0xf]
  %v5085 = vld [vmem:[%s4 + $0x638] sm:$0xf]
  %v5086 = vld [vmem:[%s4 + $0x63c] sm:$0xf]
  %v5087 = vld [vmem:[%s4 + $0x640] sm:$0xf]
  %v5088 = vld [vmem:[%s4 + $0x644] sm:$0xf]
  %v5089 = vld [vmem:[%s4 + $0x648] sm:$0xf]
  %v5090 = vld [vmem:[%s4 + $0x64c] sm:$0xf]
  %v5091 = vld [vmem:[%s4 + $0x650] sm:$0xf]
  %v5092 = vld [vmem:[%s4 + $0x654] sm:$0xf]
  %v5093 = vld [vmem:[%s4 + $0x658] sm:$0xf]
  %v5094 = vld [vmem:[%s4 + $0x65c] sm:$0xf]
  %v5095 = vld [vmem:[%s4 + $0x660] sm:$0xf]
  %v5096 = vld [vmem:[%s4 + $0x664] sm:$0xf]
  %v5097 = vld [vmem:[%s4 + $0x668] sm:$0xf]
  %v5098 = vld [vmem:[%s4 + $0x66c] sm:$0xf]
  %v5099 = vld [vmem:[%s4 + $0x670] sm:$0xf]
  %v5100 = vld [vmem:[%s4 + $0x674] sm:$0xf]
  %v5101 = vld [vmem:[%s4 + $0x678] sm:$0xf]
  %v5102 = vld [vmem:[%s4 + $0x67c] sm:$0xf]
  %v5103 = vld [vmem:[%s4 + $0x680] sm:$0xf]
  %v5104 = vld [vmem:[%s4 + $0x684] sm:$0xf]
  %v5105 = vld [vmem:[%s4 + $0x688] sm:$0xf]
  %v5106 = vld [vmem:[%s4 + $0x68c] sm:$0xf]
  %v5107 = vld [vmem:[%s4 + $0x690] sm:$0xf]
  %v5108 = vld [vmem:[%s4 + $0x694] sm:$0xf]
  %v5109 = vld [vmem:[%s4 + $0x698] sm:$0xf]
  %v5110 = vld [vmem:[%s4 + $0x69c] sm:$0xf]
  %v5111 = vld [vmem:[%s4 + $0x6a0] sm:$0xf]
  %v5112 = vld [vmem:[%s4 + $0x6a4] sm:$0xf]
  %v5113 = vld [vmem:[%s4 + $0x6a8] sm:$0xf]
  %v5114 = vld [vmem:[%s4 + $0x6ac] sm:$0xf]
  %v5115 = vld [vmem:[%s4 + $0x6b0] sm:$0xf]
  %v5116 = vld [vmem:[%s4 + $0x6b4] sm:$0xf]
  %v5117 = vld [vmem:[%s4 + $0x6b8] sm:$0xf]
  %v5118 = vld [vmem:[%s4 + $0x6bc] sm:$0xf]
  %v5119 = vld [vmem:[%s4 + $0x6c0] sm:$0xf]
  %v5120 = vld [vmem:[%s4 + $0x6c4] sm:$0xf]
  %v5121 = vld [vmem:[%s4 + $0x6c8] sm:$0xf]
  %v5122 = vld [vmem:[%s4 + $0x6cc] sm:$0xf]
  %v5123 = vld [vmem:[%s4 + $0x6d0] sm:$0xf]
  %v5124 = vld [vmem:[%s4 + $0x6d4] sm:$0xf]
  %v5125 = vld [vmem:[%s4 + $0x6d8] sm:$0xf]
  %v5126 = vld [vmem:[%s4 + $0x6dc] sm:$0xf]
  %v5127 = vld [vmem:[%s4 + $0x6e0] sm:$0xf]
  %v5128 = vld [vmem:[%s4 + $0x6e4] sm:$0xf]
  %v5129 = vld [vmem:[%s4 + $0x6e8] sm:$0xf]
  %v5130 = vld [vmem:[%s4 + $0x6ec] sm:$0xf]
  %v5131 = vld [vmem:[%s4 + $0x6f0] sm:$0xf]
  %v5132 = vld [vmem:[%s4 + $0x6f4] sm:$0xf]
  %v5133 = vld [vmem:[%s4 + $0x6f8] sm:$0xf]
  %v5134 = vld [vmem:[%s4 + $0x6fc] sm:$0xf]
  %v5167 = vunpack.c.l.b16 %v4687
  %v5168 = vunpack.c.l.b16 %v4688
  %v5169 = vunpack.c.l.b16 %v4689
  %v5170 = vunpack.c.l.b16 %v4690
  %v5171 = vunpack.c.l.b16 %v4691
  %v5172 = vunpack.c.l.b16 %v4692
  %v5173 = vunpack.c.l.b16 %v4693
  %v5174 = vunpack.c.l.b16 %v4694
  %v5175 = vunpack.c.l.b16 %v4695
  %v5176 = vunpack.c.l.b16 %v4696
  %v5177 = vunpack.c.l.b16 %v4697
  %v5178 = vunpack.c.l.b16 %v4698
  %v5179 = vunpack.c.l.b16 %v4699
  %v5180 = vunpack.c.l.b16 %v4700
  %v5181 = vunpack.c.l.b16 %v4701
  %v5182 = vunpack.c.l.b16 %v4702
  %v5183 = vunpack.c.l.b16 %v4703
  %v5184 = vunpack.c.l.b16 %v4704
  %v5185 = vunpack.c.l.b16 %v4705
  %v5186 = vunpack.c.l.b16 %v4706
  %v5187 = vunpack.c.l.b16 %v4707
  %v5188 = vunpack.c.l.b16 %v4708
  %v5189 = vunpack.c.l.b16 %v4709
  %v5190 = vunpack.c.l.b16 %v4710
  %v5191 = vunpack.c.l.b16 %v4711
  %v5192 = vunpack.c.l.b16 %v4712
  %v5193 = vunpack.c.l.b16 %v4713
  %v5194 = vunpack.c.l.b16 %v4714
  %v5195 = vunpack.c.l.b16 %v4715
  %v5196 = vunpack.c.l.b16 %v4716
  %v5197 = vunpack.c.l.b16 %v4717
  %v5198 = vunpack.c.l.b16 %v4718
  %v5199 = vpack.c.b16 %v5168, %v5167
  %v5200 = vpack.c.b16 %v5170, %v5169
  %v5201 = vpack.c.b16 %v5172, %v5171
  %v5202 = vpack.c.b16 %v5174, %v5173
  %v5203 = vpack.c.b16 %v5176, %v5175
  %v5204 = vpack.c.b16 %v5178, %v5177
  %v5205 = vpack.c.b16 %v5180, %v5179
  %v5206 = vpack.c.b16 %v5182, %v5181
  %v5207 = vpack.c.b16 %v5184, %v5183
  %v5208 = vpack.c.b16 %v5186, %v5185
  %v5209 = vpack.c.b16 %v5188, %v5187
  %v5210 = vpack.c.b16 %v5190, %v5189
  %v5211 = vpack.c.b16 %v5192, %v5191
  %v5212 = vpack.c.b16 %v5194, %v5193
  %v5213 = vpack.c.b16 %v5196, %v5195
  %v5214 = vpack.c.b16 %v5198, %v5197
  %5231 = vmatprep.subr.bf16.mxu0 0
  %5232 = vmatpush1.bf16.msra.mxu0 %v5206
  %5233 = vmatprep.subr.bf16.mxu0 0
  %5234 = vmatpush1.bf16.msra.mxu0 %v5205
  %5235 = vmatprep.subr.bf16.mxu0 0
  %5236 = vmatpush1.bf16.msra.mxu0 %v5204
  %5237 = vmatprep.subr.bf16.mxu0 0
  %5238 = vmatpush1.bf16.msra.mxu0 %v5203
  %5239 = vmatprep.subr.bf16.mxu0 0
  %5240 = vmatpush1.bf16.msra.mxu0 %v5202
  %5241 = vmatprep.subr.bf16.mxu0 0
  %5242 = vmatpush1.bf16.msra.mxu0 %v5201
  %5243 = vmatprep.subr.bf16.mxu0 0
  %5244 = vmatpush1.bf16.msra.mxu0 %v5200
  %5245 = vmatprep.subr.bf16.mxu0 0
  %5246 = vmatpush1.bf16.msra.mxu0 %v5199
  %5247 = vmatprep.subr.bf16.mxu0 0
  %5248 = vmatpush2.bf16.msra.mxu0 %v5214
  %5249 = vmatprep.subr.bf16.mxu0 0
  %5250 = vmatpush2.bf16.msra.mxu0 %v5213
  %5251 = vmatprep.subr.bf16.mxu0 0
  %5252 = vmatpush2.bf16.msra.mxu0 %v5212
  %5253 = vmatprep.subr.bf16.mxu0 0
  %5254 = vmatpush2.bf16.msra.mxu0 %v5211
  %5255 = vmatprep.subr.bf16.mxu0 0
  %5256 = vmatpush2.bf16.msra.mxu0 %v5210
  %5257 = vmatprep.subr.bf16.mxu0 0
  %5258 = vmatpush2.bf16.msra.mxu0 %v5209
  %5259 = vmatprep.subr.bf16.mxu0 0
  %5260 = vmatpush2.bf16.msra.mxu0 %v5208
  %5261 = vmatprep.subr.bf16.mxu0 0
  %5262 = vmatpush2.bf16.msra.mxu0 %v5207
  %5263 = vmatprep.mubr.bf16.mxu0 %v4660
  %5264 = vmatmul.mubr.bf16.gmra.mxu0 %v4659
  %v5265 = vpop.f32.mrf.mxu0
  %v5266 = vadd.f32 0.0, %v5265
  %v5267 = vpop.f32.mrf.mxu0
  %v5268 = vpop.f32.mrf.mxu0
  %v5269 = vadd.f32 0.0, %v5268
  %v5270 = vpop.f32.mrf.mxu0
  %5271 = vdwg.mxu0
  %v5304 = vunpack.c.l.b16 %v4719
  %v5305 = vunpack.c.l.b16 %v4720
  %v5306 = vunpack.c.l.b16 %v4721
  %v5307 = vunpack.c.l.b16 %v4722
  %v5308 = vunpack.c.l.b16 %v4723
  %v5309 = vunpack.c.l.b16 %v4724
  %v5310 = vunpack.c.l.b16 %v4725
  %v5311 = vunpack.c.l.b16 %v4726
  %v5312 = vunpack.c.l.b16 %v4727
  %v5313 = vunpack.c.l.b16 %v4728
  %v5314 = vunpack.c.l.b16 %v4729
  %v5315 = vunpack.c.l.b16 %v4730
  %v5316 = vunpack.c.l.b16 %v4731
  %v5317 = vunpack.c.l.b16 %v4732
  %v5318 = vunpack.c.l.b16 %v4733
  %v5319 = vunpack.c.l.b16 %v4734
  %v5320 = vunpack.c.l.b16 %v4735
  %v5321 = vunpack.c.l.b16 %v4736
  %v5322 = vunpack.c.l.b16 %v4737
  %v5323 = vunpack.c.l.b16 %v4738
  %v5324 = vunpack.c.l.b16 %v4739
  %v5325 = vunpack.c.l.b16 %v4740
  %v5326 = vunpack.c.l.b16 %v4741
  %v5327 = vunpack.c.l.b16 %v4742
  %v5328 = vunpack.c.l.b16 %v4743
  %v5329 = vunpack.c.l.b16 %v4744
  %v5330 = vunpack.c.l.b16 %v4745
  %v5331 = vunpack.c.l.b16 %v4746
  %v5332 = vunpack.c.l.b16 %v4747
  %v5333 = vunpack.c.l.b16 %v4748
  %v5334 = vunpack.c.l.b16 %v4749
  %v5335 = vunpack.c.l.b16 %v4750
  %v5336 = vpack.c.b16 %v5305, %v5304
  %v5337 = vpack.c.b16 %v5307, %v5306
  %v5338 = vpack.c.b16 %v5309, %v5308
  %v5339 = vpack.c.b16 %v5311, %v5310
  %v5340 = vpack.c.b16 %v5313, %v5312
  %v5341 = vpack.c.b16 %v5315, %v5314
  %v5342 = vpack.c.b16 %v5317, %v5316
  %v5343 = vpack.c.b16 %v5319, %v5318
  %v5344 = vpack.c.b16 %v5321, %v5320
  %v5345 = vpack.c.b16 %v5323, %v5322
  %v5346 = vpack.c.b16 %v5325, %v5324
  %v5347 = vpack.c.b16 %v5327, %v5326
  %v5348 = vpack.c.b16 %v5329, %v5328
  %v5349 = vpack.c.b16 %v5331, %v5330
  %v5350 = vpack.c.b16 %v5333, %v5332
  %v5351 = vpack.c.b16 %v5335, %v5334
  %5368 = vmatprep.subr.bf16.mxu0 0
  %5369 = vmatpush1.bf16.msra.mxu0 %v5343
  %5370 = vmatprep.subr.bf16.mxu0 0
  %5371 = vmatpush1.bf16.msra.mxu0 %v5342
  %5372 = vmatprep.subr.bf16.mxu0 0
  %5373 = vmatpush1.bf16.msra.mxu0 %v5341
  %5374 = vmatprep.subr.bf16.mxu0 0
  %5375 = vmatpush1.bf16.msra.mxu0 %v5340
  %5376 = vmatprep.subr.bf16.mxu0 0
  %5377 = vmatpush1.bf16.msra.mxu0 %v5339
  %5378 = vmatprep.subr.bf16.mxu0 0
  %5379 = vmatpush1.bf16.msra.mxu0 %v5338
  %5380 = vmatprep.subr.bf16.mxu0 0
  %5381 = vmatpush1.bf16.msra.mxu0 %v5337
  %5382 = vmatprep.subr.bf16.mxu0 0
  %5383 = vmatpush1.bf16.msra.mxu0 %v5336
  %5384 = vmatprep.subr.bf16.mxu0 0
  %5385 = vmatpush2.bf16.msra.mxu0 %v5351
  %5386 = vmatprep.subr.bf16.mxu0 0
  %5387 = vmatpush2.bf16.msra.mxu0 %v5350
  %5388 = vmatprep.subr.bf16.mxu0 0
  %5389 = vmatpush2.bf16.msra.mxu0 %v5349
  %5390 = vmatprep.subr.bf16.mxu0 0
  %5391 = vmatpush2.bf16.msra.mxu0 %v5348
  %5392 = vmatprep.subr.bf16.mxu0 0
  %5393 = vmatpush2.bf16.msra.mxu0 %v5347
  %5394 = vmatprep.subr.bf16.mxu0 0
  %5395 = vmatpush2.bf16.msra.mxu0 %v5346
  %5396 = vmatprep.subr.bf16.mxu0 0
  %5397 = vmatpush2.bf16.msra.mxu0 %v5345
  %5398 = vmatprep.subr.bf16.mxu0 0
  %5399 = vmatpush2.bf16.msra.mxu0 %v5344
  %5400 = vmatprep.mubr.bf16.mxu0 %v4662
  %5401 = vmatmul.mubr.bf16.gmra.mxu0 %v4661
  %v5402 = vpop.f32.mrf.mxu0
  %v5403 = vadd.f32 0.0, %v5402
  %v5404 = vpop.f32.mrf.mxu0
  %v5405 = vpop.f32.mrf.mxu0
  %v5406 = vadd.f32 0.0, %v5405
  %v5407 = vpop.f32.mrf.mxu0
  %5408 = vdwg.mxu0
  %v5441 = vunpack.c.l.b16 %v4751
  %v5442 = vunpack.c.l.b16 %v4752
  %v5443 = vunpack.c.l.b16 %v4753
  %v5444 = vunpack.c.l.b16 %v4754
  %v5445 = vunpack.c.l.b16 %v4755
  %v5446 = vunpack.c.l.b16 %v4756
  %v5447 = vunpack.c.l.b16 %v4757
  %v5448 = vunpack.c.l.b16 %v4758
  %v5449 = vunpack.c.l.b16 %v4759
  %v5450 = vunpack.c.l.b16 %v4760
  %v5451 = vunpack.c.l.b16 %v4761
  %v5452 = vunpack.c.l.b16 %v4762
  %v5453 = vunpack.c.l.b16 %v4763
  %v5454 = vunpack.c.l.b16 %v4764
  %v5455 = vunpack.c.l.b16 %v4765
  %v5456 = vunpack.c.l.b16 %v4766
  %v5457 = vunpack.c.l.b16 %v4767
  %v5458 = vunpack.c.l.b16 %v4768
  %v5459 = vunpack.c.l.b16 %v4769
  %v5460 = vunpack.c.l.b16 %v4770
  %v5461 = vunpack.c.l.b16 %v4771
  %v5462 = vunpack.c.l.b16 %v4772
  %v5463 = vunpack.c.l.b16 %v4773
  %v5464 = vunpack.c.l.b16 %v4774
  %v5465 = vunpack.c.l.b16 %v4775
  %v5466 = vunpack.c.l.b16 %v4776
  %v5467 = vunpack.c.l.b16 %v4777
  %v5468 = vunpack.c.l.b16 %v4778
  %v5469 = vunpack.c.l.b16 %v4779
  %v5470 = vunpack.c.l.b16 %v4780
  %v5471 = vunpack.c.l.b16 %v4781
  %v5472 = vunpack.c.l.b16 %v4782
  %v5473 = vpack.c.b16 %v5442, %v5441
  %v5474 = vpack.c.b16 %v5444, %v5443
  %v5475 = vpack.c.b16 %v5446, %v5445
  %v5476 = vpack.c.b16 %v5448, %v5447
  %v5477 = vpack.c.b16 %v5450, %v5449
  %v5478 = vpack.c.b16 %v5452, %v5451
  %v5479 = vpack.c.b16 %v5454, %v5453
  %v5480 = vpack.c.b16 %v5456, %v5455
  %v5481 = vpack.c.b16 %v5458, %v5457
  %v5482 = vpack.c.b16 %v5460, %v5459
  %v5483 = vpack.c.b16 %v5462, %v5461
  %v5484 = vpack.c.b16 %v5464, %v5463
  %v5485 = vpack.c.b16 %v5466, %v5465
  %v5486 = vpack.c.b16 %v5468, %v5467
  %v5487 = vpack.c.b16 %v5470, %v5469
  %v5488 = vpack.c.b16 %v5472, %v5471
  %5505 = vmatprep.subr.bf16.mxu0 0
  %5506 = vmatpush1.bf16.msra.mxu0 %v5480
  %5507 = vmatprep.subr.bf16.mxu0 0
  %5508 = vmatpush1.bf16.msra.mxu0 %v5479
  %5509 = vmatprep.subr.bf16.mxu0 0
  %5510 = vmatpush1.bf16.msra.mxu0 %v5478
  %5511 = vmatprep.subr.bf16.mxu0 0
  %5512 = vmatpush1.bf16.msra.mxu0 %v5477
  %5513 = vmatprep.subr.bf16.mxu0 0
  %5514 = vmatpush1.bf16.msra.mxu0 %v5476
  %5515 = vmatprep.subr.bf16.mxu0 0
  %5516 = vmatpush1.bf16.msra.mxu0 %v5475
  %5517 = vmatprep.subr.bf16.mxu0 0
  %5518 = vmatpush1.bf16.msra.mxu0 %v5474
  %5519 = vmatprep.subr.bf16.mxu0 0
  %5520 = vmatpush1.bf16.msra.mxu0 %v5473
  %5521 = vmatprep.subr.bf16.mxu0 0
  %5522 = vmatpush2.bf16.msra.mxu0 %v5488
  %5523 = vmatprep.subr.bf16.mxu0 0
  %5524 = vmatpush2.bf16.msra.mxu0 %v5487
  %5525 = vmatprep.subr.bf16.mxu0 0
  %5526 = vmatpush2.bf16.msra.mxu0 %v5486
  %5527 = vmatprep.subr.bf16.mxu0 0
  %5528 = vmatpush2.bf16.msra.mxu0 %v5485
  %5529 = vmatprep.subr.bf16.mxu0 0
  %5530 = vmatpush2.bf16.msra.mxu0 %v5484
  %5531 = vmatprep.subr.bf16.mxu0 0
  %5532 = vmatpush2.bf16.msra.mxu0 %v5483
  %5533 = vmatprep.subr.bf16.mxu0 0
  %5534 = vmatpush2.bf16.msra.mxu0 %v5482
  %5535 = vmatprep.subr.bf16.mxu0 0
  %5536 = vmatpush2.bf16.msra.mxu0 %v5481
  %5537 = vmatprep.mubr.bf16.mxu0 %v4664
  %5538 = vmatmul.mubr.bf16.gmra.mxu0 %v4663
  %v5539 = vpop.f32.mrf.mxu0
  %v5540 = vadd.f32 0.0, %v5539
  %v5541 = vpop.f32.mrf.mxu0
  %v5542 = vpop.f32.mrf.mxu0
  %v5543 = vadd.f32 0.0, %v5542
  %v5544 = vpop.f32.mrf.mxu0
  %5545 = vdwg.mxu0
  %v5578 = vunpack.c.l.b16 %v4783
  %v5579 = vunpack.c.l.b16 %v4784
  %v5580 = vunpack.c.l.b16 %v4785
  %v5581 = vunpack.c.l.b16 %v4786
  %v5582 = vunpack.c.l.b16 %v4787
  %v5583 = vunpack.c.l.b16 %v4788
  %v5584 = vunpack.c.l.b16 %v4789
  %v5585 = vunpack.c.l.b16 %v4790
  %v5586 = vunpack.c.l.b16 %v4791
  %v5587 = vunpack.c.l.b16 %v4792
  %v5588 = vunpack.c.l.b16 %v4793
  %v5589 = vunpack.c.l.b16 %v4794
  %v5590 = vunpack.c.l.b16 %v4795
  %v5591 = vunpack.c.l.b16 %v4796
  %v5592 = vunpack.c.l.b16 %v4797
  %v5593 = vunpack.c.l.b16 %v4798
  %v5594 = vunpack.c.l.b16 %v4799
  %v5595 = vunpack.c.l.b16 %v4800
  %v5596 = vunpack.c.l.b16 %v4801
  %v5597 = vunpack.c.l.b16 %v4802
  %v5598 = vunpack.c.l.b16 %v4803
  %v5599 = vunpack.c.l.b16 %v4804
  %v5600 = vunpack.c.l.b16 %v4805
  %v5601 = vunpack.c.l.b16 %v4806
  %v5602 = vunpack.c.l.b16 %v4807
  %v5603 = vunpack.c.l.b16 %v4808
  %v5604 = vunpack.c.l.b16 %v4809
  %v5605 = vunpack.c.l.b16 %v4810
  %v5606 = vunpack.c.l.b16 %v4811
  %v5607 = vunpack.c.l.b16 %v4812
  %v5608 = vunpack.c.l.b16 %v4813
  %v5609 = vunpack.c.l.b16 %v4814
  %v5610 = vpack.c.b16 %v5579, %v5578
  %v5611 = vpack.c.b16 %v5581, %v5580
  %v5612 = vpack.c.b16 %v5583, %v5582
  %v5613 = vpack.c.b16 %v5585, %v5584
  %v5614 = vpack.c.b16 %v5587, %v5586
  %v5615 = vpack.c.b16 %v5589, %v5588
  %v5616 = vpack.c.b16 %v5591, %v5590
  %v5617 = vpack.c.b16 %v5593, %v5592
  %v5618 = vpack.c.b16 %v5595, %v5594
  %v5619 = vpack.c.b16 %v5597, %v5596
  %v5620 = vpack.c.b16 %v5599, %v5598
  %v5621 = vpack.c.b16 %v5601, %v5600
  %v5622 = vpack.c.b16 %v5603, %v5602
  %v5623 = vpack.c.b16 %v5605, %v5604
  %v5624 = vpack.c.b16 %v5607, %v5606
  %v5625 = vpack.c.b16 %v5609, %v5608
  %5642 = vmatprep.subr.bf16.mxu0 0
  %5643 = vmatpush1.bf16.msra.mxu0 %v5617
  %5644 = vmatprep.subr.bf16.mxu0 0
  %5645 = vmatpush1.bf16.msra.mxu0 %v5616
  %5646 = vmatprep.subr.bf16.mxu0 0
  %5647 = vmatpush1.bf16.msra.mxu0 %v5615
  %5648 = vmatprep.subr.bf16.mxu0 0
  %5649 = vmatpush1.bf16.msra.mxu0 %v5614
  %5650 = vmatprep.subr.bf16.mxu0 0
  %5651 = vmatpush1.bf16.msra.mxu0 %v5613
  %5652 = vmatprep.subr.bf16.mxu0 0
  %5653 = vmatpush1.bf16.msra.mxu0 %v5612
  %5654 = vmatprep.subr.bf16.mxu0 0
  %5655 = vmatpush1.bf16.msra.mxu0 %v5611
  %5656 = vmatprep.subr.bf16.mxu0 0
  %5657 = vmatpush1.bf16.msra.mxu0 %v5610
  %5658 = vmatprep.subr.bf16.mxu0 0
  %5659 = vmatpush2.bf16.msra.mxu0 %v5625
  %5660 = vmatprep.subr.bf16.mxu0 0
  %5661 = vmatpush2.bf16.msra.mxu0 %v5624
  %5662 = vmatprep.subr.bf16.mxu0 0
  %5663 = vmatpush2.bf16.msra.mxu0 %v5623
  %5664 = vmatprep.subr.bf16.mxu0 0
  %5665 = vmatpush2.bf16.msra.mxu0 %v5622
  %5666 = vmatprep.subr.bf16.mxu0 0
  %5667 = vmatpush2.bf16.msra.mxu0 %v5621
  %5668 = vmatprep.subr.bf16.mxu0 0
  %5669 = vmatpush2.bf16.msra.mxu0 %v5620
  %5670 = vmatprep.subr.bf16.mxu0 0
  %5671 = vmatpush2.bf16.msra.mxu0 %v5619
  %5672 = vmatprep.subr.bf16.mxu0 0
  %5673 = vmatpush2.bf16.msra.mxu0 %v5618
  %5674 = vmatprep.mubr.bf16.mxu0 %v4666
  %5675 = vmatmul.mubr.bf16.gmra.mxu0 %v4665
  %v5676 = vpop.f32.mrf.mxu0
  %v5677 = vadd.f32 0.0, %v5676
  %v5678 = vpop.f32.mrf.mxu0
  %v5679 = vpop.f32.mrf.mxu0
  %v5680 = vadd.f32 0.0, %v5679
  %v5681 = vpop.f32.mrf.mxu0
  %5682 = vdwg.mxu0
  %v5715 = vunpack.c.l.b16 %v4815
  %v5716 = vunpack.c.l.b16 %v4816
  %v5717 = vunpack.c.l.b16 %v4817
  %v5718 = vunpack.c.l.b16 %v4818
  %v5719 = vunpack.c.l.b16 %v4819
  %v5720 = vunpack.c.l.b16 %v4820
  %v5721 = vunpack.c.l.b16 %v4821
  %v5722 = vunpack.c.l.b16 %v4822
  %v5723 = vunpack.c.l.b16 %v4823
  %v5724 = vunpack.c.l.b16 %v4824
  %v5725 = vunpack.c.l.b16 %v4825
  %v5726 = vunpack.c.l.b16 %v4826
  %v5727 = vunpack.c.l.b16 %v4827
  %v5728 = vunpack.c.l.b16 %v4828
  %v5729 = vunpack.c.l.b16 %v4829
  %v5730 = vunpack.c.l.b16 %v4830
  %v5731 = vunpack.c.l.b16 %v4831
  %v5732 = vunpack.c.l.b16 %v4832
  %v5733 = vunpack.c.l.b16 %v4833
  %v5734 = vunpack.c.l.b16 %v4834
  %v5735 = vunpack.c.l.b16 %v4835
  %v5736 = vunpack.c.l.b16 %v4836
  %v5737 = vunpack.c.l.b16 %v4837
  %v5738 = vunpack.c.l.b16 %v4838
  %v5739 = vunpack.c.l.b16 %v4839
  %v5740 = vunpack.c.l.b16 %v4840
  %v5741 = vunpack.c.l.b16 %v4841
  %v5742 = vunpack.c.l.b16 %v4842
  %v5743 = vunpack.c.l.b16 %v4843
  %v5744 = vunpack.c.l.b16 %v4844
  %v5745 = vunpack.c.l.b16 %v4845
  %v5746 = vunpack.c.l.b16 %v4846
  %v5747 = vpack.c.b16 %v5716, %v5715
  %v5748 = vpack.c.b16 %v5718, %v5717
  %v5749 = vpack.c.b16 %v5720, %v5719
  %v5750 = vpack.c.b16 %v5722, %v5721
  %v5751 = vpack.c.b16 %v5724, %v5723
  %v5752 = vpack.c.b16 %v5726, %v5725
  %v5753 = vpack.c.b16 %v5728, %v5727
  %v5754 = vpack.c.b16 %v5730, %v5729
  %v5755 = vpack.c.b16 %v5732, %v5731
  %v5756 = vpack.c.b16 %v5734, %v5733
  %v5757 = vpack.c.b16 %v5736, %v5735
  %v5758 = vpack.c.b16 %v5738, %v5737
  %v5759 = vpack.c.b16 %v5740, %v5739
  %v5760 = vpack.c.b16 %v5742, %v5741
  %v5761 = vpack.c.b16 %v5744, %v5743
  %v5762 = vpack.c.b16 %v5746, %v5745
  %5779 = vmatprep.subr.bf16.mxu0 0
  %5780 = vmatpush1.bf16.msra.mxu0 %v5754
  %5781 = vmatprep.subr.bf16.mxu0 0
  %5782 = vmatpush1.bf16.msra.mxu0 %v5753
  %5783 = vmatprep.subr.bf16.mxu0 0
  %5784 = vmatpush1.bf16.msra.mxu0 %v5752
  %5785 = vmatprep.subr.bf16.mxu0 0
  %5786 = vmatpush1.bf16.msra.mxu0 %v5751
  %5787 = vmatprep.subr.bf16.mxu0 0
  %5788 = vmatpush1.bf16.msra.mxu0 %v5750
  %5789 = vmatprep.subr.bf16.mxu0 0
  %5790 = vmatpush1.bf16.msra.mxu0 %v5749
  %5791 = vmatprep.subr.bf16.mxu0 0
  %5792 = vmatpush1.bf16.msra.mxu0 %v5748
  %5793 = vmatprep.subr.bf16.mxu0 0
  %5794 = vmatpush1.bf16.msra.mxu0 %v5747
  %5795 = vmatprep.subr.bf16.mxu0 0
  %5796 = vmatpush2.bf16.msra.mxu0 %v5762
  %5797 = vmatprep.subr.bf16.mxu0 0
  %5798 = vmatpush2.bf16.msra.mxu0 %v5761
  %5799 = vmatprep.subr.bf16.mxu0 0
  %5800 = vmatpush2.bf16.msra.mxu0 %v5760
  %5801 = vmatprep.subr.bf16.mxu0 0
  %5802 = vmatpush2.bf16.msra.mxu0 %v5759
  %5803 = vmatprep.subr.bf16.mxu0 0
  %5804 = vmatpush2.bf16.msra.mxu0 %v5758
  %5805 = vmatprep.subr.bf16.mxu0 0
  %5806 = vmatpush2.bf16.msra.mxu0 %v5757
  %5807 = vmatprep.subr.bf16.mxu0 0
  %5808 = vmatpush2.bf16.msra.mxu0 %v5756
  %5809 = vmatprep.subr.bf16.mxu0 0
  %5810 = vmatpush2.bf16.msra.mxu0 %v5755
  %5811 = vmatprep.mubr.bf16.mxu0 %v4668
  %5812 = vmatmul.mubr.bf16.gmra.mxu0 %v4667
  %v5813 = vpop.f32.mrf.mxu0
  %v5814 = vadd.f32 0.0, %v5813
  %v5815 = vpop.f32.mrf.mxu0
  %v5816 = vpop.f32.mrf.mxu0
  %v5817 = vadd.f32 0.0, %v5816
  %v5818 = vpop.f32.mrf.mxu0
  %5819 = vdwg.mxu0
  %v5852 = vunpack.c.l.b16 %v4847
  %v5853 = vunpack.c.l.b16 %v4848
  %v5854 = vunpack.c.l.b16 %v4849
  %v5855 = vunpack.c.l.b16 %v4850
  %v5856 = vunpack.c.l.b16 %v4851
  %v5857 = vunpack.c.l.b16 %v4852
  %v5858 = vunpack.c.l.b16 %v4853
  %v5859 = vunpack.c.l.b16 %v4854
  %v5860 = vunpack.c.l.b16 %v4855
  %v5861 = vunpack.c.l.b16 %v4856
  %v5862 = vunpack.c.l.b16 %v4857
  %v5863 = vunpack.c.l.b16 %v4858
  %v5864 = vunpack.c.l.b16 %v4859
  %v5865 = vunpack.c.l.b16 %v4860
  %v5866 = vunpack.c.l.b16 %v4861
  %v5867 = vunpack.c.l.b16 %v4862
  %v5868 = vunpack.c.l.b16 %v4863
  %v5869 = vunpack.c.l.b16 %v4864
  %v5870 = vunpack.c.l.b16 %v4865
  %v5871 = vunpack.c.l.b16 %v4866
  %v5872 = vunpack.c.l.b16 %v4867
  %v5873 = vunpack.c.l.b16 %v4868
  %v5874 = vunpack.c.l.b16 %v4869
  %v5875 = vunpack.c.l.b16 %v4870
  %v5876 = vunpack.c.l.b16 %v4871
  %v5877 = vunpack.c.l.b16 %v4872
  %v5878 = vunpack.c.l.b16 %v4873
  %v5879 = vunpack.c.l.b16 %v4874
  %v5880 = vunpack.c.l.b16 %v4875
  %v5881 = vunpack.c.l.b16 %v4876
  %v5882 = vunpack.c.l.b16 %v4877
  %v5883 = vunpack.c.l.b16 %v4878
  %v5884 = vpack.c.b16 %v5853, %v5852
  %v5885 = vpack.c.b16 %v5855, %v5854
  %v5886 = vpack.c.b16 %v5857, %v5856
  %v5887 = vpack.c.b16 %v5859, %v5858
  %v5888 = vpack.c.b16 %v5861, %v5860
  %v5889 = vpack.c.b16 %v5863, %v5862
  %v5890 = vpack.c.b16 %v5865, %v5864
  %v5891 = vpack.c.b16 %v5867, %v5866
  %v5892 = vpack.c.b16 %v5869, %v5868
  %v5893 = vpack.c.b16 %v5871, %v5870
  %v5894 = vpack.c.b16 %v5873, %v5872
  %v5895 = vpack.c.b16 %v5875, %v5874
  %v5896 = vpack.c.b16 %v5877, %v5876
  %v5897 = vpack.c.b16 %v5879, %v5878
  %v5898 = vpack.c.b16 %v5881, %v5880
  %v5899 = vpack.c.b16 %v5883, %v5882
  %5916 = vmatprep.subr.bf16.mxu0 0
  %5917 = vmatpush1.bf16.msra.mxu0 %v5891
  %5918 = vmatprep.subr.bf16.mxu0 0
  %5919 = vmatpush1.bf16.msra.mxu0 %v5890
  %5920 = vmatprep.subr.bf16.mxu0 0
  %5921 = vmatpush1.bf16.msra.mxu0 %v5889
  %5922 = vmatprep.subr.bf16.mxu0 0
  %5923 = vmatpush1.bf16.msra.mxu0 %v5888
  %5924 = vmatprep.subr.bf16.mxu0 0
  %5925 = vmatpush1.bf16.msra.mxu0 %v5887
  %5926 = vmatprep.subr.bf16.mxu0 0
  %5927 = vmatpush1.bf16.msra.mxu0 %v5886
  %5928 = vmatprep.subr.bf16.mxu0 0
  %5929 = vmatpush1.bf16.msra.mxu0 %v5885
  %5930 = vmatprep.subr.bf16.mxu0 0
  %5931 = vmatpush1.bf16.msra.mxu0 %v5884
  %5932 = vmatprep.subr.bf16.mxu0 0
  %5933 = vmatpush2.bf16.msra.mxu0 %v5899
  %5934 = vmatprep.subr.bf16.mxu0 0
  %5935 = vmatpush2.bf16.msra.mxu0 %v5898
  %5936 = vmatprep.subr.bf16.mxu0 0
  %5937 = vmatpush2.bf16.msra.mxu0 %v5897
  %5938 = vmatprep.subr.bf16.mxu0 0
  %5939 = vmatpush2.bf16.msra.mxu0 %v5896
  %5940 = vmatprep.subr.bf16.mxu0 0
  %5941 = vmatpush2.bf16.msra.mxu0 %v5895
  %5942 = vmatprep.subr.bf16.mxu0 0
  %5943 = vmatpush2.bf16.msra.mxu0 %v5894
  %5944 = vmatprep.subr.bf16.mxu0 0
  %5945 = vmatpush2.bf16.msra.mxu0 %v5893
  %5946 = vmatprep.subr.bf16.mxu0 0
  %5947 = vmatpush2.bf16.msra.mxu0 %v5892
  %5948 = vmatprep.mubr.bf16.mxu0 %v4670
  %5949 = vmatmul.mubr.bf16.gmra.mxu0 %v4669
  %v5950 = vpop.f32.mrf.mxu0
  %v5951 = vadd.f32 0.0, %v5950
  %v5952 = vpop.f32.mrf.mxu0
  %v5953 = vpop.f32.mrf.mxu0
  %v5954 = vadd.f32 0.0, %v5953
  %v5955 = vpop.f32.mrf.mxu0
  %5956 = vdwg.mxu0
  %v5989 = vunpack.c.l.b16 %v4879
  %v5990 = vunpack.c.l.b16 %v4880
  %v5991 = vunpack.c.l.b16 %v4881
  %v5992 = vunpack.c.l.b16 %v4882
  %v5993 = vunpack.c.l.b16 %v4883
  %v5994 = vunpack.c.l.b16 %v4884
  %v5995 = vunpack.c.l.b16 %v4885
  %v5996 = vunpack.c.l.b16 %v4886
  %v5997 = vunpack.c.l.b16 %v4887
  %v5998 = vunpack.c.l.b16 %v4888
  %v5999 = vunpack.c.l.b16 %v4889
  %v6000 = vunpack.c.l.b16 %v4890
  %v6001 = vunpack.c.l.b16 %v4891
  %v6002 = vunpack.c.l.b16 %v4892
  %v6003 = vunpack.c.l.b16 %v4893
  %v6004 = vunpack.c.l.b16 %v4894
  %v6005 = vunpack.c.l.b16 %v4895
  %v6006 = vunpack.c.l.b16 %v4896
  %v6007 = vunpack.c.l.b16 %v4897
  %v6008 = vunpack.c.l.b16 %v4898
  %v6009 = vunpack.c.l.b16 %v4899
  %v6010 = vunpack.c.l.b16 %v4900
  %v6011 = vunpack.c.l.b16 %v4901
  %v6012 = vunpack.c.l.b16 %v4902
  %v6013 = vunpack.c.l.b16 %v4903
  %v6014 = vunpack.c.l.b16 %v4904
  %v6015 = vunpack.c.l.b16 %v4905
  %v6016 = vunpack.c.l.b16 %v4906
  %v6017 = vunpack.c.l.b16 %v4907
  %v6018 = vunpack.c.l.b16 %v4908
  %v6019 = vunpack.c.l.b16 %v4909
  %v6020 = vunpack.c.l.b16 %v4910
  %v6021 = vpack.c.b16 %v5990, %v5989
  %v6022 = vpack.c.b16 %v5992, %v5991
  %v6023 = vpack.c.b16 %v5994, %v5993
  %v6024 = vpack.c.b16 %v5996, %v5995
  %v6025 = vpack.c.b16 %v5998, %v5997
  %v6026 = vpack.c.b16 %v6000, %v5999
  %v6027 = vpack.c.b16 %v6002, %v6001
  %v6028 = vpack.c.b16 %v6004, %v6003
  %v6029 = vpack.c.b16 %v6006, %v6005
  %v6030 = vpack.c.b16 %v6008, %v6007
  %v6031 = vpack.c.b16 %v6010, %v6009
  %v6032 = vpack.c.b16 %v6012, %v6011
  %v6033 = vpack.c.b16 %v6014, %v6013
  %v6034 = vpack.c.b16 %v6016, %v6015
  %v6035 = vpack.c.b16 %v6018, %v6017
  %v6036 = vpack.c.b16 %v6020, %v6019
  %6053 = vmatprep.subr.bf16.mxu0 0
  %6054 = vmatpush1.bf16.msra.mxu0 %v6028
  %6055 = vmatprep.subr.bf16.mxu0 0
  %6056 = vmatpush1.bf16.msra.mxu0 %v6027
  %6057 = vmatprep.subr.bf16.mxu0 0
  %6058 = vmatpush1.bf16.msra.mxu0 %v6026
  %6059 = vmatprep.subr.bf16.mxu0 0
  %6060 = vmatpush1.bf16.msra.mxu0 %v6025
  %6061 = vmatprep.subr.bf16.mxu0 0
  %6062 = vmatpush1.bf16.msra.mxu0 %v6024
  %6063 = vmatprep.subr.bf16.mxu0 0
  %6064 = vmatpush1.bf16.msra.mxu0 %v6023
  %6065 = vmatprep.subr.bf16.mxu0 0
  %6066 = vmatpush1.bf16.msra.mxu0 %v6022
  %6067 = vmatprep.subr.bf16.mxu0 0
  %6068 = vmatpush1.bf16.msra.mxu0 %v6021
  %6069 = vmatprep.subr.bf16.mxu0 0
  %6070 = vmatpush2.bf16.msra.mxu0 %v6036
  %6071 = vmatprep.subr.bf16.mxu0 0
  %6072 = vmatpush2.bf16.msra.mxu0 %v6035
  %6073 = vmatprep.subr.bf16.mxu0 0
  %6074 = vmatpush2.bf16.msra.mxu0 %v6034
  %6075 = vmatprep.subr.bf16.mxu0 0
  %6076 = vmatpush2.bf16.msra.mxu0 %v6033
  %6077 = vmatprep.subr.bf16.mxu0 0
  %6078 = vmatpush2.bf16.msra.mxu0 %v6032
  %6079 = vmatprep.subr.bf16.mxu0 0
  %6080 = vmatpush2.bf16.msra.mxu0 %v6031
  %6081 = vmatprep.subr.bf16.mxu0 0
  %6082 = vmatpush2.bf16.msra.mxu0 %v6030
  %6083 = vmatprep.subr.bf16.mxu0 0
  %6084 = vmatpush2.bf16.msra.mxu0 %v6029
  %6085 = vmatprep.mubr.bf16.mxu0 %v4672
  %6086 = vmatmul.mubr.bf16.gmra.mxu0 %v4671
  %v6087 = vpop.f32.mrf.mxu0
  %v6088 = vadd.f32 0.0, %v6087
  %v6089 = vpop.f32.mrf.mxu0
  %v6090 = vpop.f32.mrf.mxu0
  %v6091 = vadd.f32 0.0, %v6090
  %v6092 = vpop.f32.mrf.mxu0
  %6093 = vdwg.mxu0
  %v6126 = vunpack.c.l.b16 %v4911
  %v6127 = vunpack.c.l.b16 %v4912
  %v6128 = vunpack.c.l.b16 %v4913
  %v6129 = vunpack.c.l.b16 %v4914
  %v6130 = vunpack.c.l.b16 %v4915
  %v6131 = vunpack.c.l.b16 %v4916
  %v6132 = vunpack.c.l.b16 %v4917
  %v6133 = vunpack.c.l.b16 %v4918
  %v6134 = vunpack.c.l.b16 %v4919
  %v6135 = vunpack.c.l.b16 %v4920
  %v6136 = vunpack.c.l.b16 %v4921
  %v6137 = vunpack.c.l.b16 %v4922
  %v6138 = vunpack.c.l.b16 %v4923
  %v6139 = vunpack.c.l.b16 %v4924
  %v6140 = vunpack.c.l.b16 %v4925
  %v6141 = vunpack.c.l.b16 %v4926
  %v6142 = vunpack.c.l.b16 %v4927
  %v6143 = vunpack.c.l.b16 %v4928
  %v6144 = vunpack.c.l.b16 %v4929
  %v6145 = vunpack.c.l.b16 %v4930
  %v6146 = vunpack.c.l.b16 %v4931
  %v6147 = vunpack.c.l.b16 %v4932
  %v6148 = vunpack.c.l.b16 %v4933
  %v6149 = vunpack.c.l.b16 %v4934
  %v6150 = vunpack.c.l.b16 %v4935
  %v6151 = vunpack.c.l.b16 %v4936
  %v6152 = vunpack.c.l.b16 %v4937
  %v6153 = vunpack.c.l.b16 %v4938
  %v6154 = vunpack.c.l.b16 %v4939
  %v6155 = vunpack.c.l.b16 %v4940
  %v6156 = vunpack.c.l.b16 %v4941
  %v6157 = vunpack.c.l.b16 %v4942
  %v6158 = vpack.c.b16 %v6127, %v6126
  %v6159 = vpack.c.b16 %v6129, %v6128
  %v6160 = vpack.c.b16 %v6131, %v6130
  %v6161 = vpack.c.b16 %v6133, %v6132
  %v6162 = vpack.c.b16 %v6135, %v6134
  %v6163 = vpack.c.b16 %v6137, %v6136
  %v6164 = vpack.c.b16 %v6139, %v6138
  %v6165 = vpack.c.b16 %v6141, %v6140
  %v6166 = vpack.c.b16 %v6143, %v6142
  %v6167 = vpack.c.b16 %v6145, %v6144
  %v6168 = vpack.c.b16 %v6147, %v6146
  %v6169 = vpack.c.b16 %v6149, %v6148
  %v6170 = vpack.c.b16 %v6151, %v6150
  %v6171 = vpack.c.b16 %v6153, %v6152
  %v6172 = vpack.c.b16 %v6155, %v6154
  %v6173 = vpack.c.b16 %v6157, %v6156
  %6190 = vmatprep.subr.bf16.mxu0 0
  %6191 = vmatpush1.bf16.msra.mxu0 %v6165
  %6192 = vmatprep.subr.bf16.mxu0 0
  %6193 = vmatpush1.bf16.msra.mxu0 %v6164
  %6194 = vmatprep.subr.bf16.mxu0 0
  %6195 = vmatpush1.bf16.msra.mxu0 %v6163
  %6196 = vmatprep.subr.bf16.mxu0 0
  %6197 = vmatpush1.bf16.msra.mxu0 %v6162
  %6198 = vmatprep.subr.bf16.mxu0 0
  %6199 = vmatpush1.bf16.msra.mxu0 %v6161
  %6200 = vmatprep.subr.bf16.mxu0 0
  %6201 = vmatpush1.bf16.msra.mxu0 %v6160
  %6202 = vmatprep.subr.bf16.mxu0 0
  %6203 = vmatpush1.bf16.msra.mxu0 %v6159
  %6204 = vmatprep.subr.bf16.mxu0 0
  %6205 = vmatpush1.bf16.msra.mxu0 %v6158
  %6206 = vmatprep.subr.bf16.mxu0 0
  %6207 = vmatpush2.bf16.msra.mxu0 %v6173
  %6208 = vmatprep.subr.bf16.mxu0 0
  %6209 = vmatpush2.bf16.msra.mxu0 %v6172
  %6210 = vmatprep.subr.bf16.mxu0 0
  %6211 = vmatpush2.bf16.msra.mxu0 %v6171
  %6212 = vmatprep.subr.bf16.mxu0 0
  %6213 = vmatpush2.bf16.msra.mxu0 %v6170
  %6214 = vmatprep.subr.bf16.mxu0 0
  %6215 = vmatpush2.bf16.msra.mxu0 %v6169
  %6216 = vmatprep.subr.bf16.mxu0 0
  %6217 = vmatpush2.bf16.msra.mxu0 %v6168
  %6218 = vmatprep.subr.bf16.mxu0 0
  %6219 = vmatpush2.bf16.msra.mxu0 %v6167
  %6220 = vmatprep.subr.bf16.mxu0 0
  %6221 = vmatpush2.bf16.msra.mxu0 %v6166
  %6222 = vmatprep.mubr.bf16.mxu0 %v4674
  %6223 = vmatmul.mubr.bf16.gmra.mxu0 %v4673
  %v6224 = vpop.f32.mrf.mxu0
  %v6225 = vadd.f32 0.0, %v6224
  %v6226 = vpop.f32.mrf.mxu0
  %v6227 = vpop.f32.mrf.mxu0
  %v6228 = vadd.f32 0.0, %v6227
  %v6229 = vpop.f32.mrf.mxu0
  %6230 = vdwg.mxu0
  %v6263 = vunpack.c.l.b16 %v4943
  %v6264 = vunpack.c.l.b16 %v4944
  %v6265 = vunpack.c.l.b16 %v4945
  %v6266 = vunpack.c.l.b16 %v4946
  %v6267 = vunpack.c.l.b16 %v4947
  %v6268 = vunpack.c.l.b16 %v4948
  %v6269 = vunpack.c.l.b16 %v4949
  %v6270 = vunpack.c.l.b16 %v4950
  %v6271 = vunpack.c.l.b16 %v4951
  %v6272 = vunpack.c.l.b16 %v4952
  %v6273 = vunpack.c.l.b16 %v4953
  %v6274 = vunpack.c.l.b16 %v4954
  %v6275 = vunpack.c.l.b16 %v4955
  %v6276 = vunpack.c.l.b16 %v4956
  %v6277 = vunpack.c.l.b16 %v4957
  %v6278 = vunpack.c.l.b16 %v4958
  %v6279 = vunpack.c.l.b16 %v4959
  %v6280 = vunpack.c.l.b16 %v4960
  %v6281 = vunpack.c.l.b16 %v4961
  %v6282 = vunpack.c.l.b16 %v4962
  %v6283 = vunpack.c.l.b16 %v4963
  %v6284 = vunpack.c.l.b16 %v4964
  %v6285 = vunpack.c.l.b16 %v4965
  %v6286 = vunpack.c.l.b16 %v4966
  %v6287 = vunpack.c.l.b16 %v4967
  %v6288 = vunpack.c.l.b16 %v4968
  %v6289 = vunpack.c.l.b16 %v4969
  %v6290 = vunpack.c.l.b16 %v4970
  %v6291 = vunpack.c.l.b16 %v4971
  %v6292 = vunpack.c.l.b16 %v4972
  %v6293 = vunpack.c.l.b16 %v4973
  %v6294 = vunpack.c.l.b16 %v4974
  %v6295 = vpack.c.b16 %v6264, %v6263
  %v6296 = vpack.c.b16 %v6266, %v6265
  %v6297 = vpack.c.b16 %v6268, %v6267
  %v6298 = vpack.c.b16 %v6270, %v6269
  %v6299 = vpack.c.b16 %v6272, %v6271
  %v6300 = vpack.c.b16 %v6274, %v6273
  %v6301 = vpack.c.b16 %v6276, %v6275
  %v6302 = vpack.c.b16 %v6278, %v6277
  %v6303 = vpack.c.b16 %v6280, %v6279
  %v6304 = vpack.c.b16 %v6282, %v6281
  %v6305 = vpack.c.b16 %v6284, %v6283
  %v6306 = vpack.c.b16 %v6286, %v6285
  %v6307 = vpack.c.b16 %v6288, %v6287
  %v6308 = vpack.c.b16 %v6290, %v6289
  %v6309 = vpack.c.b16 %v6292, %v6291
  %v6310 = vpack.c.b16 %v6294, %v6293
  %6327 = vmatprep.subr.bf16.mxu0 0
  %6328 = vmatpush1.bf16.msra.mxu0 %v6302
  %6329 = vmatprep.subr.bf16.mxu0 0
  %6330 = vmatpush1.bf16.msra.mxu0 %v6301
  %6331 = vmatprep.subr.bf16.mxu0 0
  %6332 = vmatpush1.bf16.msra.mxu0 %v6300
  %6333 = vmatprep.subr.bf16.mxu0 0
  %6334 = vmatpush1.bf16.msra.mxu0 %v6299
  %6335 = vmatprep.subr.bf16.mxu0 0
  %6336 = vmatpush1.bf16.msra.mxu0 %v6298
  %6337 = vmatprep.subr.bf16.mxu0 0
  %6338 = vmatpush1.bf16.msra.mxu0 %v6297
  %6339 = vmatprep.subr.bf16.mxu0 0
  %6340 = vmatpush1.bf16.msra.mxu0 %v6296
  %6341 = vmatprep.subr.bf16.mxu0 0
  %6342 = vmatpush1.bf16.msra.mxu0 %v6295
  %6343 = vmatprep.subr.bf16.mxu0 0
  %6344 = vmatpush2.bf16.msra.mxu0 %v6310
  %6345 = vmatprep.subr.bf16.mxu0 0
  %6346 = vmatpush2.bf16.msra.mxu0 %v6309
  %6347 = vmatprep.subr.bf16.mxu0 0
  %6348 = vmatpush2.bf16.msra.mxu0 %v6308
  %6349 = vmatprep.subr.bf16.mxu0 0
  %6350 = vmatpush2.bf16.msra.mxu0 %v6307
  %6351 = vmatprep.subr.bf16.mxu0 0
  %6352 = vmatpush2.bf16.msra.mxu0 %v6306
  %6353 = vmatprep.subr.bf16.mxu0 0
  %6354 = vmatpush2.bf16.msra.mxu0 %v6305
  %6355 = vmatprep.subr.bf16.mxu0 0
  %6356 = vmatpush2.bf16.msra.mxu0 %v6304
  %6357 = vmatprep.subr.bf16.mxu0 0
  %6358 = vmatpush2.bf16.msra.mxu0 %v6303
  %6359 = vmatprep.mubr.bf16.mxu0 %v4676
  %6360 = vmatmul.mubr.bf16.gmra.mxu0 %v4675
  %v6361 = vpop.f32.mrf.mxu0
  %v6362 = vadd.f32 0.0, %v6361
  %v6363 = vpop.f32.mrf.mxu0
  %v6364 = vpop.f32.mrf.mxu0
  %v6365 = vadd.f32 0.0, %v6364
  %v6366 = vpop.f32.mrf.mxu0
  %6367 = vdwg.mxu0
  %v6400 = vunpack.c.l.b16 %v4975
  %v6401 = vunpack.c.l.b16 %v4976
  %v6402 = vunpack.c.l.b16 %v4977
  %v6403 = vunpack.c.l.b16 %v4978
  %v6404 = vunpack.c.l.b16 %v4979
  %v6405 = vunpack.c.l.b16 %v4980
  %v6406 = vunpack.c.l.b16 %v4981
  %v6407 = vunpack.c.l.b16 %v4982
  %v6408 = vunpack.c.l.b16 %v4983
  %v6409 = vunpack.c.l.b16 %v4984
  %v6410 = vunpack.c.l.b16 %v4985
  %v6411 = vunpack.c.l.b16 %v4986
  %v6412 = vunpack.c.l.b16 %v4987
  %v6413 = vunpack.c.l.b16 %v4988
  %v6414 = vunpack.c.l.b16 %v4989
  %v6415 = vunpack.c.l.b16 %v4990
  %v6416 = vunpack.c.l.b16 %v4991
  %v6417 = vunpack.c.l.b16 %v4992
  %v6418 = vunpack.c.l.b16 %v4993
  %v6419 = vunpack.c.l.b16 %v4994
  %v6420 = vunpack.c.l.b16 %v4995
  %v6421 = vunpack.c.l.b16 %v4996
  %v6422 = vunpack.c.l.b16 %v4997
  %v6423 = vunpack.c.l.b16 %v4998
  %v6424 = vunpack.c.l.b16 %v4999
  %v6425 = vunpack.c.l.b16 %v5000
  %v6426 = vunpack.c.l.b16 %v5001
  %v6427 = vunpack.c.l.b16 %v5002
  %v6428 = vunpack.c.l.b16 %v5003
  %v6429 = vunpack.c.l.b16 %v5004
  %v6430 = vunpack.c.l.b16 %v5005
  %v6431 = vunpack.c.l.b16 %v5006
  %v6432 = vpack.c.b16 %v6401, %v6400
  %v6433 = vpack.c.b16 %v6403, %v6402
  %v6434 = vpack.c.b16 %v6405, %v6404
  %v6435 = vpack.c.b16 %v6407, %v6406
  %v6436 = vpack.c.b16 %v6409, %v6408
  %v6437 = vpack.c.b16 %v6411, %v6410
  %v6438 = vpack.c.b16 %v6413, %v6412
  %v6439 = vpack.c.b16 %v6415, %v6414
  %v6440 = vpack.c.b16 %v6417, %v6416
  %v6441 = vpack.c.b16 %v6419, %v6418
  %v6442 = vpack.c.b16 %v6421, %v6420
  %v6443 = vpack.c.b16 %v6423, %v6422
  %v6444 = vpack.c.b16 %v6425, %v6424
  %v6445 = vpack.c.b16 %v6427, %v6426
  %v6446 = vpack.c.b16 %v6429, %v6428
  %v6447 = vpack.c.b16 %v6431, %v6430
  %6464 = vmatprep.subr.bf16.mxu0 0
  %6465 = vmatpush1.bf16.msra.mxu0 %v6439
  %6466 = vmatprep.subr.bf16.mxu0 0
  %6467 = vmatpush1.bf16.msra.mxu0 %v6438
  %6468 = vmatprep.subr.bf16.mxu0 0
  %6469 = vmatpush1.bf16.msra.mxu0 %v6437
  %6470 = vmatprep.subr.bf16.mxu0 0
  %6471 = vmatpush1.bf16.msra.mxu0 %v6436
  %6472 = vmatprep.subr.bf16.mxu0 0
  %6473 = vmatpush1.bf16.msra.mxu0 %v6435
  %6474 = vmatprep.subr.bf16.mxu0 0
  %6475 = vmatpush1.bf16.msra.mxu0 %v6434
  %6476 = vmatprep.subr.bf16.mxu0 0
  %6477 = vmatpush1.bf16.msra.mxu0 %v6433
  %6478 = vmatprep.subr.bf16.mxu0 0
  %6479 = vmatpush1.bf16.msra.mxu0 %v6432
  %6480 = vmatprep.subr.bf16.mxu0 0
  %6481 = vmatpush2.bf16.msra.mxu0 %v6447
  %6482 = vmatprep.subr.bf16.mxu0 0
  %6483 = vmatpush2.bf16.msra.mxu0 %v6446
  %6484 = vmatprep.subr.bf16.mxu0 0
  %6485 = vmatpush2.bf16.msra.mxu0 %v6445
  %6486 = vmatprep.subr.bf16.mxu0 0
  %6487 = vmatpush2.bf16.msra.mxu0 %v6444
  %6488 = vmatprep.subr.bf16.mxu0 0
  %6489 = vmatpush2.bf16.msra.mxu0 %v6443
  %6490 = vmatprep.subr.bf16.mxu0 0
  %6491 = vmatpush2.bf16.msra.mxu0 %v6442
  %6492 = vmatprep.subr.bf16.mxu0 0
  %6493 = vmatpush2.bf16.msra.mxu0 %v6441
  %6494 = vmatprep.subr.bf16.mxu0 0
  %6495 = vmatpush2.bf16.msra.mxu0 %v6440
  %6496 = vmatprep.mubr.bf16.mxu0 %v4678
  %6497 = vmatmul.mubr.bf16.gmra.mxu0 %v4677
  %v6498 = vpop.f32.mrf.mxu0
  %v6499 = vadd.f32 0.0, %v6498
  %v6500 = vpop.f32.mrf.mxu0
  %v6501 = vpop.f32.mrf.mxu0
  %v6502 = vadd.f32 0.0, %v6501
  %v6503 = vpop.f32.mrf.mxu0
  %6504 = vdwg.mxu0
  %v6537 = vunpack.c.l.b16 %v5007
  %v6538 = vunpack.c.l.b16 %v5008
  %v6539 = vunpack.c.l.b16 %v5009
  %v6540 = vunpack.c.l.b16 %v5010
  %v6541 = vunpack.c.l.b16 %v5011
  %v6542 = vunpack.c.l.b16 %v5012
  %v6543 = vunpack.c.l.b16 %v5013
  %v6544 = vunpack.c.l.b16 %v5014
  %v6545 = vunpack.c.l.b16 %v5015
  %v6546 = vunpack.c.l.b16 %v5016
  %v6547 = vunpack.c.l.b16 %v5017
  %v6548 = vunpack.c.l.b16 %v5018
  %v6549 = vunpack.c.l.b16 %v5019
  %v6550 = vunpack.c.l.b16 %v5020
  %v6551 = vunpack.c.l.b16 %v5021
  %v6552 = vunpack.c.l.b16 %v5022
  %v6553 = vunpack.c.l.b16 %v5023
  %v6554 = vunpack.c.l.b16 %v5024
  %v6555 = vunpack.c.l.b16 %v5025
  %v6556 = vunpack.c.l.b16 %v5026
  %v6557 = vunpack.c.l.b16 %v5027
  %v6558 = vunpack.c.l.b16 %v5028
  %v6559 = vunpack.c.l.b16 %v5029
  %v6560 = vunpack.c.l.b16 %v5030
  %v6561 = vunpack.c.l.b16 %v5031
  %v6562 = vunpack.c.l.b16 %v5032
  %v6563 = vunpack.c.l.b16 %v5033
  %v6564 = vunpack.c.l.b16 %v5034
  %v6565 = vunpack.c.l.b16 %v5035
  %v6566 = vunpack.c.l.b16 %v5036
  %v6567 = vunpack.c.l.b16 %v5037
  %v6568 = vunpack.c.l.b16 %v5038
  %v6569 = vpack.c.b16 %v6538, %v6537
  %v6570 = vpack.c.b16 %v6540, %v6539
  %v6571 = vpack.c.b16 %v6542, %v6541
  %v6572 = vpack.c.b16 %v6544, %v6543
  %v6573 = vpack.c.b16 %v6546, %v6545
  %v6574 = vpack.c.b16 %v6548, %v6547
  %v6575 = vpack.c.b16 %v6550, %v6549
  %v6576 = vpack.c.b16 %v6552, %v6551
  %v6577 = vpack.c.b16 %v6554, %v6553
  %v6578 = vpack.c.b16 %v6556, %v6555
  %v6579 = vpack.c.b16 %v6558, %v6557
  %v6580 = vpack.c.b16 %v6560, %v6559
  %v6581 = vpack.c.b16 %v6562, %v6561
  %v6582 = vpack.c.b16 %v6564, %v6563
  %v6583 = vpack.c.b16 %v6566, %v6565
  %v6584 = vpack.c.b16 %v6568, %v6567
  %6601 = vmatprep.subr.bf16.mxu0 0
  %6602 = vmatpush1.bf16.msra.mxu0 %v6576
  %6603 = vmatprep.subr.bf16.mxu0 0
  %6604 = vmatpush1.bf16.msra.mxu0 %v6575
  %6605 = vmatprep.subr.bf16.mxu0 0
  %6606 = vmatpush1.bf16.msra.mxu0 %v6574
  %6607 = vmatprep.subr.bf16.mxu0 0
  %6608 = vmatpush1.bf16.msra.mxu0 %v6573
  %6609 = vmatprep.subr.bf16.mxu0 0
  %6610 = vmatpush1.bf16.msra.mxu0 %v6572
  %6611 = vmatprep.subr.bf16.mxu0 0
  %6612 = vmatpush1.bf16.msra.mxu0 %v6571
  %6613 = vmatprep.subr.bf16.mxu0 0
  %6614 = vmatpush1.bf16.msra.mxu0 %v6570
  %6615 = vmatprep.subr.bf16.mxu0 0
  %6616 = vmatpush1.bf16.msra.mxu0 %v6569
  %6617 = vmatprep.subr.bf16.mxu0 0
  %6618 = vmatpush2.bf16.msra.mxu0 %v6584
  %6619 = vmatprep.subr.bf16.mxu0 0
  %6620 = vmatpush2.bf16.msra.mxu0 %v6583
  %6621 = vmatprep.subr.bf16.mxu0 0
  %6622 = vmatpush2.bf16.msra.mxu0 %v6582
  %6623 = vmatprep.subr.bf16.mxu0 0
  %6624 = vmatpush2.bf16.msra.mxu0 %v6581
  %6625 = vmatprep.subr.bf16.mxu0 0
  %6626 = vmatpush2.bf16.msra.mxu0 %v6580
  %6627 = vmatprep.subr.bf16.mxu0 0
  %6628 = vmatpush2.bf16.msra.mxu0 %v6579
  %6629 = vmatprep.subr.bf16.mxu0 0
  %6630 = vmatpush2.bf16.msra.mxu0 %v6578
  %6631 = vmatprep.subr.bf16.mxu0 0
  %6632 = vmatpush2.bf16.msra.mxu0 %v6577
  %6633 = vmatprep.mubr.bf16.mxu0 %v4680
  %6634 = vmatmul.mubr.bf16.gmra.mxu0 %v4679
  %v6635 = vpop.f32.mrf.mxu0
  %v6636 = vadd.f32 0.0, %v6635
  %v6637 = vpop.f32.mrf.mxu0
  %v6638 = vpop.f32.mrf.mxu0
  %v6639 = vadd.f32 0.0, %v6638
  %v6640 = vpop.f32.mrf.mxu0
  %6641 = vdwg.mxu0
  %v6674 = vunpack.c.l.b16 %v5039
  %v6675 = vunpack.c.l.b16 %v5040
  %v6676 = vunpack.c.l.b16 %v5041
  %v6677 = vunpack.c.l.b16 %v5042
  %v6678 = vunpack.c.l.b16 %v5043
  %v6679 = vunpack.c.l.b16 %v5044
  %v6680 = vunpack.c.l.b16 %v5045
  %v6681 = vunpack.c.l.b16 %v5046
  %v6682 = vunpack.c.l.b16 %v5047
  %v6683 = vunpack.c.l.b16 %v5048
  %v6684 = vunpack.c.l.b16 %v5049
  %v6685 = vunpack.c.l.b16 %v5050
  %v6686 = vunpack.c.l.b16 %v5051
  %v6687 = vunpack.c.l.b16 %v5052
  %v6688 = vunpack.c.l.b16 %v5053
  %v6689 = vunpack.c.l.b16 %v5054
  %v6690 = vunpack.c.l.b16 %v5055
  %v6691 = vunpack.c.l.b16 %v5056
  %v6692 = vunpack.c.l.b16 %v5057
  %v6693 = vunpack.c.l.b16 %v5058
  %v6694 = vunpack.c.l.b16 %v5059
  %v6695 = vunpack.c.l.b16 %v5060
  %v6696 = vunpack.c.l.b16 %v5061
  %v6697 = vunpack.c.l.b16 %v5062
  %v6698 = vunpack.c.l.b16 %v5063
  %v6699 = vunpack.c.l.b16 %v5064
  %v6700 = vunpack.c.l.b16 %v5065
  %v6701 = vunpack.c.l.b16 %v5066
  %v6702 = vunpack.c.l.b16 %v5067
  %v6703 = vunpack.c.l.b16 %v5068
  %v6704 = vunpack.c.l.b16 %v5069
  %v6705 = vunpack.c.l.b16 %v5070
  %v6706 = vpack.c.b16 %v6675, %v6674
  %v6707 = vpack.c.b16 %v6677, %v6676
  %v6708 = vpack.c.b16 %v6679, %v6678
  %v6709 = vpack.c.b16 %v6681, %v6680
  %v6710 = vpack.c.b16 %v6683, %v6682
  %v6711 = vpack.c.b16 %v6685, %v6684
  %v6712 = vpack.c.b16 %v6687, %v6686
  %v6713 = vpack.c.b16 %v6689, %v6688
  %v6714 = vpack.c.b16 %v6691, %v6690
  %v6715 = vpack.c.b16 %v6693, %v6692
  %v6716 = vpack.c.b16 %v6695, %v6694
  %v6717 = vpack.c.b16 %v6697, %v6696
  %v6718 = vpack.c.b16 %v6699, %v6698
  %v6719 = vpack.c.b16 %v6701, %v6700
  %v6720 = vpack.c.b16 %v6703, %v6702
  %v6721 = vpack.c.b16 %v6705, %v6704
  %6738 = vmatprep.subr.bf16.mxu0 0
  %6739 = vmatpush1.bf16.msra.mxu0 %v6713
  %6740 = vmatprep.subr.bf16.mxu0 0
  %6741 = vmatpush1.bf16.msra.mxu0 %v6712
  %6742 = vmatprep.subr.bf16.mxu0 0
  %6743 = vmatpush1.bf16.msra.mxu0 %v6711
  %6744 = vmatprep.subr.bf16.mxu0 0
  %6745 = vmatpush1.bf16.msra.mxu0 %v6710
  %6746 = vmatprep.subr.bf16.mxu0 0
  %6747 = vmatpush1.bf16.msra.mxu0 %v6709
  %6748 = vmatprep.subr.bf16.mxu0 0
  %6749 = vmatpush1.bf16.msra.mxu0 %v6708
  %6750 = vmatprep.subr.bf16.mxu0 0
  %6751 = vmatpush1.bf16.msra.mxu0 %v6707
  %6752 = vmatprep.subr.bf16.mxu0 0
  %6753 = vmatpush1.bf16.msra.mxu0 %v6706
  %6754 = vmatprep.subr.bf16.mxu0 0
  %6755 = vmatpush2.bf16.msra.mxu0 %v6721
  %6756 = vmatprep.subr.bf16.mxu0 0
  %6757 = vmatpush2.bf16.msra.mxu0 %v6720
  %6758 = vmatprep.subr.bf16.mxu0 0
  %6759 = vmatpush2.bf16.msra.mxu0 %v6719
  %6760 = vmatprep.subr.bf16.mxu0 0
  %6761 = vmatpush2.bf16.msra.mxu0 %v6718
  %6762 = vmatprep.subr.bf16.mxu0 0
  %6763 = vmatpush2.bf16.msra.mxu0 %v6717
  %6764 = vmatprep.subr.bf16.mxu0 0
  %6765 = vmatpush2.bf16.msra.mxu0 %v6716
  %6766 = vmatprep.subr.bf16.mxu0 0
  %6767 = vmatpush2.bf16.msra.mxu0 %v6715
  %6768 = vmatprep.subr.bf16.mxu0 0
  %6769 = vmatpush2.bf16.msra.mxu0 %v6714
  %6770 = vmatprep.mubr.bf16.mxu0 %v4682
  %6771 = vmatmul.mubr.bf16.gmra.mxu0 %v4681
  %v6772 = vpop.f32.mrf.mxu0
  %v6773 = vadd.f32 0.0, %v6772
  %v6774 = vpop.f32.mrf.mxu0
  %v6775 = vpop.f32.mrf.mxu0
  %v6776 = vadd.f32 0.0, %v6775
  %v6777 = vpop.f32.mrf.mxu0
  %6778 = vdwg.mxu0
  %v6811 = vunpack.c.l.b16 %v5071
  %v6812 = vunpack.c.l.b16 %v5072
  %v6813 = vunpack.c.l.b16 %v5073
  %v6814 = vunpack.c.l.b16 %v5074
  %v6815 = vunpack.c.l.b16 %v5075
  %v6816 = vunpack.c.l.b16 %v5076
  %v6817 = vunpack.c.l.b16 %v5077
  %v6818 = vunpack.c.l.b16 %v5078
  %v6819 = vunpack.c.l.b16 %v5079
  %v6820 = vunpack.c.l.b16 %v5080
  %v6821 = vunpack.c.l.b16 %v5081
  %v6822 = vunpack.c.l.b16 %v5082
  %v6823 = vunpack.c.l.b16 %v5083
  %v6824 = vunpack.c.l.b16 %v5084
  %v6825 = vunpack.c.l.b16 %v5085
  %v6826 = vunpack.c.l.b16 %v5086
  %v6827 = vunpack.c.l.b16 %v5087
  %v6828 = vunpack.c.l.b16 %v5088
  %v6829 = vunpack.c.l.b16 %v5089
  %v6830 = vunpack.c.l.b16 %v5090
  %v6831 = vunpack.c.l.b16 %v5091
  %v6832 = vunpack.c.l.b16 %v5092
  %v6833 = vunpack.c.l.b16 %v5093
  %v6834 = vunpack.c.l.b16 %v5094
  %v6835 = vunpack.c.l.b16 %v5095
  %v6836 = vunpack.c.l.b16 %v5096
  %v6837 = vunpack.c.l.b16 %v5097
  %v6838 = vunpack.c.l.b16 %v5098
  %v6839 = vunpack.c.l.b16 %v5099
  %v6840 = vunpack.c.l.b16 %v5100
  %v6841 = vunpack.c.l.b16 %v5101
  %v6842 = vunpack.c.l.b16 %v5102
  %v6843 = vpack.c.b16 %v6812, %v6811
  %v6844 = vpack.c.b16 %v6814, %v6813
  %v6845 = vpack.c.b16 %v6816, %v6815
  %v6846 = vpack.c.b16 %v6818, %v6817
  %v6847 = vpack.c.b16 %v6820, %v6819
  %v6848 = vpack.c.b16 %v6822, %v6821
  %v6849 = vpack.c.b16 %v6824, %v6823
  %v6850 = vpack.c.b16 %v6826, %v6825
  %v6851 = vpack.c.b16 %v6828, %v6827
  %v6852 = vpack.c.b16 %v6830, %v6829
  %v6853 = vpack.c.b16 %v6832, %v6831
  %v6854 = vpack.c.b16 %v6834, %v6833
  %v6855 = vpack.c.b16 %v6836, %v6835
  %v6856 = vpack.c.b16 %v6838, %v6837
  %v6857 = vpack.c.b16 %v6840, %v6839
  %v6858 = vpack.c.b16 %v6842, %v6841
  %6875 = vmatprep.subr.bf16.mxu0 0
  %6876 = vmatpush1.bf16.msra.mxu0 %v6850
  %6877 = vmatprep.subr.bf16.mxu0 0
  %6878 = vmatpush1.bf16.msra.mxu0 %v6849
  %6879 = vmatprep.subr.bf16.mxu0 0
  %6880 = vmatpush1.bf16.msra.mxu0 %v6848
  %6881 = vmatprep.subr.bf16.mxu0 0
  %6882 = vmatpush1.bf16.msra.mxu0 %v6847
  %6883 = vmatprep.subr.bf16.mxu0 0
  %6884 = vmatpush1.bf16.msra.mxu0 %v6846
  %6885 = vmatprep.subr.bf16.mxu0 0
  %6886 = vmatpush1.bf16.msra.mxu0 %v6845
  %6887 = vmatprep.subr.bf16.mxu0 0
  %6888 = vmatpush1.bf16.msra.mxu0 %v6844
  %6889 = vmatprep.subr.bf16.mxu0 0
  %6890 = vmatpush1.bf16.msra.mxu0 %v6843
  %6891 = vmatprep.subr.bf16.mxu0 0
  %6892 = vmatpush2.bf16.msra.mxu0 %v6858
  %6893 = vmatprep.subr.bf16.mxu0 0
  %6894 = vmatpush2.bf16.msra.mxu0 %v6857
  %6895 = vmatprep.subr.bf16.mxu0 0
  %6896 = vmatpush2.bf16.msra.mxu0 %v6856
  %6897 = vmatprep.subr.bf16.mxu0 0
  %6898 = vmatpush2.bf16.msra.mxu0 %v6855
  %6899 = vmatprep.subr.bf16.mxu0 0
  %6900 = vmatpush2.bf16.msra.mxu0 %v6854
  %6901 = vmatprep.subr.bf16.mxu0 0
  %6902 = vmatpush2.bf16.msra.mxu0 %v6853
  %6903 = vmatprep.subr.bf16.mxu0 0
  %6904 = vmatpush2.bf16.msra.mxu0 %v6852
  %6905 = vmatprep.subr.bf16.mxu0 0
  %6906 = vmatpush2.bf16.msra.mxu0 %v6851
  %6907 = vmatprep.mubr.bf16.mxu0 %v4684
  %6908 = vmatmul.mubr.bf16.gmra.mxu0 %v4683
  %v6909 = vpop.f32.mrf.mxu0
  %v6910 = vadd.f32 0.0, %v6909
  %v6911 = vpop.f32.mrf.mxu0
  %v6912 = vpop.f32.mrf.mxu0
  %v6913 = vadd.f32 0.0, %v6912
  %v6914 = vpop.f32.mrf.mxu0
  %6915 = vdwg.mxu0
  %v6948 = vunpack.c.l.b16 %v5103
  %v6949 = vunpack.c.l.b16 %v5104
  %v6950 = vunpack.c.l.b16 %v5105
  %v6951 = vunpack.c.l.b16 %v5106
  %v6952 = vunpack.c.l.b16 %v5107
  %v6953 = vunpack.c.l.b16 %v5108
  %v6954 = vunpack.c.l.b16 %v5109
  %v6955 = vunpack.c.l.b16 %v5110
  %v6956 = vunpack.c.l.b16 %v5111
  %v6957 = vunpack.c.l.b16 %v5112
  %v6958 = vunpack.c.l.b16 %v5113
  %v6959 = vunpack.c.l.b16 %v5114
  %v6960 = vunpack.c.l.b16 %v5115
  %v6961 = vunpack.c.l.b16 %v5116
  %v6962 = vunpack.c.l.b16 %v5117
  %v6963 = vunpack.c.l.b16 %v5118
  %v6964 = vunpack.c.l.b16 %v5119
  %v6965 = vunpack.c.l.b16 %v5120
  %v6966 = vunpack.c.l.b16 %v5121
  %v6967 = vunpack.c.l.b16 %v5122
  %v6968 = vunpack.c.l.b16 %v5123
  %v6969 = vunpack.c.l.b16 %v5124
  %v6970 = vunpack.c.l.b16 %v5125
  %v6971 = vunpack.c.l.b16 %v5126
  %v6972 = vunpack.c.l.b16 %v5127
  %v6973 = vunpack.c.l.b16 %v5128
  %v6974 = vunpack.c.l.b16 %v5129
  %v6975 = vunpack.c.l.b16 %v5130
  %v6976 = vunpack.c.l.b16 %v5131
  %v6977 = vunpack.c.l.b16 %v5132
  %v6978 = vunpack.c.l.b16 %v5133
  %v6979 = vunpack.c.l.b16 %v5134
  %v6980 = vpack.c.b16 %v6949, %v6948
  %v6981 = vpack.c.b16 %v6951, %v6950
  %v6982 = vpack.c.b16 %v6953, %v6952
  %v6983 = vpack.c.b16 %v6955, %v6954
  %v6984 = vpack.c.b16 %v6957, %v6956
  %v6985 = vpack.c.b16 %v6959, %v6958
  %v6986 = vpack.c.b16 %v6961, %v6960
  %v6987 = vpack.c.b16 %v6963, %v6962
  %v6988 = vpack.c.b16 %v6965, %v6964
  %v6989 = vpack.c.b16 %v6967, %v6966
  %v6990 = vpack.c.b16 %v6969, %v6968
  %v6991 = vpack.c.b16 %v6971, %v6970
  %v6992 = vpack.c.b16 %v6973, %v6972
  %v6993 = vpack.c.b16 %v6975, %v6974
  %v6994 = vpack.c.b16 %v6977, %v6976
  %v6995 = vpack.c.b16 %v6979, %v6978
  %7012 = vmatprep.subr.bf16.mxu0 0
  %7013 = vmatpush1.bf16.msra.mxu0 %v6987
  %7014 = vmatprep.subr.bf16.mxu0 0
  %7015 = vmatpush1.bf16.msra.mxu0 %v6986
  %7016 = vmatprep.subr.bf16.mxu0 0
  %7017 = vmatpush1.bf16.msra.mxu0 %v6985
  %7018 = vmatprep.subr.bf16.mxu0 0
  %7019 = vmatpush1.bf16.msra.mxu0 %v6984
  %7020 = vmatprep.subr.bf16.mxu0 0
  %7021 = vmatpush1.bf16.msra.mxu0 %v6983
  %7022 = vmatprep.subr.bf16.mxu0 0
  %7023 = vmatpush1.bf16.msra.mxu0 %v6982
  %7024 = vmatprep.subr.bf16.mxu0 0
  %7025 = vmatpush1.bf16.msra.mxu0 %v6981
  %7026 = vmatprep.subr.bf16.mxu0 0
  %7027 = vmatpush1.bf16.msra.mxu0 %v6980
  %7028 = vmatprep.subr.bf16.mxu0 0
  %7029 = vmatpush2.bf16.msra.mxu0 %v6995
  %7030 = vmatprep.subr.bf16.mxu0 0
  %7031 = vmatpush2.bf16.msra.mxu0 %v6994
  %7032 = vmatprep.subr.bf16.mxu0 0
  %7033 = vmatpush2.bf16.msra.mxu0 %v6993
  %7034 = vmatprep.subr.bf16.mxu0 0
  %7035 = vmatpush2.bf16.msra.mxu0 %v6992
  %7036 = vmatprep.subr.bf16.mxu0 0
  %7037 = vmatpush2.bf16.msra.mxu0 %v6991
  %7038 = vmatprep.subr.bf16.mxu0 0
  %7039 = vmatpush2.bf16.msra.mxu0 %v6990
  %7040 = vmatprep.subr.bf16.mxu0 0
  %7041 = vmatpush2.bf16.msra.mxu0 %v6989
  %7042 = vmatprep.subr.bf16.mxu0 0
  %7043 = vmatpush2.bf16.msra.mxu0 %v6988
  %7044 = vmatprep.mubr.bf16.mxu0 %v4686
  %7045 = vmatmul.mubr.bf16.gmra.mxu0 %v4685
  %v7046 = vpop.f32.mrf.mxu0
  %v7047 = vadd.f32 0.0, %v7046
  %v7048 = vpop.f32.mrf.mxu0
  %v7049 = vpop.f32.mrf.mxu0
  %v7050 = vadd.f32 0.0, %v7049
  %v7051 = vpop.f32.mrf.mxu0
  %7052 = vdwg.mxu0
  %v7053 = vadd.f32 %v5266, %v5403
  %v7054 = vadd.f32 %v7053, %v5540
  %v7055 = vadd.f32 %v7054, %v5677
  %v7056 = vadd.f32 %v7055, %v5814
  %v7057 = vadd.f32 %v7056, %v5951
  %v7058 = vadd.f32 %v7057, %v6088
  %v7059 = vadd.f32 %v7058, %v6225
  %v7060 = vadd.f32 %v7059, %v6362
  %v7061 = vadd.f32 %v7060, %v6499
  %v7062 = vadd.f32 %v7061, %v6636
  %v7063 = vadd.f32 %v7062, %v6773
  %v7064 = vadd.f32 %v7063, %v6910
  %v7065 = vadd.f32 %v7064, %v7047
  %v7066 = vadd.f32 %v5269, %v5406
  %v7067 = vadd.f32 %v7066, %v5543
  %v7068 = vadd.f32 %v7067, %v5680
  %v7069 = vadd.f32 %v7068, %v5817
  %v7070 = vadd.f32 %v7069, %v5954
  %v7071 = vadd.f32 %v7070, %v6091
  %v7072 = vadd.f32 %v7071, %v6228
  %v7073 = vadd.f32 %v7072, %v6365
  %v7074 = vadd.f32 %v7073, %v6502
  %v7075 = vadd.f32 %v7074, %v6639
  %v7076 = vadd.f32 %v7075, %v6776
  %v7077 = vadd.f32 %v7076, %v6913
  %v7078 = vadd.f32 %v7077, %v7050
  %v7079 = vld [vmem:[%s5] sm:$0x1]
  %v7081 = vlaneseq
  %v7082 = vshrl.u32 %v7081, 7
  %v7083 = vsub.s32 0, %v7082
  %v7084 = vrot.slane %v7079, %v7083
  %v7086 = vadd.f32 %v7065, %v7084
  %v7087 = vadd.f32 %v7078, %v7084
  %7088 = vst [vmem:[%s6] sm:$0xff] %v7086
  %7089 = vst [vmem:[%s6 + $0x8] sm:$0xff] %v7087
  // Predicated region
  $region26: #{custom_simple_cnn.1} parent=0 // pred_check
    _
  $region27: #{custom_simple_cnn.1} parent=0 // pred_check_branch
    %7091 = sbr.rel (0) target = $region29
  $region28: #{custom_simple_cnn.1} parent=0 // pred_region
    _
  $region29: #{custom_simple_cnn.1} parent=0 // pred_fallthru
    _
  // Predicated region
  $region30: #{custom_simple_cnn.1} parent=0 // pred_check
    _
  $region31: #{custom_simple_cnn.1} parent=0 // pred_check_branch
    %7093 = sbr.rel (0) target = $region33
  $region32: #{custom_simple_cnn.1} parent=0 // pred_region
    _
  $region33: #{custom_simple_cnn.1} parent=0 // pred_fallthru
    _

</llo_original>
